<compile_context>
chip_gen: v7x
topology: tpu7x:2x2x1
jax: 0.10.0
libtpu: 0.0.40
codegen_flags: <defaults>
</compile_context>

<pallas_src>
import functools
import math

import jax
import jax.numpy as jnp
from jax import lax
from jax.experimental import pallas as pl
from jax.experimental.pallas import tpu as pltpu


# ----------------------------- configuration ------------------------------- #
VOCAB = 128
D_MODEL = 32
NUM_HEADS = 4
D_KV = 8                      # inner dim = NUM_HEADS * D_KV = 32
D_FF = 64
NUM_LAYERS = 2
REL_BUCKETS = 32
REL_MAX_DIST = 128
LN_EPS = 1e-6
NEG_INF = -1e9


# ------------------------------ fused Pallas kernel ------------------------- #
def encoder_kernel(x_ref, bias_ref, ln0_ref, wqkv_ref, wo_ref, ln1_ref,
                   wi_ref, wof_ref, lnf_ref, out_ref, *rest,
                   num_layers, num_heads, d_kv, eps, store_probs):
    # One invocation == whole batch through the WHOLE encoder (rows = B*S tokens).
    if store_probs:
        probs_ref, ctx_buf = rest
    else:
        (ctx_buf,) = rest
        probs_ref = None

    h = x_ref[...]                       # (BS, D) f32 embedded tokens, batch folded
    BS = h.shape[0]
    HD = num_heads * d_kv

    def rmsnorm(x, w):                   # T5LayerNorm: no mean subtraction, no bias
        var = jnp.mean(x * x, axis=-1, keepdims=True)
        return x * lax.rsqrt(var + eps) * w

    # TODO(synk): if NUM_LAYERS grows beyond a few, switch this static unroll to
    # lax.fori_loop over the stacked layer axis to bound vreg live ranges.
    for l in range(num_layers):
        # -------- self-attention sublayer (pre-LN, fused residual) ---------- #
        xn = rmsnorm(h, ln0_ref[l])                                   # (BS, D)
        # Single fused Q|K|V projection: contraction D, 3*H*d_kv output lanes.
        qkv = jnp.dot(xn, wqkv_ref[l], preferred_element_type=jnp.float32)
        for hd in range(num_heads):
            q_h = qkv[:, hd * d_kv:(hd + 1) * d_kv]                   # (BS, d_kv)
            k_h = qkv[:, HD + hd * d_kv:HD + (hd + 1) * d_kv]
            v_h = qkv[:, 2 * HD + hd * d_kv:2 * HD + (hd + 1) * d_kv]
            # Block-diagonal attention over folded (b, s) rows: cross-batch key
            # pairs (and masked keys) carry -1e9 inside bias_ref -> prob 0 exactly.
            # T5: no 1/sqrt(d_k) scaling.
            s = jnp.einsum('qc,mc->qm', q_h, k_h,
                           preferred_element_type=jnp.float32)        # (BS, BS)
            s = s + bias_ref[hd]
            s = s - jnp.max(s, axis=-1, keepdims=True)
            e = jnp.exp(s)
            p = e / jnp.sum(e, axis=-1, keepdims=True)                # exact softmax
            if store_probs:
                # lane-dense probs slab: heads concatenated along the last axis
                probs_ref[l, :, hd * BS:(hd + 1) * BS] = p
            ctx_buf[:, hd * d_kv:(hd + 1) * d_kv] = jnp.dot(
                p, v_h, preferred_element_type=jnp.float32)           # (BS, d_kv)
        # Single output projection: one dot with contraction H*d_kv, plus residual.
        h = h + jnp.dot(ctx_buf[...], wo_ref[l],
                        preferred_element_type=jnp.float32)
        # -------- feed-forward sublayer (pre-LN, fused residual) ------------ #
        xn = rmsnorm(h, ln1_ref[l])
        ff = jnp.maximum(jnp.dot(xn, wi_ref[l],
                                 preferred_element_type=jnp.float32), 0.0)
        h = h + jnp.dot(ff, wof_ref[l], preferred_element_type=jnp.float32)

    out_ref[...] = rmsnorm(h, lnf_ref[...]).astype(out_ref.dtype)


def fused_encoder(x2, bias_full, ln0, wqkv, wo, ln1, wi, wof, lnf,
                  *, output_attentions=True):
    BS, D = x2.shape
    L = wqkv.shape[0]
    H = bias_full.shape[0]
    d_kv = wqkv.shape[-1] // (3 * H)

    def _full(arr):
        nd = arr.ndim
        return pl.BlockSpec(arr.shape, lambda i, _nd=nd: (0,) * _nd)

    kernel = functools.partial(encoder_kernel, num_layers=L, num_heads=H,
                               d_kv=d_kv, eps=LN_EPS,
                               store_probs=output_attentions)

    hidden_shape = jax.ShapeDtypeStruct((BS, D), x2.dtype)
    hidden_spec = pl.BlockSpec((BS, D), lambda i: (0, 0))
    if output_attentions:
        out_shape = (hidden_shape,
                     jax.ShapeDtypeStruct((L, BS, H * BS), jnp.float32))
        out_specs = (hidden_spec,
                     pl.BlockSpec((L, BS, H * BS), lambda i: (0, 0, 0)))
    else:
        out_shape = hidden_shape
        out_specs = hidden_spec

    args = (x2, bias_full, ln0, wqkv, wo, ln1, wi, wof, lnf)
    outs = pl.pallas_call(
        kernel,
        out_shape=out_shape,
        grid=(1,),                           # whole batch in one step (1-TC friendly)
        in_specs=[_full(a) for a in args],
        out_specs=out_specs,
        scratch_shapes=[pltpu.VMEM((BS, H * d_kv), jnp.float32)],
        compiler_params=pltpu.CompilerParams(dimension_semantics=("arbitrary",)),
    )(*args)
    if output_attentions:
        return outs[0], outs[1]
    return outs, None


# -------------------- relative position bias (plain JAX glue) --------------- #
def _relative_position_bucket(relative_position, num_buckets=REL_BUCKETS,
                              max_distance=REL_MAX_DIST):
    # bidirectional bucketing (T5 encoder)
    num_buckets = num_buckets // 2
    relative_buckets = (relative_position > 0).astype(jnp.int32) * num_buckets
    relative_position = jnp.abs(relative_position)
    max_exact = num_buckets // 2
    is_small = relative_position < max_exact
    rp_clamped = jnp.maximum(relative_position, 1).astype(jnp.float32)
    rel_if_large = max_exact + (
        jnp.log(rp_clamped / max_exact)
        / math.log(max_distance / max_exact)
        * (num_buckets - max_exact)
    ).astype(jnp.int32)
    rel_if_large = jnp.minimum(rel_if_large, num_buckets - 1)
    relative_buckets = relative_buckets + jnp.where(is_small, relative_position,
                                                    rel_if_large)
    return relative_buckets


def compute_position_bias(rel_bias_table, seq_len):
    ctx = jnp.arange(seq_len)[:, None]
    mem = jnp.arange(seq_len)[None, :]
    buckets = _relative_position_bucket(mem - ctx)          # (S, S)
    values = rel_bias_table[buckets]                        # (S, S, H)
    return jnp.transpose(values, (2, 0, 1))                 # (H, S, S)


# ------------------------------ parameter init ------------------------------ #
def init_params(key):
    def nrm(k, shape, scale=0.02):
        return (scale * jax.random.normal(k, shape)).astype(jnp.float32)

    keys = jax.random.split(key, 4 + NUM_LAYERS)
    params = {
        "embedding": nrm(keys[0], (VOCAB, D_MODEL), 1.0),
        "rel_attn_bias": nrm(keys[1], (REL_BUCKETS, NUM_HEADS)),
        "final_ln": jnp.ones((D_MODEL,), jnp.float32),
        "layers": [],
    }
    inner = NUM_HEADS * D_KV
    for i in range(NUM_LAYERS):
        lk = jax.random.split(keys[4 + i], 6)
        params["layers"].append({
            "ln0": jnp.ones((D_MODEL,), jnp.float32),
            "wq": nrm(lk[0], (D_MODEL, inner)),
            "wk": nrm(lk[1], (D_MODEL, inner)),
            "wv": nrm(lk[2], (D_MODEL, inner)),
            "wo": nrm(lk[3], (inner, D_MODEL)),
            "ln1": jnp.ones((D_MODEL,), jnp.float32),
            "wi": nrm(lk[4], (D_MODEL, D_FF)),
            "wo_ff": nrm(lk[5], (D_FF, D_MODEL)),
        })
    return params


# ------------------------------ encoder forward ----------------------------- #
def inv_encoder_forward(params, input_ids, attention_mask, output_attentions=True):
    B, S = input_ids.shape
    D, H, dkv, L = D_MODEL, NUM_HEADS, D_KV, NUM_LAYERS
    BS = B * S

    # JAX glue (outside kernel): embedding gather; fold rel-pos bias, key mask and
    # the cross-batch block-diagonal mask into one (H, BS, BS) additive bias.
    x2 = params["embedding"][input_ids].reshape(BS, D).astype(jnp.float32)

    rel = compute_position_bias(params["rel_attn_bias"], S)          # (H, S, S)
    neg = (1.0 - attention_mask.astype(jnp.float32)) * NEG_INF       # (B, S)
    within = rel[None] + neg[:, None, None, :]                       # (B, H, S, S)
    w_t = jnp.transpose(within, (1, 0, 2, 3))                        # (H, B, S, S)
    same_b = jnp.arange(B)[:, None] == jnp.arange(B)[None, :]        # (B, B)
    bias_full = jnp.where(same_b[None, :, None, :, None],
                          w_t[:, :, :, None, :],
                          NEG_INF).reshape(H, BS, BS)                # (H, BS, BS)

    # Per-layer weights stacked along a leading layer axis; Q|K|V fused per layer.
    layers = params["layers"]
    ln0 = jnp.stack([lyr["ln0"] for lyr in layers])[:, None, :]      # (L, 1, D)
    ln1 = jnp.stack([lyr["ln1"] for lyr in layers])[:, None, :]      # (L, 1, D)
    wqkv = jnp.concatenate(
        [jnp.stack([lyr[name] for lyr in layers]) for name in ("wq", "wk", "wv")],
        axis=-1).astype(jnp.float32)                                 # (L, D, 3*H*dkv)
    wo = jnp.stack([lyr["wo"] for lyr in layers]).astype(jnp.float32)     # (L, H*dkv, D)
    wi = jnp.stack([lyr["wi"] for lyr in layers]).astype(jnp.float32)     # (L, D, D_FF)
    wof = jnp.stack([lyr["wo_ff"] for lyr in layers]).astype(jnp.float32) # (L, D_FF, D)
    lnf = params["final_ln"].reshape(1, D)

    hidden2, probs_wide = fused_encoder(x2, bias_full, ln0, wqkv, wo, ln1, wi,
                                        wof, lnf,
                                        output_attentions=output_attentions)
    last_hidden = hidden2.reshape(B, S, D)

    attentions = None
    if output_attentions:
        # probs_wide: (L, BS, H*BS) with rows=(b,q), lanes=(h, b', k); take the
        # block-diagonal (b == b') and reorder to per-layer (B, H, S, S).
        p6 = probs_wide.reshape(L, B, S, H, B, S)
        att = jnp.stack([p6[:, b, :, :, b, :] for b in range(B)], axis=1)  # (L,B,S,H,S)
        att = jnp.transpose(att, (0, 1, 3, 2, 4))                          # (L,B,H,S,S)
        attentions = tuple(att[l] for l in range(L))

    # NOTE: the PyTorch reference assigns the whole encoder-output object to
    # `last_hidden_state` (a bug); we return the semantically intended fields.
    return {"last_hidden_state": last_hidden,
            "hidden_states": None,
            "attentions": attentions}


# ------------------------- pure-JAX reference (checking) -------------------- #
def encoder_reference(params, input_ids, attention_mask):
    B, S = input_ids.shape
    h = params["embedding"][input_ids].astype(jnp.float32)           # (B, S, D)
    rel = compute_position_bias(params["rel_attn_bias"], S)          # (H, S, S)
    neg = (1.0 - attention_mask.astype(jnp.float32)) * NEG_INF
    bias = rel[None] + neg[:, None, None, :]                         # (B, H, S, S)

    def rmsnorm(x, w):
        var = jnp.mean(x * x, axis=-1, keepdims=True)
        return x * lax.rsqrt(var + LN_EPS) * w

    atts = []
    for lyr in params["layers"]:
        xn = rmsnorm(h, lyr["ln0"])
        q = (xn @ lyr["wq"]).reshape(B, S, NUM_HEADS, D_KV)
        k = (xn @ lyr["wk"]).reshape(B, S, NUM_HEADS, D_KV)
        v = (xn @ lyr["wv"]).reshape(B, S, NUM_HEADS, D_KV)
        s = jnp.einsum('bqhc,bmhc->bhqm', q, k) + bias
        p = jax.nn.softmax(s, axis=-1)
        atts.append(p)
        ctx = jnp.einsum('bhqm,bmhc->bqhc', p, v).reshape(B, S, NUM_HEADS * D_KV)
        h = h + ctx @ lyr["wo"]
        xn = rmsnorm(h, lyr["ln1"])
        h = h + jnp.maximum(xn @ lyr["wi"], 0.0) @ lyr["wo_ff"]
    return rmsnorm(h, params["final_ln"]), atts


# ----------------------------------- main ----------------------------------- #
if __name__ == "__main__":
    key = jax.random.PRNGKey(0)
    pkey, ikey = jax.random.split(key)
    params = init_params(pkey)

    B, S = 2, 8
    input_ids = jax.random.randint(ikey, (B, S), 0, VOCAB, dtype=jnp.int32)
    attention_mask = jnp.array([[1, 1, 1, 1, 1, 1, 1, 1],
                                [1, 1, 1, 1, 1, 0, 0, 0]], dtype=jnp.int32)

    out = inv_encoder_forward(params, input_ids, attention_mask,
                              output_attentions=True)
    last_hidden = jax.block_until_ready(out["last_hidden_state"])
    attns = [jax.block_until_ready(a) for a in out["attentions"]]

    ref_hidden, ref_atts = encoder_reference(params, input_ids, attention_mask)

    assert last_hidden.shape == (B, S, D_MODEL)
    assert len(attns) == NUM_LAYERS
    assert attns[0].shape == (B, NUM_HEADS, S, S)
    assert bool(jnp.all(jnp.isfinite(last_hidden)))
    assert all(bool(jnp.all(jnp.isfinite(a))) for a in attns)
    # softmax rows sum to 1 (exact reciprocal used in the kernel)
    assert bool(jnp.all(jnp.abs(jnp.sum(attns[0], axis=-1) - 1.0) < 1e-3))
    # match the pure-JAX reference encoder
    assert bool(jnp.allclose(last_hidden, ref_hidden, atol=2e-3, rtol=2e-3))
    for a, r in zip(attns, ref_atts):
        assert bool(jnp.allclose(a, r, atol=2e-3))

    # probs-free fast path (no attention output compiled) also runs
    out2 = inv_encoder_forward(params, input_ids, attention_mask,
                               output_attentions=False)
    h2 = jax.block_until_ready(out2["last_hidden_state"])
    assert out2["attentions"] is None
    assert bool(jnp.allclose(h2, last_hidden, atol=1e-5))

    print("KERNEL_OK")
</pallas_src>

<mosaic_0001>
module attributes {stable_mosaic.version = 11 : i64} {
  func.func @encoder_kernel(%arg0: i32, %arg1: memref<16x32xf32, #tpu.memory_space<vmem>>, %arg2: memref<4x16x16xf32, #tpu.memory_space<vmem>>, %arg3: memref<2x1x32xf32, #tpu.memory_space<vmem>>, %arg4: memref<2x32x96xf32, #tpu.memory_space<vmem>>, %arg5: memref<2x32x32xf32, #tpu.memory_space<vmem>>, %arg6: memref<2x1x32xf32, #tpu.memory_space<vmem>>, %arg7: memref<2x32x64xf32, #tpu.memory_space<vmem>>, %arg8: memref<2x64x32xf32, #tpu.memory_space<vmem>>, %arg9: memref<1x32xf32, #tpu.memory_space<vmem>>, %arg10: memref<16x32xf32, #tpu.memory_space<vmem>>, %arg11: memref<2x16x64xf32, #tpu.memory_space<vmem>>, %arg12: memref<16x32xf32, #tpu.memory_space<vmem>>) attributes {dimension_semantics = [#tpu.dimension_semantics<arbitrary>], iteration_bounds = array<i64: 1>, scalar_prefetch = 0 : i64, scratch_operands = 1 : i64, tpu.core_type = #tpu.core_type<tc>, window_params = [{pipeline_mode = #tpu.pipeline_mode<synchronous>, transform_indices = @transform_0, window_bounds = array<i64: 16, 32>}, {pipeline_mode = #tpu.pipeline_mode<synchronous>, transform_indices = @transform_1, window_bounds = array<i64: 4, 16, 16>}, {pipeline_mode = #tpu.pipeline_mode<synchronous>, transform_indices = @transform_2, window_bounds = array<i64: 2, 1, 32>}, {pipeline_mode = #tpu.pipeline_mode<synchronous>, transform_indices = @transform_3, window_bounds = array<i64: 2, 32, 96>}, {pipeline_mode = #tpu.pipeline_mode<synchronous>, transform_indices = @transform_4, window_bounds = array<i64: 2, 32, 32>}, {pipeline_mode = #tpu.pipeline_mode<synchronous>, transform_indices = @transform_5, window_bounds = array<i64: 2, 1, 32>}, {pipeline_mode = #tpu.pipeline_mode<synchronous>, transform_indices = @transform_6, window_bounds = array<i64: 2, 32, 64>}, {pipeline_mode = #tpu.pipeline_mode<synchronous>, transform_indices = @transform_7, window_bounds = array<i64: 2, 64, 32>}, {pipeline_mode = #tpu.pipeline_mode<synchronous>, transform_indices = @transform_8, window_bounds = array<i64: 1, 32>}, {pipeline_mode = #tpu.pipeline_mode<synchronous>, transform_indices = @transform_9, window_bounds = array<i64: 16, 32>}, {pipeline_mode = #tpu.pipeline_mode<synchronous>, transform_indices = @transform_10, window_bounds = array<i64: 2, 16, 64>}]} {
    %c0 = arith.constant 0 : index
    %c0_0 = arith.constant 0 : index
    %0 = vector.load %arg1[%c0, %c0_0] : memref<16x32xf32, #tpu.memory_space<vmem>>, vector<16x32xf32>
    %c0_1 = arith.constant 0 : index
    %c0_2 = arith.constant 0 : index
    %c0_3 = arith.constant 0 : index
    %1 = vector.load %arg3[%c0_1, %c0_2, %c0_3] : memref<2x1x32xf32, #tpu.memory_space<vmem>>, vector<1x1x32xf32>
    %2 = vector.shape_cast %1 : vector<1x1x32xf32> to vector<1x32xf32>
    %3 = arith.mulf %0, %0 : vector<16x32xf32>
    %cst = arith.constant dense<0.000000e+00> : vector<16xf32>
    %4 = vector.multi_reduction <add>, %3, %cst [1] : vector<16x32xf32> to vector<16xf32>
    %5 = vector.shape_cast %4 : vector<16xf32> to vector<16x1xf32>
    %cst_4 = arith.constant 3.200000e+01 : f32
    %6 = vector.broadcast %cst_4 : f32 to vector<16x1xf32>
    %7 = arith.divf %5, %6 : vector<16x1xf32>
    %cst_5 = arith.constant 9.99999997E-7 : f32
    %8 = vector.broadcast %cst_5 : f32 to vector<16x1xf32>
    %9 = arith.addf %7, %8 : vector<16x1xf32>
    %10 = math.rsqrt %9 : vector<16x1xf32>
    %11 = vector.broadcast %10 : vector<16x1xf32> to vector<16x32xf32>
    %12 = arith.mulf %0, %11 : vector<16x32xf32>
    %13 = vector.broadcast %2 : vector<1x32xf32> to vector<16x32xf32>
    %14 = arith.mulf %12, %13 : vector<16x32xf32>
    %c0_6 = arith.constant 0 : index
    %c0_7 = arith.constant 0 : index
    %c0_8 = arith.constant 0 : index
    %15 = vector.load %arg4[%c0_6, %c0_7, %c0_8] : memref<2x32x96xf32, #tpu.memory_space<vmem>>, vector<1x32x96xf32>
    %16 = vector.shape_cast %15 : vector<1x32x96xf32> to vector<32x96xf32>
    %cst_9 = arith.constant dense<0.000000e+00> : vector<16x96xf32>
    %17 = tpu.matmul %14, %16, %cst_9 {dimension_numbers = #tpu.dot_dimension_numbers<[1], [0], [0], [1], [0, 0, 1, 1], [], []>} : vector<16x32xf32>, vector<32x96xf32>, vector<16x96xf32> -> vector<16x96xf32>
    %18 = vector.extract_strided_slice %17 {offsets = [0, 0], sizes = [16, 8], strides = [1, 1]} : vector<16x96xf32> to vector<16x8xf32>
    %19 = vector.extract_strided_slice %17 {offsets = [0, 32], sizes = [16, 8], strides = [1, 1]} : vector<16x96xf32> to vector<16x8xf32>
    %20 = vector.extract_strided_slice %17 {offsets = [0, 64], sizes = [16, 8], strides = [1, 1]} : vector<16x96xf32> to vector<16x8xf32>
    "tpu.trace_start"() <{level = 10 : i32, message = "qc,mc->qm"}> : () -> ()
    %cst_10 = arith.constant dense<0.000000e+00> : vector<16x16xf32>
    %21 = tpu.matmul %18, %19, %cst_10 {dimension_numbers = #tpu.dot_dimension_numbers<[1], [1], [0], [0], [0, 0, 1, 0], [], []>} : vector<16x8xf32>, vector<16x8xf32>, vector<16x16xf32> -> vector<16x16xf32>
    "tpu.trace_stop"() : () -> ()
    %c0_11 = arith.constant 0 : index
    %c0_12 = arith.constant 0 : index
    %c0_13 = arith.constant 0 : index
    %22 = vector.load %arg2[%c0_11, %c0_12, %c0_13] : memref<4x16x16xf32, #tpu.memory_space<vmem>>, vector<1x16x16xf32>
    %23 = vector.shape_cast %22 : vector<1x16x16xf32> to vector<16x16xf32>
    %24 = arith.addf %21, %23 : vector<16x16xf32>
    %cst_14 = arith.constant dense<0xFF800000> : vector<16xf32>
    %25 = vector.multi_reduction <maximumf>, %24, %cst_14 [1] : vector<16x16xf32> to vector<16xf32>
    %26 = vector.shape_cast %25 : vector<16xf32> to vector<16x1xf32>
    %27 = vector.broadcast %26 : vector<16x1xf32> to vector<16x16xf32>
    %28 = arith.subf %24, %27 : vector<16x16xf32>
    %29 = math.exp %28 : vector<16x16xf32>
    %cst_15 = arith.constant dense<0.000000e+00> : vector<16xf32>
    %30 = vector.multi_reduction <add>, %29, %cst_15 [1] : vector<16x16xf32> to vector<16xf32>
    %31 = vector.shape_cast %30 : vector<16xf32> to vector<16x1xf32>
    %32 = vector.broadcast %31 : vector<16x1xf32> to vector<16x16xf32>
    %33 = arith.divf %29, %32 : vector<16x16xf32>
    %c0_16 = arith.constant 0 : index
    %c0_17 = arith.constant 0 : index
    %c0_18 = arith.constant 0 : index
    %34 = vector.load %arg11[%c0_16, %c0_17, %c0_18] : memref<2x16x64xf32, #tpu.memory_space<vmem>>, vector<1x16x16xf32>
    %35 = vector.shape_cast %34 : vector<1x16x16xf32> to vector<16x16xf32>
    %36 = vector.shape_cast %33 : vector<16x16xf32> to vector<1x16x16xf32>
    tpu.vector_store %arg11[%c0_16, %c0_17, %c0_18], %36 {strides = array<i32>} : memref<2x16x64xf32, #tpu.memory_space<vmem>>, vector<1x16x16xf32>,
    %cst_19 = arith.constant dense<0.000000e+00> : vector<16x8xf32>
    %37 = tpu.matmul %33, %20, %cst_19 {dimension_numbers = #tpu.dot_dimension_numbers<[1], [0], [0], [1], [0, 0, 1, 1], [], []>} : vector<16x16xf32>, vector<16x8xf32>, vector<16x8xf32> -> vector<16x8xf32>
    %c0_20 = arith.constant 0 : index
    %c0_21 = arith.constant 0 : index
    %38 = vector.load %arg12[%c0_20, %c0_21] : memref<16x32xf32, #tpu.memory_space<vmem>>, vector<16x8xf32>
    tpu.vector_store %arg12[%c0_20, %c0_21], %37 {strides = array<i32>} : memref<16x32xf32, #tpu.memory_space<vmem>>, vector<16x8xf32>,
    %39 = vector.extract_strided_slice %17 {offsets = [0, 8], sizes = [16, 8], strides = [1, 1]} : vector<16x96xf32> to vector<16x8xf32>
    %40 = vector.extract_strided_slice %17 {offsets = [0, 40], sizes = [16, 8], strides = [1, 1]} : vector<16x96xf32> to vector<16x8xf32>
    %41 = vector.extract_strided_slice %17 {offsets = [0, 72], sizes = [16, 8], strides = [1, 1]} : vector<16x96xf32> to vector<16x8xf32>
    "tpu.trace_start"() <{level = 10 : i32, message = "qc,mc->qm"}> : () -> ()
    %cst_22 = arith.constant dense<0.000000e+00> : vector<16x16xf32>
    %42 = tpu.matmul %39, %40, %cst_22 {dimension_numbers = #tpu.dot_dimension_numbers<[1], [1], [0], [0], [0, 0, 1, 0], [], []>} : vector<16x8xf32>, vector<16x8xf32>, vector<16x16xf32> -> vector<16x16xf32>
    "tpu.trace_stop"() : () -> ()
    %c1 = arith.constant 1 : index
    %c0_23 = arith.constant 0 : index
    %c0_24 = arith.constant 0 : index
    %43 = vector.load %arg2[%c1, %c0_23, %c0_24] : memref<4x16x16xf32, #tpu.memory_space<vmem>>, vector<1x16x16xf32>
    %44 = vector.shape_cast %43 : vector<1x16x16xf32> to vector<16x16xf32>
    %45 = arith.addf %42, %44 : vector<16x16xf32>
    %cst_25 = arith.constant dense<0xFF800000> : vector<16xf32>
    %46 = vector.multi_reduction <maximumf>, %45, %cst_25 [1] : vector<16x16xf32> to vector<16xf32>
    %47 = vector.shape_cast %46 : vector<16xf32> to vector<16x1xf32>
    %48 = vector.broadcast %47 : vector<16x1xf32> to vector<16x16xf32>
    %49 = arith.subf %45, %48 : vector<16x16xf32>
    %50 = math.exp %49 : vector<16x16xf32>
    %cst_26 = arith.constant dense<0.000000e+00> : vector<16xf32>
    %51 = vector.multi_reduction <add>, %50, %cst_26 [1] : vector<16x16xf32> to vector<16xf32>
    %52 = vector.shape_cast %51 : vector<16xf32> to vector<16x1xf32>
    %53 = vector.broadcast %52 : vector<16x1xf32> to vector<16x16xf32>
    %54 = arith.divf %50, %53 : vector<16x16xf32>
    %c0_27 = arith.constant 0 : index
    %c0_28 = arith.constant 0 : index
    %c16 = arith.constant 16 : index
    %55 = vector.load %arg11[%c0_27, %c0_28, %c16] : memref<2x16x64xf32, #tpu.memory_space<vmem>>, vector<1x16x16xf32>
    %56 = vector.shape_cast %55 : vector<1x16x16xf32> to vector<16x16xf32>
    %57 = vector.shape_cast %54 : vector<16x16xf32> to vector<1x16x16xf32>
    tpu.vector_store %arg11[%c0_27, %c0_28, %c16], %57 {strides = array<i32>} : memref<2x16x64xf32, #tpu.memory_space<vmem>>, vector<1x16x16xf32>,
    %cst_29 = arith.constant dense<0.000000e+00> : vector<16x8xf32>
    %58 = tpu.matmul %54, %41, %cst_29 {dimension_numbers = #tpu.dot_dimension_numbers<[1], [0], [0], [1], [0, 0, 1, 1], [], []>} : vector<16x16xf32>, vector<16x8xf32>, vector<16x8xf32> -> vector<16x8xf32>
    %c0_30 = arith.constant 0 : index
    %c8 = arith.constant 8 : index
    %59 = vector.load %arg12[%c0_30, %c8] : memref<16x32xf32, #tpu.memory_space<vmem>>, vector<16x8xf32>
    tpu.vector_store %arg12[%c0_30, %c8], %58 {strides = array<i32>} : memref<16x32xf32, #tpu.memory_space<vmem>>, vector<16x8xf32>,
    %60 = vector.extract_strided_slice %17 {offsets = [0, 16], sizes = [16, 8], strides = [1, 1]} : vector<16x96xf32> to vector<16x8xf32>
    %61 = vector.extract_strided_slice %17 {offsets = [0, 48], sizes = [16, 8], strides = [1, 1]} : vector<16x96xf32> to vector<16x8xf32>
    %62 = vector.extract_strided_slice %17 {offsets = [0, 80], sizes = [16, 8], strides = [1, 1]} : vector<16x96xf32> to vector<16x8xf32>
    "tpu.trace_start"() <{level = 10 : i32, message = "qc,mc->qm"}> : () -> ()
    %cst_31 = arith.constant dense<0.000000e+00> : vector<16x16xf32>
    %63 = tpu.matmul %60, %61, %cst_31 {dimension_numbers = #tpu.dot_dimension_numbers<[1], [1], [0], [0], [0, 0, 1, 0], [], []>} : vector<16x8xf32>, vector<16x8xf32>, vector<16x16xf32> -> vector<16x16xf32>
    "tpu.trace_stop"() : () -> ()
    %c2 = arith.constant 2 : index
    %c0_32 = arith.constant 0 : index
    %c0_33 = arith.constant 0 : index
    %64 = vector.load %arg2[%c2, %c0_32, %c0_33] : memref<4x16x16xf32, #tpu.memory_space<vmem>>, vector<1x16x16xf32>
    %65 = vector.shape_cast %64 : vector<1x16x16xf32> to vector<16x16xf32>
    %66 = arith.addf %63, %65 : vector<16x16xf32>
    %cst_34 = arith.constant dense<0xFF800000> : vector<16xf32>
    %67 = vector.multi_reduction <maximumf>, %66, %cst_34 [1] : vector<16x16xf32> to vector<16xf32>
    %68 = vector.shape_cast %67 : vector<16xf32> to vector<16x1xf32>
    %69 = vector.broadcast %68 : vector<16x1xf32> to vector<16x16xf32>
    %70 = arith.subf %66, %69 : vector<16x16xf32>
    %71 = math.exp %70 : vector<16x16xf32>
    %cst_35 = arith.constant dense<0.000000e+00> : vector<16xf32>
    %72 = vector.multi_reduction <add>, %71, %cst_35 [1] : vector<16x16xf32> to vector<16xf32>
    %73 = vector.shape_cast %72 : vector<16xf32> to vector<16x1xf32>
    %74 = vector.broadcast %73 : vector<16x1xf32> to vector<16x16xf32>
    %75 = arith.divf %71, %74 : vector<16x16xf32>
    %c0_36 = arith.constant 0 : index
    %c0_37 = arith.constant 0 : index
    %c32 = arith.constant 32 : index
    %76 = vector.load %arg11[%c0_36, %c0_37, %c32] : memref<2x16x64xf32, #tpu.memory_space<vmem>>, vector<1x16x16xf32>
    %77 = vector.shape_cast %76 : vector<1x16x16xf32> to vector<16x16xf32>
    %78 = vector.shape_cast %75 : vector<16x16xf32> to vector<1x16x16xf32>
    tpu.vector_store %arg11[%c0_36, %c0_37, %c32], %78 {strides = array<i32>} : memref<2x16x64xf32, #tpu.memory_space<vmem>>, vector<1x16x16xf32>,
    %cst_38 = arith.constant dense<0.000000e+00> : vector<16x8xf32>
    %79 = tpu.matmul %75, %62, %cst_38 {dimension_numbers = #tpu.dot_dimension_numbers<[1], [0], [0], [1], [0, 0, 1, 1], [], []>} : vector<16x16xf32>, vector<16x8xf32>, vector<16x8xf32> -> vector<16x8xf32>
    %c0_39 = arith.constant 0 : index
    %c16_40 = arith.constant 16 : index
    %80 = vector.load %arg12[%c0_39, %c16_40] : memref<16x32xf32, #tpu.memory_space<vmem>>, vector<16x8xf32>
    tpu.vector_store %arg12[%c0_39, %c16_40], %79 {strides = array<i32>} : memref<16x32xf32, #tpu.memory_space<vmem>>, vector<16x8xf32>,
    %81 = vector.extract_strided_slice %17 {offsets = [0, 24], sizes = [16, 8], strides = [1, 1]} : vector<16x96xf32> to vector<16x8xf32>
    %82 = vector.extract_strided_slice %17 {offsets = [0, 56], sizes = [16, 8], strides = [1, 1]} : vector<16x96xf32> to vector<16x8xf32>
    %83 = vector.extract_strided_slice %17 {offsets = [0, 88], sizes = [16, 8], strides = [1, 1]} : vector<16x96xf32> to vector<16x8xf32>
    "tpu.trace_start"() <{level = 10 : i32, message = "qc,mc->qm"}> : () -> ()
    %cst_41 = arith.constant dense<0.000000e+00> : vector<16x16xf32>
    %84 = tpu.matmul %81, %82, %cst_41 {dimension_numbers = #tpu.dot_dimension_numbers<[1], [1], [0], [0], [0, 0, 1, 0], [], []>} : vector<16x8xf32>, vector<16x8xf32>, vector<16x16xf32> -> vector<16x16xf32>
    "tpu.trace_stop"() : () -> ()
    %c3 = arith.constant 3 : index
    %c0_42 = arith.constant 0 : index
    %c0_43 = arith.constant 0 : index
    %85 = vector.load %arg2[%c3, %c0_42, %c0_43] : memref<4x16x16xf32, #tpu.memory_space<vmem>>, vector<1x16x16xf32>
    %86 = vector.shape_cast %85 : vector<1x16x16xf32> to vector<16x16xf32>
    %87 = arith.addf %84, %86 : vector<16x16xf32>
    %cst_44 = arith.constant dense<0xFF800000> : vector<16xf32>
    %88 = vector.multi_reduction <maximumf>, %87, %cst_44 [1] : vector<16x16xf32> to vector<16xf32>
    %89 = vector.shape_cast %88 : vector<16xf32> to vector<16x1xf32>
    %90 = vector.broadcast %89 : vector<16x1xf32> to vector<16x16xf32>
    %91 = arith.subf %87, %90 : vector<16x16xf32>
    %92 = math.exp %91 : vector<16x16xf32>
    %cst_45 = arith.constant dense<0.000000e+00> : vector<16xf32>
    %93 = vector.multi_reduction <add>, %92, %cst_45 [1] : vector<16x16xf32> to vector<16xf32>
    %94 = vector.shape_cast %93 : vector<16xf32> to vector<16x1xf32>
    %95 = vector.broadcast %94 : vector<16x1xf32> to vector<16x16xf32>
    %96 = arith.divf %92, %95 : vector<16x16xf32>
    %c0_46 = arith.constant 0 : index
    %c0_47 = arith.constant 0 : index
    %c48 = arith.constant 48 : index
    %97 = vector.load %arg11[%c0_46, %c0_47, %c48] : memref<2x16x64xf32, #tpu.memory_space<vmem>>, vector<1x16x16xf32>
    %98 = vector.shape_cast %97 : vector<1x16x16xf32> to vector<16x16xf32>
    %99 = vector.shape_cast %96 : vector<16x16xf32> to vector<1x16x16xf32>
    tpu.vector_store %arg11[%c0_46, %c0_47, %c48], %99 {strides = array<i32>} : memref<2x16x64xf32, #tpu.memory_space<vmem>>, vector<1x16x16xf32>,
    %cst_48 = arith.constant dense<0.000000e+00> : vector<16x8xf32>
    %100 = tpu.matmul %96, %83, %cst_48 {dimension_numbers = #tpu.dot_dimension_numbers<[1], [0], [0], [1], [0, 0, 1, 1], [], []>} : vector<16x16xf32>, vector<16x8xf32>, vector<16x8xf32> -> vector<16x8xf32>
    %c0_49 = arith.constant 0 : index
    %c24 = arith.constant 24 : index
    %101 = vector.load %arg12[%c0_49, %c24] : memref<16x32xf32, #tpu.memory_space<vmem>>, vector<16x8xf32>
    tpu.vector_store %arg12[%c0_49, %c24], %100 {strides = array<i32>} : memref<16x32xf32, #tpu.memory_space<vmem>>, vector<16x8xf32>,
    %c0_50 = arith.constant 0 : index
    %c0_51 = arith.constant 0 : index
    %102 = vector.load %arg12[%c0_50, %c0_51] : memref<16x32xf32, #tpu.memory_space<vmem>>, vector<16x32xf32>
    %c0_52 = arith.constant 0 : index
    %c0_53 = arith.constant 0 : index
    %c0_54 = arith.constant 0 : index
    %103 = vector.load %arg5[%c0_52, %c0_53, %c0_54] : memref<2x32x32xf32, #tpu.memory_space<vmem>>, vector<1x32x32xf32>
    %104 = vector.shape_cast %103 : vector<1x32x32xf32> to vector<32x32xf32>
    %cst_55 = arith.constant dense<0.000000e+00> : vector<16x32xf32>
    %105 = tpu.matmul %102, %104, %cst_55 {dimension_numbers = #tpu.dot_dimension_numbers<[1], [0], [0], [1], [0, 0, 1, 1], [], []>} : vector<16x32xf32>, vector<32x32xf32>, vector<16x32xf32> -> vector<16x32xf32>
    %106 = arith.addf %0, %105 : vector<16x32xf32>
    %c0_56 = arith.constant 0 : index
    %c0_57 = arith.constant 0 : index
    %c0_58 = arith.constant 0 : index
    %107 = vector.load %arg6[%c0_56, %c0_57, %c0_58] : memref<2x1x32xf32, #tpu.memory_space<vmem>>, vector<1x1x32xf32>
    %108 = vector.shape_cast %107 : vector<1x1x32xf32> to vector<1x32xf32>
    %109 = arith.mulf %106, %106 : vector<16x32xf32>
    %cst_59 = arith.constant dense<0.000000e+00> : vector<16xf32>
    %110 = vector.multi_reduction <add>, %109, %cst_59 [1] : vector<16x32xf32> to vector<16xf32>
    %111 = vector.shape_cast %110 : vector<16xf32> to vector<16x1xf32>
    %cst_60 = arith.constant 3.200000e+01 : f32
    %112 = vector.broadcast %cst_60 : f32 to vector<16x1xf32>
    %113 = arith.divf %111, %112 : vector<16x1xf32>
    %cst_61 = arith.constant 9.99999997E-7 : f32
    %114 = vector.broadcast %cst_61 : f32 to vector<16x1xf32>
    %115 = arith.addf %113, %114 : vector<16x1xf32>
    %116 = math.rsqrt %115 : vector<16x1xf32>
    %117 = vector.broadcast %116 : vector<16x1xf32> to vector<16x32xf32>
    %118 = arith.mulf %106, %117 : vector<16x32xf32>
    %119 = vector.broadcast %108 : vector<1x32xf32> to vector<16x32xf32>
    %120 = arith.mulf %118, %119 : vector<16x32xf32>
    %c0_62 = arith.constant 0 : index
    %c0_63 = arith.constant 0 : index
    %c0_64 = arith.constant 0 : index
    %121 = vector.load %arg7[%c0_62, %c0_63, %c0_64] : memref<2x32x64xf32, #tpu.memory_space<vmem>>, vector<1x32x64xf32>
    %122 = vector.shape_cast %121 : vector<1x32x64xf32> to vector<32x64xf32>
    %cst_65 = arith.constant dense<0.000000e+00> : vector<16x64xf32>
    %123 = tpu.matmul %120, %122, %cst_65 {dimension_numbers = #tpu.dot_dimension_numbers<[1], [0], [0], [1], [0, 0, 1, 1], [], []>} : vector<16x32xf32>, vector<32x64xf32>, vector<16x64xf32> -> vector<16x64xf32>
    %cst_66 = arith.constant 0.000000e+00 : f32
    %124 = vector.broadcast %cst_66 : f32 to vector<16x64xf32>
    %125 = arith.maximumf %123, %124 : vector<16x64xf32>
    %c0_67 = arith.constant 0 : index
    %c0_68 = arith.constant 0 : index
    %c0_69 = arith.constant 0 : index
    %126 = vector.load %arg8[%c0_67, %c0_68, %c0_69] : memref<2x64x32xf32, #tpu.memory_space<vmem>>, vector<1x64x32xf32>
    %127 = vector.shape_cast %126 : vector<1x64x32xf32> to vector<64x32xf32>
    %cst_70 = arith.constant dense<0.000000e+00> : vector<16x32xf32>
    %128 = tpu.matmul %125, %127, %cst_70 {dimension_numbers = #tpu.dot_dimension_numbers<[1], [0], [0], [1], [0, 0, 1, 1], [], []>} : vector<16x64xf32>, vector<64x32xf32>, vector<16x32xf32> -> vector<16x32xf32>
    %129 = arith.addf %106, %128 : vector<16x32xf32>
    %c1_71 = arith.constant 1 : index
    %c0_72 = arith.constant 0 : index
    %c0_73 = arith.constant 0 : index
    %130 = vector.load %arg3[%c1_71, %c0_72, %c0_73] : memref<2x1x32xf32, #tpu.memory_space<vmem>>, vector<1x1x32xf32>
    %131 = vector.shape_cast %130 : vector<1x1x32xf32> to vector<1x32xf32>
    %132 = arith.mulf %129, %129 : vector<16x32xf32>
    %cst_74 = arith.constant dense<0.000000e+00> : vector<16xf32>
    %133 = vector.multi_reduction <add>, %132, %cst_74 [1] : vector<16x32xf32> to vector<16xf32>
    %134 = vector.shape_cast %133 : vector<16xf32> to vector<16x1xf32>
    %cst_75 = arith.constant 3.200000e+01 : f32
    %135 = vector.broadcast %cst_75 : f32 to vector<16x1xf32>
    %136 = arith.divf %134, %135 : vector<16x1xf32>
    %cst_76 = arith.constant 9.99999997E-7 : f32
    %137 = vector.broadcast %cst_76 : f32 to vector<16x1xf32>
    %138 = arith.addf %136, %137 : vector<16x1xf32>
    %139 = math.rsqrt %138 : vector<16x1xf32>
    %140 = vector.broadcast %139 : vector<16x1xf32> to vector<16x32xf32>
    %141 = arith.mulf %129, %140 : vector<16x32xf32>
    %142 = vector.broadcast %131 : vector<1x32xf32> to vector<16x32xf32>
    %143 = arith.mulf %141, %142 : vector<16x32xf32>
    %c1_77 = arith.constant 1 : index
    %c0_78 = arith.constant 0 : index
    %c0_79 = arith.constant 0 : index
    %144 = vector.load %arg4[%c1_77, %c0_78, %c0_79] : memref<2x32x96xf32, #tpu.memory_space<vmem>>, vector<1x32x96xf32>
    %145 = vector.shape_cast %144 : vector<1x32x96xf32> to vector<32x96xf32>
    %cst_80 = arith.constant dense<0.000000e+00> : vector<16x96xf32>
    %146 = tpu.matmul %143, %145, %cst_80 {dimension_numbers = #tpu.dot_dimension_numbers<[1], [0], [0], [1], [0, 0, 1, 1], [], []>} : vector<16x32xf32>, vector<32x96xf32>, vector<16x96xf32> -> vector<16x96xf32>
    %147 = vector.extract_strided_slice %146 {offsets = [0, 0], sizes = [16, 8], strides = [1, 1]} : vector<16x96xf32> to vector<16x8xf32>
    %148 = vector.extract_strided_slice %146 {offsets = [0, 32], sizes = [16, 8], strides = [1, 1]} : vector<16x96xf32> to vector<16x8xf32>
    %149 = vector.extract_strided_slice %146 {offsets = [0, 64], sizes = [16, 8], strides = [1, 1]} : vector<16x96xf32> to vector<16x8xf32>
    "tpu.trace_start"() <{level = 10 : i32, message = "qc,mc->qm"}> : () -> ()
    %cst_81 = arith.constant dense<0.000000e+00> : vector<16x16xf32>
    %150 = tpu.matmul %147, %148, %cst_81 {dimension_numbers = #tpu.dot_dimension_numbers<[1], [1], [0], [0], [0, 0, 1, 0], [], []>} : vector<16x8xf32>, vector<16x8xf32>, vector<16x16xf32> -> vector<16x16xf32>
    "tpu.trace_stop"() : () -> ()
    %c0_82 = arith.constant 0 : index
    %c0_83 = arith.constant 0 : index
    %c0_84 = arith.constant 0 : index
    %151 = vector.load %arg2[%c0_82, %c0_83, %c0_84] : memref<4x16x16xf32, #tpu.memory_space<vmem>>, vector<1x16x16xf32>
    %152 = vector.shape_cast %151 : vector<1x16x16xf32> to vector<16x16xf32>
    %153 = arith.addf %150, %152 : vector<16x16xf32>
    %cst_85 = arith.constant dense<0xFF800000> : vector<16xf32>
    %154 = vector.multi_reduction <maximumf>, %153, %cst_85 [1] : vector<16x16xf32> to vector<16xf32>
    %155 = vector.shape_cast %154 : vector<16xf32> to vector<16x1xf32>
    %156 = vector.broadcast %155 : vector<16x1xf32> to vector<16x16xf32>
    %157 = arith.subf %153, %156 : vector<16x16xf32>
    %158 = math.exp %157 : vector<16x16xf32>
    %cst_86 = arith.constant dense<0.000000e+00> : vector<16xf32>
    %159 = vector.multi_reduction <add>, %158, %cst_86 [1] : vector<16x16xf32> to vector<16xf32>
    %160 = vector.shape_cast %159 : vector<16xf32> to vector<16x1xf32>
    %161 = vector.broadcast %160 : vector<16x1xf32> to vector<16x16xf32>
    %162 = arith.divf %158, %161 : vector<16x16xf32>
    %c1_87 = arith.constant 1 : index
    %c0_88 = arith.constant 0 : index
    %c0_89 = arith.constant 0 : index
    %163 = vector.load %arg11[%c1_87, %c0_88, %c0_89] : memref<2x16x64xf32, #tpu.memory_space<vmem>>, vector<1x16x16xf32>
    %164 = vector.shape_cast %163 : vector<1x16x16xf32> to vector<16x16xf32>
    %165 = vector.shape_cast %162 : vector<16x16xf32> to vector<1x16x16xf32>
    tpu.vector_store %arg11[%c1_87, %c0_88, %c0_89], %165 {strides = array<i32>} : memref<2x16x64xf32, #tpu.memory_space<vmem>>, vector<1x16x16xf32>,
    %cst_90 = arith.constant dense<0.000000e+00> : vector<16x8xf32>
    %166 = tpu.matmul %162, %149, %cst_90 {dimension_numbers = #tpu.dot_dimension_numbers<[1], [0], [0], [1], [0, 0, 1, 1], [], []>} : vector<16x16xf32>, vector<16x8xf32>, vector<16x8xf32> -> vector<16x8xf32>
    %c0_91 = arith.constant 0 : index
    %c0_92 = arith.constant 0 : index
    %167 = vector.load %arg12[%c0_91, %c0_92] : memref<16x32xf32, #tpu.memory_space<vmem>>, vector<16x8xf32>
    tpu.vector_store %arg12[%c0_91, %c0_92], %166 {strides = array<i32>} : memref<16x32xf32, #tpu.memory_space<vmem>>, vector<16x8xf32>,
    %168 = vector.extract_strided_slice %146 {offsets = [0, 8], sizes = [16, 8], strides = [1, 1]} : vector<16x96xf32> to vector<16x8xf32>
    %169 = vector.extract_strided_slice %146 {offsets = [0, 40], sizes = [16, 8], strides = [1, 1]} : vector<16x96xf32> to vector<16x8xf32>
    %170 = vector.extract_strided_slice %146 {offsets = [0, 72], sizes = [16, 8], strides = [1, 1]} : vector<16x96xf32> to vector<16x8xf32>
    "tpu.trace_start"() <{level = 10 : i32, message = "qc,mc->qm"}> : () -> ()
    %cst_93 = arith.constant dense<0.000000e+00> : vector<16x16xf32>
    %171 = tpu.matmul %168, %169, %cst_93 {dimension_numbers = #tpu.dot_dimension_numbers<[1], [1], [0], [0], [0, 0, 1, 0], [], []>} : vector<16x8xf32>, vector<16x8xf32>, vector<16x16xf32> -> vector<16x16xf32>
    "tpu.trace_stop"() : () -> ()
    %c1_94 = arith.constant 1 : index
    %c0_95 = arith.constant 0 : index
    %c0_96 = arith.constant 0 : index
    %172 = vector.load %arg2[%c1_94, %c0_95, %c0_96] : memref<4x16x16xf32, #tpu.memory_space<vmem>>, vector<1x16x16xf32>
    %173 = vector.shape_cast %172 : vector<1x16x16xf32> to vector<16x16xf32>
    %174 = arith.addf %171, %173 : vector<16x16xf32>
    %cst_97 = arith.constant dense<0xFF800000> : vector<16xf32>
    %175 = vector.multi_reduction <maximumf>, %174, %cst_97 [1] : vector<16x16xf32> to vector<16xf32>
    %176 = vector.shape_cast %175 : vector<16xf32> to vector<16x1xf32>
    %177 = vector.broadcast %176 : vector<16x1xf32> to vector<16x16xf32>
    %178 = arith.subf %174, %177 : vector<16x16xf32>
    %179 = math.exp %178 : vector<16x16xf32>
    %cst_98 = arith.constant dense<0.000000e+00> : vector<16xf32>
    %180 = vector.multi_reduction <add>, %179, %cst_98 [1] : vector<16x16xf32> to vector<16xf32>
    %181 = vector.shape_cast %180 : vector<16xf32> to vector<16x1xf32>
    %182 = vector.broadcast %181 : vector<16x1xf32> to vector<16x16xf32>
    %183 = arith.divf %179, %182 : vector<16x16xf32>
    %c1_99 = arith.constant 1 : index
    %c0_100 = arith.constant 0 : index
    %c16_101 = arith.constant 16 : index
    %184 = vector.load %arg11[%c1_99, %c0_100, %c16_101] : memref<2x16x64xf32, #tpu.memory_space<vmem>>, vector<1x16x16xf32>
    %185 = vector.shape_cast %184 : vector<1x16x16xf32> to vector<16x16xf32>
    %186 = vector.shape_cast %183 : vector<16x16xf32> to vector<1x16x16xf32>
    tpu.vector_store %arg11[%c1_99, %c0_100, %c16_101], %186 {strides = array<i32>} : memref<2x16x64xf32, #tpu.memory_space<vmem>>, vector<1x16x16xf32>,
    %cst_102 = arith.constant dense<0.000000e+00> : vector<16x8xf32>
    %187 = tpu.matmul %183, %170, %cst_102 {dimension_numbers = #tpu.dot_dimension_numbers<[1], [0], [0], [1], [0, 0, 1, 1], [], []>} : vector<16x16xf32>, vector<16x8xf32>, vector<16x8xf32> -> vector<16x8xf32>
    %c0_103 = arith.constant 0 : index
    %c8_104 = arith.constant 8 : index
    %188 = vector.load %arg12[%c0_103, %c8_104] : memref<16x32xf32, #tpu.memory_space<vmem>>, vector<16x8xf32>
    tpu.vector_store %arg12[%c0_103, %c8_104], %187 {strides = array<i32>} : memref<16x32xf32, #tpu.memory_space<vmem>>, vector<16x8xf32>,
    %189 = vector.extract_strided_slice %146 {offsets = [0, 16], sizes = [16, 8], strides = [1, 1]} : vector<16x96xf32> to vector<16x8xf32>
    %190 = vector.extract_strided_slice %146 {offsets = [0, 48], sizes = [16, 8], strides = [1, 1]} : vector<16x96xf32> to vector<16x8xf32>
    %191 = vector.extract_strided_slice %146 {offsets = [0, 80], sizes = [16, 8], strides = [1, 1]} : vector<16x96xf32> to vector<16x8xf32>
    "tpu.trace_start"() <{level = 10 : i32, message = "qc,mc->qm"}> : () -> ()
    %cst_105 = arith.constant dense<0.000000e+00> : vector<16x16xf32>
    %192 = tpu.matmul %189, %190, %cst_105 {dimension_numbers = #tpu.dot_dimension_numbers<[1], [1], [0], [0], [0, 0, 1, 0], [], []>} : vector<16x8xf32>, vector<16x8xf32>, vector<16x16xf32> -> vector<16x16xf32>
    "tpu.trace_stop"() : () -> ()
    %c2_106 = arith.constant 2 : index
    %c0_107 = arith.constant 0 : index
    %c0_108 = arith.constant 0 : index
    %193 = vector.load %arg2[%c2_106, %c0_107, %c0_108] : memref<4x16x16xf32, #tpu.memory_space<vmem>>, vector<1x16x16xf32>
    %194 = vector.shape_cast %193 : vector<1x16x16xf32> to vector<16x16xf32>
    %195 = arith.addf %192, %194 : vector<16x16xf32>
    %cst_109 = arith.constant dense<0xFF800000> : vector<16xf32>
    %196 = vector.multi_reduction <maximumf>, %195, %cst_109 [1] : vector<16x16xf32> to vector<16xf32>
    %197 = vector.shape_cast %196 : vector<16xf32> to vector<16x1xf32>
    %198 = vector.broadcast %197 : vector<16x1xf32> to vector<16x16xf32>
    %199 = arith.subf %195, %198 : vector<16x16xf32>
    %200 = math.exp %199 : vector<16x16xf32>
    %cst_110 = arith.constant dense<0.000000e+00> : vector<16xf32>
    %201 = vector.multi_reduction <add>, %200, %cst_110 [1] : vector<16x16xf32> to vector<16xf32>
    %202 = vector.shape_cast %201 : vector<16xf32> to vector<16x1xf32>
    %203 = vector.broadcast %202 : vector<16x1xf32> to vector<16x16xf32>
    %204 = arith.divf %200, %203 : vector<16x16xf32>
    %c1_111 = arith.constant 1 : index
    %c0_112 = arith.constant 0 : index
    %c32_113 = arith.constant 32 : index
    %205 = vector.load %arg11[%c1_111, %c0_112, %c32_113] : memref<2x16x64xf32, #tpu.memory_space<vmem>>, vector<1x16x16xf32>
    %206 = vector.shape_cast %205 : vector<1x16x16xf32> to vector<16x16xf32>
    %207 = vector.shape_cast %204 : vector<16x16xf32> to vector<1x16x16xf32>
    tpu.vector_store %arg11[%c1_111, %c0_112, %c32_113], %207 {strides = array<i32>} : memref<2x16x64xf32, #tpu.memory_space<vmem>>, vector<1x16x16xf32>,
    %cst_114 = arith.constant dense<0.000000e+00> : vector<16x8xf32>
    %208 = tpu.matmul %204, %191, %cst_114 {dimension_numbers = #tpu.dot_dimension_numbers<[1], [0], [0], [1], [0, 0, 1, 1], [], []>} : vector<16x16xf32>, vector<16x8xf32>, vector<16x8xf32> -> vector<16x8xf32>
    %c0_115 = arith.constant 0 : index
    %c16_116 = arith.constant 16 : index
    %209 = vector.load %arg12[%c0_115, %c16_116] : memref<16x32xf32, #tpu.memory_space<vmem>>, vector<16x8xf32>
    tpu.vector_store %arg12[%c0_115, %c16_116], %208 {strides = array<i32>} : memref<16x32xf32, #tpu.memory_space<vmem>>, vector<16x8xf32>,
    %210 = vector.extract_strided_slice %146 {offsets = [0, 24], sizes = [16, 8], strides = [1, 1]} : vector<16x96xf32> to vector<16x8xf32>
    %211 = vector.extract_strided_slice %146 {offsets = [0, 56], sizes = [16, 8], strides = [1, 1]} : vector<16x96xf32> to vector<16x8xf32>
    %212 = vector.extract_strided_slice %146 {offsets = [0, 88], sizes = [16, 8], strides = [1, 1]} : vector<16x96xf32> to vector<16x8xf32>
    "tpu.trace_start"() <{level = 10 : i32, message = "qc,mc->qm"}> : () -> ()
    %cst_117 = arith.constant dense<0.000000e+00> : vector<16x16xf32>
    %213 = tpu.matmul %210, %211, %cst_117 {dimension_numbers = #tpu.dot_dimension_numbers<[1], [1], [0], [0], [0, 0, 1, 0], [], []>} : vector<16x8xf32>, vector<16x8xf32>, vector<16x16xf32> -> vector<16x16xf32>
    "tpu.trace_stop"() : () -> ()
    %c3_118 = arith.constant 3 : index
    %c0_119 = arith.constant 0 : index
    %c0_120 = arith.constant 0 : index
    %214 = vector.load %arg2[%c3_118, %c0_119, %c0_120] : memref<4x16x16xf32, #tpu.memory_space<vmem>>, vector<1x16x16xf32>
    %215 = vector.shape_cast %214 : vector<1x16x16xf32> to vector<16x16xf32>
    %216 = arith.addf %213, %215 : vector<16x16xf32>
    %cst_121 = arith.constant dense<0xFF800000> : vector<16xf32>
    %217 = vector.multi_reduction <maximumf>, %216, %cst_121 [1] : vector<16x16xf32> to vector<16xf32>
    %218 = vector.shape_cast %217 : vector<16xf32> to vector<16x1xf32>
    %219 = vector.broadcast %218 : vector<16x1xf32> to vector<16x16xf32>
    %220 = arith.subf %216, %219 : vector<16x16xf32>
    %221 = math.exp %220 : vector<16x16xf32>
    %cst_122 = arith.constant dense<0.000000e+00> : vector<16xf32>
    %222 = vector.multi_reduction <add>, %221, %cst_122 [1] : vector<16x16xf32> to vector<16xf32>
    %223 = vector.shape_cast %222 : vector<16xf32> to vector<16x1xf32>
    %224 = vector.broadcast %223 : vector<16x1xf32> to vector<16x16xf32>
    %225 = arith.divf %221, %224 : vector<16x16xf32>
    %c1_123 = arith.constant 1 : index
    %c0_124 = arith.constant 0 : index
    %c48_125 = arith.constant 48 : index
    %226 = vector.load %arg11[%c1_123, %c0_124, %c48_125] : memref<2x16x64xf32, #tpu.memory_space<vmem>>, vector<1x16x16xf32>
    %227 = vector.shape_cast %226 : vector<1x16x16xf32> to vector<16x16xf32>
    %228 = vector.shape_cast %225 : vector<16x16xf32> to vector<1x16x16xf32>
    tpu.vector_store %arg11[%c1_123, %c0_124, %c48_125], %228 {strides = array<i32>} : memref<2x16x64xf32, #tpu.memory_space<vmem>>, vector<1x16x16xf32>,
    %cst_126 = arith.constant dense<0.000000e+00> : vector<16x8xf32>
    %229 = tpu.matmul %225, %212, %cst_126 {dimension_numbers = #tpu.dot_dimension_numbers<[1], [0], [0], [1], [0, 0, 1, 1], [], []>} : vector<16x16xf32>, vector<16x8xf32>, vector<16x8xf32> -> vector<16x8xf32>
    %c0_127 = arith.constant 0 : index
    %c24_128 = arith.constant 24 : index
    %230 = vector.load %arg12[%c0_127, %c24_128] : memref<16x32xf32, #tpu.memory_space<vmem>>, vector<16x8xf32>
    tpu.vector_store %arg12[%c0_127, %c24_128], %229 {strides = array<i32>} : memref<16x32xf32, #tpu.memory_space<vmem>>, vector<16x8xf32>,
    %c0_129 = arith.constant 0 : index
    %c0_130 = arith.constant 0 : index
    %231 = vector.load %arg12[%c0_129, %c0_130] : memref<16x32xf32, #tpu.memory_space<vmem>>, vector<16x32xf32>
    %c1_131 = arith.constant 1 : index
    %c0_132 = arith.constant 0 : index
    %c0_133 = arith.constant 0 : index
    %232 = vector.load %arg5[%c1_131, %c0_132, %c0_133] : memref<2x32x32xf32, #tpu.memory_space<vmem>>, vector<1x32x32xf32>
    %233 = vector.shape_cast %232 : vector<1x32x32xf32> to vector<32x32xf32>
    %cst_134 = arith.constant dense<0.000000e+00> : vector<16x32xf32>
    %234 = tpu.matmul %231, %233, %cst_134 {dimension_numbers = #tpu.dot_dimension_numbers<[1], [0], [0], [1], [0, 0, 1, 1], [], []>} : vector<16x32xf32>, vector<32x32xf32>, vector<16x32xf32> -> vector<16x32xf32>
    %235 = arith.addf %129, %234 : vector<16x32xf32>
    %c1_135 = arith.constant 1 : index
    %c0_136 = arith.constant 0 : index
    %c0_137 = arith.constant 0 : index
    %236 = vector.load %arg6[%c1_135, %c0_136, %c0_137] : memref<2x1x32xf32, #tpu.memory_space<vmem>>, vector<1x1x32xf32>
    %237 = vector.shape_cast %236 : vector<1x1x32xf32> to vector<1x32xf32>
    %238 = arith.mulf %235, %235 : vector<16x32xf32>
    %cst_138 = arith.constant dense<0.000000e+00> : vector<16xf32>
    %239 = vector.multi_reduction <add>, %238, %cst_138 [1] : vector<16x32xf32> to vector<16xf32>
    %240 = vector.shape_cast %239 : vector<16xf32> to vector<16x1xf32>
    %cst_139 = arith.constant 3.200000e+01 : f32
    %241 = vector.broadcast %cst_139 : f32 to vector<16x1xf32>
    %242 = arith.divf %240, %241 : vector<16x1xf32>
    %cst_140 = arith.constant 9.99999997E-7 : f32
    %243 = vector.broadcast %cst_140 : f32 to vector<16x1xf32>
    %244 = arith.addf %242, %243 : vector<16x1xf32>
    %245 = math.rsqrt %244 : vector<16x1xf32>
    %246 = vector.broadcast %245 : vector<16x1xf32> to vector<16x32xf32>
    %247 = arith.mulf %235, %246 : vector<16x32xf32>
    %248 = vector.broadcast %237 : vector<1x32xf32> to vector<16x32xf32>
    %249 = arith.mulf %247, %248 : vector<16x32xf32>
    %c1_141 = arith.constant 1 : index
    %c0_142 = arith.constant 0 : index
    %c0_143 = arith.constant 0 : index
    %250 = vector.load %arg7[%c1_141, %c0_142, %c0_143] : memref<2x32x64xf32, #tpu.memory_space<vmem>>, vector<1x32x64xf32>
    %251 = vector.shape_cast %250 : vector<1x32x64xf32> to vector<32x64xf32>
    %cst_144 = arith.constant dense<0.000000e+00> : vector<16x64xf32>
    %252 = tpu.matmul %249, %251, %cst_144 {dimension_numbers = #tpu.dot_dimension_numbers<[1], [0], [0], [1], [0, 0, 1, 1], [], []>} : vector<16x32xf32>, vector<32x64xf32>, vector<16x64xf32> -> vector<16x64xf32>
    %cst_145 = arith.constant 0.000000e+00 : f32
    %253 = vector.broadcast %cst_145 : f32 to vector<16x64xf32>
    %254 = arith.maximumf %252, %253 : vector<16x64xf32>
    %c1_146 = arith.constant 1 : index
    %c0_147 = arith.constant 0 : index
    %c0_148 = arith.constant 0 : index
    %255 = vector.load %arg8[%c1_146, %c0_147, %c0_148] : memref<2x64x32xf32, #tpu.memory_space<vmem>>, vector<1x64x32xf32>
    %256 = vector.shape_cast %255 : vector<1x64x32xf32> to vector<64x32xf32>
    %cst_149 = arith.constant dense<0.000000e+00> : vector<16x32xf32>
    %257 = tpu.matmul %254, %256, %cst_149 {dimension_numbers = #tpu.dot_dimension_numbers<[1], [0], [0], [1], [0, 0, 1, 1], [], []>} : vector<16x64xf32>, vector<64x32xf32>, vector<16x32xf32> -> vector<16x32xf32>
    %258 = arith.addf %235, %257 : vector<16x32xf32>
    %c0_150 = arith.constant 0 : index
    %c0_151 = arith.constant 0 : index
    %259 = vector.load %arg9[%c0_150, %c0_151] : memref<1x32xf32, #tpu.memory_space<vmem>>, vector<1x32xf32>
    %260 = arith.mulf %258, %258 : vector<16x32xf32>
    %cst_152 = arith.constant dense<0.000000e+00> : vector<16xf32>
    %261 = vector.multi_reduction <add>, %260, %cst_152 [1] : vector<16x32xf32> to vector<16xf32>
    %262 = vector.shape_cast %261 : vector<16xf32> to vector<16x1xf32>
    %cst_153 = arith.constant 3.200000e+01 : f32
    %263 = vector.broadcast %cst_153 : f32 to vector<16x1xf32>
    %264 = arith.divf %262, %263 : vector<16x1xf32>
    %cst_154 = arith.constant 9.99999997E-7 : f32
    %265 = vector.broadcast %cst_154 : f32 to vector<16x1xf32>
    %266 = arith.addf %264, %265 : vector<16x1xf32>
    %267 = math.rsqrt %266 : vector<16x1xf32>
    %268 = vector.broadcast %267 : vector<16x1xf32> to vector<16x32xf32>
    %269 = arith.mulf %258, %268 : vector<16x32xf32>
    %270 = vector.broadcast %259 : vector<1x32xf32> to vector<16x32xf32>
    %271 = arith.mulf %269, %270 : vector<16x32xf32>
    %c0_155 = arith.constant 0 : index
    %c0_156 = arith.constant 0 : index
    %272 = vector.load %arg10[%c0_155, %c0_156] : memref<16x32xf32, #tpu.memory_space<vmem>>, vector<16x32xf32>
    tpu.vector_store %arg10[%c0_155, %c0_156], %271 {strides = array<i32>} : memref<16x32xf32, #tpu.memory_space<vmem>>, vector<16x32xf32>,
    return
  }
  func.func @transform_0(%arg0: i32) -> (i32, i32) {
    %c0_i32 = arith.constant 0 : i32
    %c0_i32_0 = arith.constant 0 : i32
    %c0_i32_1 = arith.constant 0 : i32
    return %c0_i32, %c0_i32_0 : i32, i32
  }
  func.func @transform_1(%arg0: i32) -> (i32, i32, i32) {
    %c0_i32 = arith.constant 0 : i32
    %c0_i32_0 = arith.constant 0 : i32
    %c0_i32_1 = arith.constant 0 : i32
    %c0_i32_2 = arith.constant 0 : i32
    return %c0_i32, %c0_i32_0, %c0_i32_1 : i32, i32, i32
  }
  func.func @transform_2(%arg0: i32) -> (i32, i32, i32) {
    %c0_i32 = arith.constant 0 : i32
    %c0_i32_0 = arith.constant 0 : i32
    %c0_i32_1 = arith.constant 0 : i32
    %c0_i32_2 = arith.constant 0 : i32
    return %c0_i32, %c0_i32_0, %c0_i32_1 : i32, i32, i32
  }
  func.func @transform_3(%arg0: i32) -> (i32, i32, i32) {
    %c0_i32 = arith.constant 0 : i32
    %c0_i32_0 = arith.constant 0 : i32
    %c0_i32_1 = arith.constant 0 : i32
    %c0_i32_2 = arith.constant 0 : i32
    return %c0_i32, %c0_i32_0, %c0_i32_1 : i32, i32, i32
  }
  func.func @transform_4(%arg0: i32) -> (i32, i32, i32) {
    %c0_i32 = arith.constant 0 : i32
    %c0_i32_0 = arith.constant 0 : i32
    %c0_i32_1 = arith.constant 0 : i32
    %c0_i32_2 = arith.constant 0 : i32
    return %c0_i32, %c0_i32_0, %c0_i32_1 : i32, i32, i32
  }
  func.func @transform_5(%arg0: i32) -> (i32, i32, i32) {
    %c0_i32 = arith.constant 0 : i32
    %c0_i32_0 = arith.constant 0 : i32
    %c0_i32_1 = arith.constant 0 : i32
    %c0_i32_2 = arith.constant 0 : i32
    return %c0_i32, %c0_i32_0, %c0_i32_1 : i32, i32, i32
  }
  func.func @transform_6(%arg0: i32) -> (i32, i32, i32) {
    %c0_i32 = arith.constant 0 : i32
    %c0_i32_0 = arith.constant 0 : i32
    %c0_i32_1 = arith.constant 0 : i32
    %c0_i32_2 = arith.constant 0 : i32
    return %c0_i32, %c0_i32_0, %c0_i32_1 : i32, i32, i32
  }
  func.func @transform_7(%arg0: i32) -> (i32, i32, i32) {
    %c0_i32 = arith.constant 0 : i32
    %c0_i32_0 = arith.constant 0 : i32
    %c0_i32_1 = arith.constant 0 : i32
    %c0_i32_2 = arith.constant 0 : i32
    return %c0_i32, %c0_i32_0, %c0_i32_1 : i32, i32, i32
  }
  func.func @transform_8(%arg0: i32) -> (i32, i32) {
    %c0_i32 = arith.constant 0 : i32
    %c0_i32_0 = arith.constant 0 : i32
    %c0_i32_1 = arith.constant 0 : i32
    return %c0_i32, %c0_i32_0 : i32, i32
  }
  func.func @transform_9(%arg0: i32) -> (i32, i32) {
    %c0_i32 = arith.constant 0 : i32
    %c0_i32_0 = arith.constant 0 : i32
    %c0_i32_1 = arith.constant 0 : i32
    return %c0_i32, %c0_i32_0 : i32, i32
  }
  func.func @transform_10(%arg0: i32) -> (i32, i32, i32) {
    %c0_i32 = arith.constant 0 : i32
    %c0_i32_0 = arith.constant 0 : i32
    %c0_i32_1 = arith.constant 0 : i32
    %c0_i32_2 = arith.constant 0 : i32
    return %c0_i32, %c0_i32_0, %c0_i32_1 : i32, i32, i32
  }
}

</mosaic_0001>

<llo_original>
// kernel: tpu_custom_call.1
$region0: #{tpu_custom_call.1}
  #allocation0 [shape = 'u32[]', space=smem, size = 0x4, offset = 0x4, fixed_abs, tag = 'smem constant byte address 0x4 - core index']
  #allocation1 [shape = 'u32[144,128]{1,0:T(1,128)}', space=vmem, size = 0x12000, scoped, tag = 'internal scratch']
  #allocation2 [shape = 'f32[16,32]{1,0:T(8,128)}', space=vmem, size = 0x2000, scoped, tag = 'scratch operand']
  %s0 = inlined_call_operand.hbm [shape: f32[16,32], index: 0, kind: input, shape index: {}]
  %s1 = inlined_call_operand.vmem [shape: f32[4,16,16], index: 1, kind: input, shape index: {}]
  %s2 = inlined_call_operand.vmem [shape: f32[2,1,32], index: 2, kind: input, shape index: {}]
  %s3 = inlined_call_operand.vmem [shape: f32[2,32,96], index: 3, kind: input, shape index: {}]
  %s4 = inlined_call_operand.vmem [shape: f32[2,32,32], index: 4, kind: input, shape index: {}]
  %s5 = inlined_call_operand.vmem [shape: f32[2,1,32], index: 5, kind: input, shape index: {}]
  %s6 = inlined_call_operand.hbm [shape: f32[2,32,64], index: 6, kind: input, shape index: {}]
  %s7 = inlined_call_operand.vmem [shape: f32[2,64,32], index: 7, kind: input, shape index: {}]
  %s8 = inlined_call_operand.vmem [shape: f32[1,32], index: 8, kind: input, shape index: {}]
  %s9 = inlined_call_operand.hbm [shape: f32[16,32], index: 9, kind: output, shape index: {0}]
  %s10 = inlined_call_operand.hbm [shape: f32[2,16,64], index: 10, kind: output, shape index: {1}]
  %11 = xla_tuple %s9, %s10
  %s12 = sld [smem:[#allocation0]]
  $region62: #{tpu_custom_call.1} parent=0
    _
  %s14 = ssub.s32 1, %s12
  %s15 = scalar_select 0, %s14, %s12
  $region1: #{tpu_custom_call.1} parent=0
    #allocation3 [shape = 'u8[8192]{0}', space=vmem, size = 0x2000, scoped, tag = 'input window, operand 0, single buffered']
    #allocation4 [shape = 's32[1]{0}', space=sflag, size = 0x4, scoped, tag = 'scoped memory for tpu_custom_call.1']
    #allocation5 [shape = 's32[1]{0}', space=sflag, size = 0x4, scoped, tag = 'scoped memory for tpu_custom_call.1']
    #allocation6 [shape = 'u8[32768]{0}', space=vmem, size = 0x8000, scoped, tag = 'input window, operand 6, single buffered']
    #allocation7 [shape = 's32[1]{0}', space=sflag, size = 0x4, scoped, tag = 'scoped memory for tpu_custom_call.1']
    #allocation8 [shape = 'u8[8192]{0}', space=vmem, size = 0x2000, scoped, tag = 'output window, operand 0, single buffered']
    #allocation9 [shape = 'u8[16384]{0}', space=vmem, size = 0x4000, scoped, tag = 'output window, operand 1, single buffered']
    #allocation10 [shape = 's32[1]{0}', space=sflag, size = 0x4, scoped, tag = 'scoped memory for tpu_custom_call.1']
    %16 = vsyncpa [#allocation4], 0
    %17 = vsyncpa [#allocation7], 0
    %18 = vsyncpa [#allocation5], 0
    %19 = vsyncpa [#allocation10], 0
    // Predicated region
    $region2: #{tpu_custom_call.1} parent=1 // pred_check
      _
    $region3: #{tpu_custom_call.1} parent=1 // pred_check_branch
      %21 = sbr.rel (0) target = $region5
    $region4: #{tpu_custom_call.1} parent=1 // pred_region
      %s23 = ssub.s32 256, 256
      %24 = vsyncadd [#allocation4], %s23
      %s25 = sshll.u32 [#allocation3], 4
      %s26 = int_to_ptr.vmem [resolvable:$true] %s25
      %31 = dma.hbm_to_vmem [thread:$0]  %s0, 256, %s26, [#allocation4], 128, 128, 8
    $region5: #{tpu_custom_call.1} parent=1 // pred_fallthru
      _
    // Predicated region
    $region6: #{tpu_custom_call.1} parent=1 // pred_check
      _
    $region7: #{tpu_custom_call.1} parent=1 // pred_check_branch
      %33 = sbr.rel (0) target = $region9
    $region8: #{tpu_custom_call.1} parent=1 // pred_region
      _
    $region9: #{tpu_custom_call.1} parent=1 // pred_fallthru
      _
    // Predicated region
    $region10: #{tpu_custom_call.1} parent=1 // pred_check
      _
    $region11: #{tpu_custom_call.1} parent=1 // pred_check_branch
      %35 = sbr.rel (0) target = $region13
    $region12: #{tpu_custom_call.1} parent=1 // pred_region
      _
    $region13: #{tpu_custom_call.1} parent=1 // pred_fallthru
      _
    // Predicated region
    $region14: #{tpu_custom_call.1} parent=1 // pred_check
      _
    $region15: #{tpu_custom_call.1} parent=1 // pred_check_branch
      %37 = sbr.rel (0) target = $region17
    $region16: #{tpu_custom_call.1} parent=1 // pred_region
      _
    $region17: #{tpu_custom_call.1} parent=1 // pred_fallthru
      _
    // Predicated region
    $region18: #{tpu_custom_call.1} parent=1 // pred_check
      _
    $region19: #{tpu_custom_call.1} parent=1 // pred_check_branch
      %39 = sbr.rel (0) target = $region21
    $region20: #{tpu_custom_call.1} parent=1 // pred_region
      _
    $region21: #{tpu_custom_call.1} parent=1 // pred_fallthru
      _
    // Predicated region
    $region22: #{tpu_custom_call.1} parent=1 // pred_check
      _
    $region23: #{tpu_custom_call.1} parent=1 // pred_check_branch
      %41 = sbr.rel (0) target = $region25
    $region24: #{tpu_custom_call.1} parent=1 // pred_region
      _
    $region25: #{tpu_custom_call.1} parent=1 // pred_fallthru
      _
    // Predicated region
    $region26: #{tpu_custom_call.1} parent=1 // pred_check
      _
    $region27: #{tpu_custom_call.1} parent=1 // pred_check_branch
      %43 = sbr.rel (0) target = $region29
    $region28: #{tpu_custom_call.1} parent=1 // pred_region
      %s45 = ssub.s32 1024, 1024
      %46 = vsyncadd [#allocation7], %s45
      %s47 = sshll.u32 [#allocation6], 4
      %s48 = int_to_ptr.vmem [resolvable:$true] %s47
      %53 = dma.hbm_to_vmem [thread:$0]  %s6, 1024, %s48, [#allocation7], 128, 128, 8
    $region29: #{tpu_custom_call.1} parent=1 // pred_fallthru
      _
    // Predicated region
    $region30: #{tpu_custom_call.1} parent=1 // pred_check
      _
    $region31: #{tpu_custom_call.1} parent=1 // pred_check_branch
      %55 = sbr.rel (0) target = $region33
    $region32: #{tpu_custom_call.1} parent=1 // pred_region
      _
    $region33: #{tpu_custom_call.1} parent=1 // pred_fallthru
      _
    // Predicated region
    $region34: #{tpu_custom_call.1} parent=1 // pred_check
      _
    $region35: #{tpu_custom_call.1} parent=1 // pred_check_branch
      %57 = sbr.rel (0) target = $region37
    $region36: #{tpu_custom_call.1} parent=1 // pred_region
      _
    $region37: #{tpu_custom_call.1} parent=1 // pred_fallthru
      _
    // Predicated region
    $region38: #{tpu_custom_call.1} parent=1 // pred_check
      _
    $region39: #{tpu_custom_call.1} parent=1 // pred_check_branch
      %59 = sbr.rel (0) target = $region41
    $region40: #{tpu_custom_call.1} parent=1 // pred_region
      %60 = dma.done [#allocation4], 256
    $region41: #{tpu_custom_call.1} parent=1 // pred_fallthru
      _
    // Predicated region
    $region42: #{tpu_custom_call.1} parent=1 // pred_check
      _
    $region43: #{tpu_custom_call.1} parent=1 // pred_check_branch
      %62 = sbr.rel (0) target = $region45
    $region44: #{tpu_custom_call.1} parent=1 // pred_region
      %63 = dma.done [#allocation7], 1024
    $region45: #{tpu_custom_call.1} parent=1 // pred_fallthru
      _
    %v64 = vld [vmem:[#allocation3] sm:$0xff]
    %v65 = vld [vmem:[#allocation3 + $0x8] sm:$0xff]
    %v66 = vld [vmem:[%s2] sm:$0x1]
    %v67 = vmul.f32 %v64, %v64
    %v68 = vmul.f32 %v65, %v65
    %vm69 = vcmask 261120
    %v70 = vsel %vm69, %v67, 0.0
    %71 = vadd.xlane.f32.xlu0 %v70
    %v72 = vpop.xlane.xlu0 %71
    %v73 = vsel %vm69, %v68, 0.0
    %74 = vadd.xlane.f32.xlu0 %v73
    %v75 = vpop.xlane.xlu0 %74
    %v76 = vrcp.pop 32.0
    %v77 = vmul.f32 %v72, %v76
    %v78 = vmul.f32 %v75, %v76
    %v79 = vadd.f32 %v77, 1e-06
    %v80 = vadd.f32 %v78, 1e-06
    %v81 = vrsqrt.pop %v79
    %v82 = vrsqrt.pop %v80
    %v83 = vmul.f32 %v64, %v81
    %v84 = vmul.f32 %v65, %v82
    %v86 = vlaneseq
    %v87 = vshrl.u32 %v86, 7
    %v88 = vsub.s32 0, %v87
    %v89 = vrot.slane %v66, %v88
    %v91 = vmul.f32 %v83, %v89
    %v92 = vmul.f32 %v84, %v89
    %v93 = vld [vmem:[%s3] sm:$0xff]
    %v94 = vld [vmem:[%s3 + $0x8] sm:$0xff]
    %v95 = vld [vmem:[%s3 + $0x10] sm:$0xff]
    %v96 = vld [vmem:[%s3 + $0x18] sm:$0xff]
    %v98 = vsel %vm69, %v91, 0
    %v101 = vsel %vm69, %v92, 0
    %103 = vmatprep.subr.mxu0 0.0
    %104 = vmatpush1.msra.mxu0 %v93
    %105 = vmatprep.subr.mxu0 0.0
    %106 = vmatpush1.msra.mxu0 %v94
    %107 = vmatprep.subr.mxu0 0.0
    %108 = vmatpush1.msra.mxu0 %v95
    %109 = vmatprep.subr.mxu0 0.0
    %110 = vmatpush1.msra.mxu0 %v96
    %111 = vmatprep.subr.mxu0 0.0
    %112 = vmatpush1.msra.mxu0 0.0
    %113 = vmatprep.subr.mxu0 0.0
    %114 = vmatpush1.msra.mxu0 0.0
    %115 = vmatprep.subr.mxu0 0.0
    %116 = vmatpush1.msra.mxu0 0.0
    %117 = vmatprep.subr.mxu0 0.0
    %118 = vmatpush1.msra.mxu0 0.0
    %119 = vmatprep.subr.mxu0 0.0
    %120 = vmatpush1.msra.mxu0 0.0
    %121 = vmatprep.subr.mxu0 0.0
    %122 = vmatpush1.msra.mxu0 0.0
    %123 = vmatprep.subr.mxu0 0.0
    %124 = vmatpush1.msra.mxu0 0.0
    %125 = vmatprep.subr.mxu0 0.0
    %126 = vmatpush1.msra.mxu0 0.0
    %127 = vmatprep.subr.mxu0 0.0
    %128 = vmatpush1.msra.mxu0 0.0
    %129 = vmatprep.subr.mxu0 0.0
    %130 = vmatpush1.msra.mxu0 0.0
    %131 = vmatprep.subr.mxu0 0.0
    %132 = vmatpush1.msra.mxu0 0.0
    %133 = vmatprep.subr.mxu0 0.0
    %134 = vmatpush1.msra.mxu0 0.0
    %135 = vmatprep.subr.mxu0 0.0
    %136 = vmatpush1.msra.mxu0 0.0
    %137 = vmatprep.subr.mxu0 0.0
    %138 = vmatpush1.msra.mxu0 0.0
    %139 = vmatprep.subr.mxu0 0.0
    %140 = vmatpush1.msra.mxu0 0.0
    %141 = vmatprep.subr.mxu0 0.0
    %142 = vmatpush1.msra.mxu0 0.0
    %143 = vmatprep.subr.mxu0 0.0
    %144 = vmatpush1.msra.mxu0 0.0
    %145 = vmatprep.subr.mxu0 0.0
    %146 = vmatpush1.msra.mxu0 0.0
    %147 = vmatprep.subr.mxu0 0.0
    %148 = vmatpush1.msra.mxu0 0.0
    %149 = vmatprep.subr.mxu0 0.0
    %150 = vmatpush1.msra.mxu0 0.0
    %151 = vmatprep.subr.mxu0 0.0
    %152 = vmatpush1.msra.mxu0 0.0
    %153 = vmatprep.subr.mxu0 0.0
    %154 = vmatpush1.msra.mxu0 0.0
    %155 = vmatprep.subr.mxu0 0.0
    %156 = vmatpush1.msra.mxu0 0.0
    %157 = vmatprep.subr.mxu0 0.0
    %158 = vmatpush1.msra.mxu0 0.0
    %159 = vmatprep.subr.mxu0 0.0
    %160 = vmatpush1.msra.mxu0 0.0
    %161 = vmatprep.subr.mxu0 0.0
    %162 = vmatpush1.msra.mxu0 0.0
    %163 = vmatprep.subr.mxu0 0.0
    %164 = vmatpush1.msra.mxu0 0.0
    %165 = vmatprep.subr.mxu0 0.0
    %166 = vmatpush1.msra.mxu0 0.0
    %167 = vmatprep.mubr.f32.mxu0 0.0
    %168 = vmatmul.mubr.f32.gmra.mrb[0].mxu0 %v98
    %v169 = vpop.f32.mrb[0].mxu0
    %v170 = vadd.f32 0.0, %v169
    %v171 = vpop.f32.mrb[0].mxu0
    %172 = vmatprep.mubr.f32.mxu0 0.0
    %173 = vmatmul.mubr.f32.gmra.mrb[0].mxu0 %v101
    %v174 = vpop.f32.mrb[0].mxu0
    %v175 = vadd.f32 0.0, %v174
    %v176 = vpop.f32.mrb[0].mxu0
    %177 = vdwg.mxu0
    %v178 = vld [vmem:[%s1] sm:$0xff]
    %v179 = vld [vmem:[%s1 + $0x8] sm:$0xff]
    %182 = vrot.lane.b32.xlu0 %v170, 96
    %v183 = vpop.permute.xlu0 %182
    %184 = vrot.lane.b32.xlu0 %v175, 96
    %v185 = vpop.permute.xlu0 %184
    %vm186 = vcmask 64512
    %v187 = vsel %vm186, %v170, 0
    %v189 = vsel %vm186, %v175, 0
    %v191 = vsel %vm186, %v183, 0
    %v193 = vsel %vm186, %v185, 0
    %195 = vmatprep.subr.mxu0 0.0
    %196 = vmatpush1.xpose.msra.mxu0 %v191
    %197 = vmatprep.subr.mxu0 0.0
    %198 = vmatpush1.xpose.msra.mxu0 %v193
    %199 = vmatprep.subr.mxu0 0.0
    %200 = vmatpush1.xpose.msra.mxu0 0.0
    %201 = vmatprep.subr.mxu0 0.0
    %202 = vmatpush1.xpose.msra.mxu0 0.0
    %203 = vmatprep.subr.mxu0 0.0
    %204 = vmatpush1.xpose.msra.mxu0 0.0
    %205 = vmatprep.subr.mxu0 0.0
    %206 = vmatpush1.xpose.msra.mxu0 0.0
    %207 = vmatprep.subr.mxu0 0.0
    %208 = vmatpush1.xpose.msra.mxu0 0.0
    %209 = vmatprep.subr.mxu0 0.0
    %210 = vmatpush1.xpose.msra.mxu0 0.0
    %211 = vmatprep.subr.mxu0 0.0
    %212 = vmatpush1.xpose.msra.mxu0 0.0
    %213 = vmatprep.subr.mxu0 0.0
    %214 = vmatpush1.xpose.msra.mxu0 0.0
    %215 = vmatprep.subr.mxu0 0.0
    %216 = vmatpush1.xpose.msra.mxu0 0.0
    %217 = vmatprep.subr.mxu0 0.0
    %218 = vmatpush1.xpose.msra.mxu0 0.0
    %219 = vmatprep.subr.mxu0 0.0
    %220 = vmatpush1.xpose.msra.mxu0 0.0
    %221 = vmatprep.subr.mxu0 0.0
    %222 = vmatpush1.xpose.msra.mxu0 0.0
    %223 = vmatprep.subr.mxu0 0.0
    %224 = vmatpush1.xpose.msra.mxu0 0.0
    %225 = vmatprep.subr.mxu0 0.0
    %226 = vmatpush1.xpose.msra.mxu0 0.0
    %227 = vmatprep.subr.mxu0 0.0
    %228 = vmatpush1.xpose.msra.mxu0 0.0
    %229 = vmatprep.subr.mxu0 0.0
    %230 = vmatpush1.xpose.msra.mxu0 0.0
    %231 = vmatprep.subr.mxu0 0.0
    %232 = vmatpush1.xpose.msra.mxu0 0.0
    %233 = vmatprep.subr.mxu0 0.0
    %234 = vmatpush1.xpose.msra.mxu0 0.0
    %235 = vmatprep.subr.mxu0 0.0
    %236 = vmatpush1.xpose.msra.mxu0 0.0
    %237 = vmatprep.subr.mxu0 0.0
    %238 = vmatpush1.xpose.msra.mxu0 0.0
    %239 = vmatprep.subr.mxu0 0.0
    %240 = vmatpush1.xpose.msra.mxu0 0.0
    %241 = vmatprep.subr.mxu0 0.0
    %242 = vmatpush1.xpose.msra.mxu0 0.0
    %243 = vmatprep.subr.mxu0 0.0
    %244 = vmatpush1.xpose.msra.mxu0 0.0
    %245 = vmatprep.subr.mxu0 0.0
    %246 = vmatpush1.xpose.msra.mxu0 0.0
    %247 = vmatprep.subr.mxu0 0.0
    %248 = vmatpush1.xpose.msra.mxu0 0.0
    %249 = vmatprep.subr.mxu0 0.0
    %250 = vmatpush1.xpose.msra.mxu0 0.0
    %251 = vmatprep.subr.mxu0 0.0
    %252 = vmatpush1.xpose.msra.mxu0 0.0
    %253 = vmatprep.subr.mxu0 0.0
    %254 = vmatpush1.xpose.msra.mxu0 0.0
    %255 = vmatprep.subr.mxu0 0.0
    %256 = vmatpush1.xpose.msra.mxu0 0.0
    %257 = vmatprep.subr.mxu0 0.0
    %258 = vmatpush1.xpose.msra.mxu0 0.0
    %259 = vmatprep.mubr.f32.mxu0 0.0
    %260 = vmatmul.mubr.f32.gmra.mrb[0].mxu0 %v187
    %v261 = vpop.f32.mrb[0].mxu0
    %v262 = vadd.f32 %v178, %v261
    %v263 = vpop.f32.mrb[0].mxu0
    %264 = vmatprep.mubr.f32.mxu0 0.0
    %265 = vmatmul.mubr.f32.gmra.mrb[0].mxu0 %v189
    %v266 = vpop.f32.mrb[0].mxu0
    %v267 = vadd.f32 %v179, %v266
    %v268 = vpop.f32.mrb[0].mxu0
    %269 = vdwg.mxu0
    %vm270 = vcmask 130048
    %v271 = vsel %vm270, %v262, -inf
    %272 = vmax.xlane.f32.xlu0 %v271
    %v273 = vpop.xlane.xlu0 %272
    %v274 = vsel %vm270, %v267, -inf
    %275 = vmax.xlane.f32.xlu0 %v274
    %v276 = vpop.xlane.xlu0 %275
    %v277 = vsub.f32 %v262, %v273
    %v278 = vsub.f32 %v267, %v276
    %v279 = vmul.f32 %v277, 1.442695
    %v280 = vpow.pop %v279
    %v281 = vmul.f32 %v278, 1.442695
    %v282 = vpow.pop %v281
    %v283 = vsel %vm270, %v280, 0.0
    %284 = vadd.xlane.f32.xlu0 %v283
    %v285 = vpop.xlane.xlu0 %284
    %v286 = vsel %vm270, %v282, 0.0
    %287 = vadd.xlane.f32.xlu0 %v286
    %v288 = vpop.xlane.xlu0 %287
    %v289 = vrcp.pop %v285
    %v290 = vmul.f32 %v280, %v289
    %v291 = vrcp.pop %v288
    %v292 = vmul.f32 %v282, %v291
    %293 = vst.msk [vmem:[#allocation9] sm:$0xff] %vm270, %v290
    %294 = vst.msk [vmem:[#allocation9 + $0x8] sm:$0xff] %vm270, %v292
    %295 = vrot.lane.b32.xlu0 %v170, 64
    %v296 = vpop.permute.xlu0 %295
    %297 = vrot.lane.b32.xlu0 %v175, 64
    %v298 = vpop.permute.xlu0 %297
    %v302 = vsel %vm270, %v290, 0
    %v305 = vsel %vm270, %v292, 0
    %307 = vmatprep.subr.mxu0 0.0
    %308 = vmatpush1.msra.mxu0 %v296
    %309 = vmatprep.subr.mxu0 0.0
    %310 = vmatpush1.msra.mxu0 %v298
    %311 = vmatprep.subr.mxu0 0.0
    %312 = vmatpush1.msra.mxu0 0.0
    %313 = vmatprep.subr.mxu0 0.0
    %314 = vmatpush1.msra.mxu0 0.0
    %315 = vmatprep.subr.mxu0 0.0
    %316 = vmatpush1.msra.mxu0 0.0
    %317 = vmatprep.subr.mxu0 0.0
    %318 = vmatpush1.msra.mxu0 0.0
    %319 = vmatprep.subr.mxu0 0.0
    %320 = vmatpush1.msra.mxu0 0.0
    %321 = vmatprep.subr.mxu0 0.0
    %322 = vmatpush1.msra.mxu0 0.0
    %323 = vmatprep.subr.mxu0 0.0
    %324 = vmatpush1.msra.mxu0 0.0
    %325 = vmatprep.subr.mxu0 0.0
    %326 = vmatpush1.msra.mxu0 0.0
    %327 = vmatprep.subr.mxu0 0.0
    %328 = vmatpush1.msra.mxu0 0.0
    %329 = vmatprep.subr.mxu0 0.0
    %330 = vmatpush1.msra.mxu0 0.0
    %331 = vmatprep.subr.mxu0 0.0
    %332 = vmatpush1.msra.mxu0 0.0
    %333 = vmatprep.subr.mxu0 0.0
    %334 = vmatpush1.msra.mxu0 0.0
    %335 = vmatprep.subr.mxu0 0.0
    %336 = vmatpush1.msra.mxu0 0.0
    %337 = vmatprep.subr.mxu0 0.0
    %338 = vmatpush1.msra.mxu0 0.0
    %339 = vmatprep.subr.mxu0 0.0
    %340 = vmatpush1.msra.mxu0 0.0
    %341 = vmatprep.subr.mxu0 0.0
    %342 = vmatpush1.msra.mxu0 0.0
    %343 = vmatprep.subr.mxu0 0.0
    %344 = vmatpush1.msra.mxu0 0.0
    %345 = vmatprep.subr.mxu0 0.0
    %346 = vmatpush1.msra.mxu0 0.0
    %347 = vmatprep.subr.mxu0 0.0
    %348 = vmatpush1.msra.mxu0 0.0
    %349 = vmatprep.subr.mxu0 0.0
    %350 = vmatpush1.msra.mxu0 0.0
    %351 = vmatprep.subr.mxu0 0.0
    %352 = vmatpush1.msra.mxu0 0.0
    %353 = vmatprep.subr.mxu0 0.0
    %354 = vmatpush1.msra.mxu0 0.0
    %355 = vmatprep.subr.mxu0 0.0
    %356 = vmatpush1.msra.mxu0 0.0
    %357 = vmatprep.subr.mxu0 0.0
    %358 = vmatpush1.msra.mxu0 0.0
    %359 = vmatprep.subr.mxu0 0.0
    %360 = vmatpush1.msra.mxu0 0.0
    %361 = vmatprep.subr.mxu0 0.0
    %362 = vmatpush1.msra.mxu0 0.0
    %363 = vmatprep.subr.mxu0 0.0
    %364 = vmatpush1.msra.mxu0 0.0
    %365 = vmatprep.subr.mxu0 0.0
    %366 = vmatpush1.msra.mxu0 0.0
    %367 = vmatprep.subr.mxu0 0.0
    %368 = vmatpush1.msra.mxu0 0.0
    %369 = vmatprep.subr.mxu0 0.0
    %370 = vmatpush1.msra.mxu0 0.0
    %371 = vmatprep.mubr.f32.mxu0 0.0
    %372 = vmatmul.mubr.f32.gmra.mrb[0].mxu0 %v302
    %v373 = vpop.f32.mrb[0].mxu0
    %v374 = vadd.f32 0.0, %v373
    %v375 = vpop.f32.mrb[0].mxu0
    %376 = vmatprep.mubr.f32.mxu0 0.0
    %377 = vmatmul.mubr.f32.gmra.mrb[0].mxu0 %v305
    %v378 = vpop.f32.mrb[0].mxu0
    %v379 = vadd.f32 0.0, %v378
    %v380 = vpop.f32.mrb[0].mxu0
    %381 = vdwg.mxu0
    %382 = vst.msk [vmem:[#allocation2] sm:$0xff] %vm186, %v374
    %383 = vst.msk [vmem:[#allocation2 + $0x8] sm:$0xff] %vm186, %v379
    %s384 = scalar_lea.vmem %s1, 16
    %v385 = vld [vmem:[%s384] sm:$0xff]
    %v386 = vld [vmem:[%s384 + $0x8] sm:$0xff]
    %387 = vrot.lane.b32.xlu0 %v170, 120
    %v388 = vpop.permute.xlu0 %387
    %389 = vrot.lane.b32.xlu0 %v175, 120
    %v390 = vpop.permute.xlu0 %389
    %391 = vrot.lane.b32.xlu0 %v170, 88
    %v392 = vpop.permute.xlu0 %391
    %393 = vrot.lane.b32.xlu0 %v175, 88
    %v394 = vpop.permute.xlu0 %393
    %v395 = vsel %vm186, %v388, 0
    %v397 = vsel %vm186, %v390, 0
    %v399 = vsel %vm186, %v392, 0
    %v401 = vsel %vm186, %v394, 0
    %403 = vmatprep.subr.mxu0 0.0
    %404 = vmatpush1.xpose.msra.mxu0 %v399
    %405 = vmatprep.subr.mxu0 0.0
    %406 = vmatpush1.xpose.msra.mxu0 %v401
    %407 = vmatprep.subr.mxu0 0.0
    %408 = vmatpush1.xpose.msra.mxu0 0.0
    %409 = vmatprep.subr.mxu0 0.0
    %410 = vmatpush1.xpose.msra.mxu0 0.0
    %411 = vmatprep.subr.mxu0 0.0
    %412 = vmatpush1.xpose.msra.mxu0 0.0
    %413 = vmatprep.subr.mxu0 0.0
    %414 = vmatpush1.xpose.msra.mxu0 0.0
    %415 = vmatprep.subr.mxu0 0.0
    %416 = vmatpush1.xpose.msra.mxu0 0.0
    %417 = vmatprep.subr.mxu0 0.0
    %418 = vmatpush1.xpose.msra.mxu0 0.0
    %419 = vmatprep.subr.mxu0 0.0
    %420 = vmatpush1.xpose.msra.mxu0 0.0
    %421 = vmatprep.subr.mxu0 0.0
    %422 = vmatpush1.xpose.msra.mxu0 0.0
    %423 = vmatprep.subr.mxu0 0.0
    %424 = vmatpush1.xpose.msra.mxu0 0.0
    %425 = vmatprep.subr.mxu0 0.0
    %426 = vmatpush1.xpose.msra.mxu0 0.0
    %427 = vmatprep.subr.mxu0 0.0
    %428 = vmatpush1.xpose.msra.mxu0 0.0
    %429 = vmatprep.subr.mxu0 0.0
    %430 = vmatpush1.xpose.msra.mxu0 0.0
    %431 = vmatprep.subr.mxu0 0.0
    %432 = vmatpush1.xpose.msra.mxu0 0.0
    %433 = vmatprep.subr.mxu0 0.0
    %434 = vmatpush1.xpose.msra.mxu0 0.0
    %435 = vmatprep.subr.mxu0 0.0
    %436 = vmatpush1.xpose.msra.mxu0 0.0
    %437 = vmatprep.subr.mxu0 0.0
    %438 = vmatpush1.xpose.msra.mxu0 0.0
    %439 = vmatprep.subr.mxu0 0.0
    %440 = vmatpush1.xpose.msra.mxu0 0.0
    %441 = vmatprep.subr.mxu0 0.0
    %442 = vmatpush1.xpose.msra.mxu0 0.0
    %443 = vmatprep.subr.mxu0 0.0
    %444 = vmatpush1.xpose.msra.mxu0 0.0
    %445 = vmatprep.subr.mxu0 0.0
    %446 = vmatpush1.xpose.msra.mxu0 0.0
    %447 = vmatprep.subr.mxu0 0.0
    %448 = vmatpush1.xpose.msra.mxu0 0.0
    %449 = vmatprep.subr.mxu0 0.0
    %450 = vmatpush1.xpose.msra.mxu0 0.0
    %451 = vmatprep.subr.mxu0 0.0
    %452 = vmatpush1.xpose.msra.mxu0 0.0
    %453 = vmatprep.subr.mxu0 0.0
    %454 = vmatpush1.xpose.msra.mxu0 0.0
    %455 = vmatprep.subr.mxu0 0.0
    %456 = vmatpush1.xpose.msra.mxu0 0.0
    %457 = vmatprep.subr.mxu0 0.0
    %458 = vmatpush1.xpose.msra.mxu0 0.0
    %459 = vmatprep.subr.mxu0 0.0
    %460 = vmatpush1.xpose.msra.mxu0 0.0
    %461 = vmatprep.subr.mxu0 0.0
    %462 = vmatpush1.xpose.msra.mxu0 0.0
    %463 = vmatprep.subr.mxu0 0.0
    %464 = vmatpush1.xpose.msra.mxu0 0.0
    %465 = vmatprep.subr.mxu0 0.0
    %466 = vmatpush1.xpose.msra.mxu0 0.0
    %467 = vmatprep.mubr.f32.mxu0 0.0
    %468 = vmatmul.mubr.f32.gmra.mrb[0].mxu0 %v395
    %v469 = vpop.f32.mrb[0].mxu0
    %v470 = vadd.f32 %v385, %v469
    %v471 = vpop.f32.mrb[0].mxu0
    %472 = vmatprep.mubr.f32.mxu0 0.0
    %473 = vmatmul.mubr.f32.gmra.mrb[0].mxu0 %v397
    %v474 = vpop.f32.mrb[0].mxu0
    %v475 = vadd.f32 %v386, %v474
    %v476 = vpop.f32.mrb[0].mxu0
    %477 = vdwg.mxu0
    %v478 = vsel %vm270, %v470, -inf
    %479 = vmax.xlane.f32.xlu0 %v478
    %v480 = vpop.xlane.xlu0 %479
    %v481 = vsel %vm270, %v475, -inf
    %482 = vmax.xlane.f32.xlu0 %v481
    %v483 = vpop.xlane.xlu0 %482
    %v484 = vsub.f32 %v470, %v480
    %v485 = vsub.f32 %v475, %v483
    %v486 = vmul.f32 %v484, 1.442695
    %v487 = vpow.pop %v486
    %v488 = vmul.f32 %v485, 1.442695
    %v489 = vpow.pop %v488
    %v490 = vsel %vm270, %v487, 0.0
    %491 = vadd.xlane.f32.xlu0 %v490
    %v492 = vpop.xlane.xlu0 %491
    %v493 = vsel %vm270, %v489, 0.0
    %494 = vadd.xlane.f32.xlu0 %v493
    %v495 = vpop.xlane.xlu0 %494
    %v496 = vrcp.pop %v492
    %v497 = vmul.f32 %v487, %v496
    %v498 = vrcp.pop %v495
    %v499 = vmul.f32 %v489, %v498
    %502 = vrot.lane.b32.xlu0 %v497, 16
    %v503 = vpop.permute.xlu0 %502
    %504 = vrot.lane.b32.xlu0 %v499, 16
    %v505 = vpop.permute.xlu0 %504
    %vm508 = vcmask 261248
    %509 = vst.msk [vmem:[#allocation9] sm:$0xff] %vm508, %v503
    %510 = vst.msk [vmem:[#allocation9 + $0x8] sm:$0xff] %vm508, %v505
    %511 = vrot.lane.b32.xlu0 %v170, 56
    %v512 = vpop.permute.xlu0 %511
    %513 = vrot.lane.b32.xlu0 %v175, 56
    %v514 = vpop.permute.xlu0 %513
    %v517 = vsel %vm270, %v497, 0
    %v519 = vsel %vm270, %v499, 0
    %521 = vmatprep.subr.mxu0 0.0
    %522 = vmatpush1.msra.mxu0 %v512
    %523 = vmatprep.subr.mxu0 0.0
    %524 = vmatpush1.msra.mxu0 %v514
    %525 = vmatprep.subr.mxu0 0.0
    %526 = vmatpush1.msra.mxu0 0.0
    %527 = vmatprep.subr.mxu0 0.0
    %528 = vmatpush1.msra.mxu0 0.0
    %529 = vmatprep.subr.mxu0 0.0
    %530 = vmatpush1.msra.mxu0 0.0
    %531 = vmatprep.subr.mxu0 0.0
    %532 = vmatpush1.msra.mxu0 0.0
    %533 = vmatprep.subr.mxu0 0.0
    %534 = vmatpush1.msra.mxu0 0.0
    %535 = vmatprep.subr.mxu0 0.0
    %536 = vmatpush1.msra.mxu0 0.0
    %537 = vmatprep.subr.mxu0 0.0
    %538 = vmatpush1.msra.mxu0 0.0
    %539 = vmatprep.subr.mxu0 0.0
    %540 = vmatpush1.msra.mxu0 0.0
    %541 = vmatprep.subr.mxu0 0.0
    %542 = vmatpush1.msra.mxu0 0.0
    %543 = vmatprep.subr.mxu0 0.0
    %544 = vmatpush1.msra.mxu0 0.0
    %545 = vmatprep.subr.mxu0 0.0
    %546 = vmatpush1.msra.mxu0 0.0
    %547 = vmatprep.subr.mxu0 0.0
    %548 = vmatpush1.msra.mxu0 0.0
    %549 = vmatprep.subr.mxu0 0.0
    %550 = vmatpush1.msra.mxu0 0.0
    %551 = vmatprep.subr.mxu0 0.0
    %552 = vmatpush1.msra.mxu0 0.0
    %553 = vmatprep.subr.mxu0 0.0
    %554 = vmatpush1.msra.mxu0 0.0
    %555 = vmatprep.subr.mxu0 0.0
    %556 = vmatpush1.msra.mxu0 0.0
    %557 = vmatprep.subr.mxu0 0.0
    %558 = vmatpush1.msra.mxu0 0.0
    %559 = vmatprep.subr.mxu0 0.0
    %560 = vmatpush1.msra.mxu0 0.0
    %561 = vmatprep.subr.mxu0 0.0
    %562 = vmatpush1.msra.mxu0 0.0
    %563 = vmatprep.subr.mxu0 0.0
    %564 = vmatpush1.msra.mxu0 0.0
    %565 = vmatprep.subr.mxu0 0.0
    %566 = vmatpush1.msra.mxu0 0.0
    %567 = vmatprep.subr.mxu0 0.0
    %568 = vmatpush1.msra.mxu0 0.0
    %569 = vmatprep.subr.mxu0 0.0
    %570 = vmatpush1.msra.mxu0 0.0
    %571 = vmatprep.subr.mxu0 0.0
    %572 = vmatpush1.msra.mxu0 0.0
    %573 = vmatprep.subr.mxu0 0.0
    %574 = vmatpush1.msra.mxu0 0.0
    %575 = vmatprep.subr.mxu0 0.0
    %576 = vmatpush1.msra.mxu0 0.0
    %577 = vmatprep.subr.mxu0 0.0
    %578 = vmatpush1.msra.mxu0 0.0
    %579 = vmatprep.subr.mxu0 0.0
    %580 = vmatpush1.msra.mxu0 0.0
    %581 = vmatprep.subr.mxu0 0.0
    %582 = vmatpush1.msra.mxu0 0.0
    %583 = vmatprep.subr.mxu0 0.0
    %584 = vmatpush1.msra.mxu0 0.0
    %585 = vmatprep.mubr.f32.mxu0 0.0
    %586 = vmatmul.mubr.f32.gmra.mrb[0].mxu0 %v517
    %v587 = vpop.f32.mrb[0].mxu0
    %v588 = vadd.f32 0.0, %v587
    %v589 = vpop.f32.mrb[0].mxu0
    %590 = vmatprep.mubr.f32.mxu0 0.0
    %591 = vmatmul.mubr.f32.gmra.mrb[0].mxu0 %v519
    %v592 = vpop.f32.mrb[0].mxu0
    %v593 = vadd.f32 0.0, %v592
    %v594 = vpop.f32.mrb[0].mxu0
    %595 = vdwg.mxu0
    %598 = vrot.lane.b32.xlu0 %v588, 8
    %v599 = vpop.permute.xlu0 %598
    %600 = vrot.lane.b32.xlu0 %v593, 8
    %v601 = vpop.permute.xlu0 %600
    %vm604 = vcmask 130112
    %605 = vst.msk [vmem:[#allocation2] sm:$0xff] %vm604, %v599
    %606 = vst.msk [vmem:[#allocation2 + $0x8] sm:$0xff] %vm604, %v601
    %s607 = scalar_lea.vmem %s1, 32
    %v608 = vld [vmem:[%s607] sm:$0xff]
    %v609 = vld [vmem:[%s607 + $0x8] sm:$0xff]
    %610 = vrot.lane.b32.xlu0 %v170, 112
    %v611 = vpop.permute.xlu0 %610
    %612 = vrot.lane.b32.xlu0 %v175, 112
    %v613 = vpop.permute.xlu0 %612
    %614 = vrot.lane.b32.xlu0 %v170, 80
    %v615 = vpop.permute.xlu0 %614
    %616 = vrot.lane.b32.xlu0 %v175, 80
    %v617 = vpop.permute.xlu0 %616
    %v618 = vsel %vm186, %v611, 0
    %v620 = vsel %vm186, %v613, 0
    %v622 = vsel %vm186, %v615, 0
    %v624 = vsel %vm186, %v617, 0
    %626 = vmatprep.subr.mxu0 0.0
    %627 = vmatpush1.xpose.msra.mxu0 %v622
    %628 = vmatprep.subr.mxu0 0.0
    %629 = vmatpush1.xpose.msra.mxu0 %v624
    %630 = vmatprep.subr.mxu0 0.0
    %631 = vmatpush1.xpose.msra.mxu0 0.0
    %632 = vmatprep.subr.mxu0 0.0
    %633 = vmatpush1.xpose.msra.mxu0 0.0
    %634 = vmatprep.subr.mxu0 0.0
    %635 = vmatpush1.xpose.msra.mxu0 0.0
    %636 = vmatprep.subr.mxu0 0.0
    %637 = vmatpush1.xpose.msra.mxu0 0.0
    %638 = vmatprep.subr.mxu0 0.0
    %639 = vmatpush1.xpose.msra.mxu0 0.0
    %640 = vmatprep.subr.mxu0 0.0
    %641 = vmatpush1.xpose.msra.mxu0 0.0
    %642 = vmatprep.subr.mxu0 0.0
    %643 = vmatpush1.xpose.msra.mxu0 0.0
    %644 = vmatprep.subr.mxu0 0.0
    %645 = vmatpush1.xpose.msra.mxu0 0.0
    %646 = vmatprep.subr.mxu0 0.0
    %647 = vmatpush1.xpose.msra.mxu0 0.0
    %648 = vmatprep.subr.mxu0 0.0
    %649 = vmatpush1.xpose.msra.mxu0 0.0
    %650 = vmatprep.subr.mxu0 0.0
    %651 = vmatpush1.xpose.msra.mxu0 0.0
    %652 = vmatprep.subr.mxu0 0.0
    %653 = vmatpush1.xpose.msra.mxu0 0.0
    %654 = vmatprep.subr.mxu0 0.0
    %655 = vmatpush1.xpose.msra.mxu0 0.0
    %656 = vmatprep.subr.mxu0 0.0
    %657 = vmatpush1.xpose.msra.mxu0 0.0
    %658 = vmatprep.subr.mxu0 0.0
    %659 = vmatpush1.xpose.msra.mxu0 0.0
    %660 = vmatprep.subr.mxu0 0.0
    %661 = vmatpush1.xpose.msra.mxu0 0.0
    %662 = vmatprep.subr.mxu0 0.0
    %663 = vmatpush1.xpose.msra.mxu0 0.0
    %664 = vmatprep.subr.mxu0 0.0
    %665 = vmatpush1.xpose.msra.mxu0 0.0
    %666 = vmatprep.subr.mxu0 0.0
    %667 = vmatpush1.xpose.msra.mxu0 0.0
    %668 = vmatprep.subr.mxu0 0.0
    %669 = vmatpush1.xpose.msra.mxu0 0.0
    %670 = vmatprep.subr.mxu0 0.0
    %671 = vmatpush1.xpose.msra.mxu0 0.0
    %672 = vmatprep.subr.mxu0 0.0
    %673 = vmatpush1.xpose.msra.mxu0 0.0
    %674 = vmatprep.subr.mxu0 0.0
    %675 = vmatpush1.xpose.msra.mxu0 0.0
    %676 = vmatprep.subr.mxu0 0.0
    %677 = vmatpush1.xpose.msra.mxu0 0.0
    %678 = vmatprep.subr.mxu0 0.0
    %679 = vmatpush1.xpose.msra.mxu0 0.0
    %680 = vmatprep.subr.mxu0 0.0
    %681 = vmatpush1.xpose.msra.mxu0 0.0
    %682 = vmatprep.subr.mxu0 0.0
    %683 = vmatpush1.xpose.msra.mxu0 0.0
    %684 = vmatprep.subr.mxu0 0.0
    %685 = vmatpush1.xpose.msra.mxu0 0.0
    %686 = vmatprep.subr.mxu0 0.0
    %687 = vmatpush1.xpose.msra.mxu0 0.0
    %688 = vmatprep.subr.mxu0 0.0
    %689 = vmatpush1.xpose.msra.mxu0 0.0
    %690 = vmatprep.mubr.f32.mxu0 0.0
    %691 = vmatmul.mubr.f32.gmra.mrb[0].mxu0 %v618
    %v692 = vpop.f32.mrb[0].mxu0
    %v693 = vadd.f32 %v608, %v692
    %v694 = vpop.f32.mrb[0].mxu0
    %695 = vmatprep.mubr.f32.mxu0 0.0
    %696 = vmatmul.mubr.f32.gmra.mrb[0].mxu0 %v620
    %v697 = vpop.f32.mrb[0].mxu0
    %v698 = vadd.f32 %v609, %v697
    %v699 = vpop.f32.mrb[0].mxu0
    %700 = vdwg.mxu0
    %v701 = vsel %vm270, %v693, -inf
    %702 = vmax.xlane.f32.xlu0 %v701
    %v703 = vpop.xlane.xlu0 %702
    %v704 = vsel %vm270, %v698, -inf
    %705 = vmax.xlane.f32.xlu0 %v704
    %v706 = vpop.xlane.xlu0 %705
    %v707 = vsub.f32 %v693, %v703
    %v708 = vsub.f32 %v698, %v706
    %v709 = vmul.f32 %v707, 1.442695
    %v710 = vpow.pop %v709
    %v711 = vmul.f32 %v708, 1.442695
    %v712 = vpow.pop %v711
    %v713 = vsel %vm270, %v710, 0.0
    %714 = vadd.xlane.f32.xlu0 %v713
    %v715 = vpop.xlane.xlu0 %714
    %v716 = vsel %vm270, %v712, 0.0
    %717 = vadd.xlane.f32.xlu0 %v716
    %v718 = vpop.xlane.xlu0 %717
    %v719 = vrcp.pop %v715
    %v720 = vmul.f32 %v710, %v719
    %v721 = vrcp.pop %v718
    %v722 = vmul.f32 %v712, %v721
    %725 = vrot.lane.b32.xlu0 %v720, 32
    %v726 = vpop.permute.xlu0 %725
    %727 = vrot.lane.b32.xlu0 %v722, 32
    %v728 = vpop.permute.xlu0 %727
    %vm731 = vcmask 392448
    %732 = vst.msk [vmem:[#allocation9] sm:$0xff] %vm731, %v726
    %733 = vst.msk [vmem:[#allocation9 + $0x8] sm:$0xff] %vm731, %v728
    %734 = vrot.lane.b32.xlu0 %v170, 48
    %v735 = vpop.permute.xlu0 %734
    %736 = vrot.lane.b32.xlu0 %v175, 48
    %v737 = vpop.permute.xlu0 %736
    %v740 = vsel %vm270, %v720, 0
    %v742 = vsel %vm270, %v722, 0
    %744 = vmatprep.subr.mxu0 0.0
    %745 = vmatpush1.msra.mxu0 %v735
    %746 = vmatprep.subr.mxu0 0.0
    %747 = vmatpush1.msra.mxu0 %v737
    %748 = vmatprep.subr.mxu0 0.0
    %749 = vmatpush1.msra.mxu0 0.0
    %750 = vmatprep.subr.mxu0 0.0
    %751 = vmatpush1.msra.mxu0 0.0
    %752 = vmatprep.subr.mxu0 0.0
    %753 = vmatpush1.msra.mxu0 0.0
    %754 = vmatprep.subr.mxu0 0.0
    %755 = vmatpush1.msra.mxu0 0.0
    %756 = vmatprep.subr.mxu0 0.0
    %757 = vmatpush1.msra.mxu0 0.0
    %758 = vmatprep.subr.mxu0 0.0
    %759 = vmatpush1.msra.mxu0 0.0
    %760 = vmatprep.subr.mxu0 0.0
    %761 = vmatpush1.msra.mxu0 0.0
    %762 = vmatprep.subr.mxu0 0.0
    %763 = vmatpush1.msra.mxu0 0.0
    %764 = vmatprep.subr.mxu0 0.0
    %765 = vmatpush1.msra.mxu0 0.0
    %766 = vmatprep.subr.mxu0 0.0
    %767 = vmatpush1.msra.mxu0 0.0
    %768 = vmatprep.subr.mxu0 0.0
    %769 = vmatpush1.msra.mxu0 0.0
    %770 = vmatprep.subr.mxu0 0.0
    %771 = vmatpush1.msra.mxu0 0.0
    %772 = vmatprep.subr.mxu0 0.0
    %773 = vmatpush1.msra.mxu0 0.0
    %774 = vmatprep.subr.mxu0 0.0
    %775 = vmatpush1.msra.mxu0 0.0
    %776 = vmatprep.subr.mxu0 0.0
    %777 = vmatpush1.msra.mxu0 0.0
    %778 = vmatprep.subr.mxu0 0.0
    %779 = vmatpush1.msra.mxu0 0.0
    %780 = vmatprep.subr.mxu0 0.0
    %781 = vmatpush1.msra.mxu0 0.0
    %782 = vmatprep.subr.mxu0 0.0
    %783 = vmatpush1.msra.mxu0 0.0
    %784 = vmatprep.subr.mxu0 0.0
    %785 = vmatpush1.msra.mxu0 0.0
    %786 = vmatprep.subr.mxu0 0.0
    %787 = vmatpush1.msra.mxu0 0.0
    %788 = vmatprep.subr.mxu0 0.0
    %789 = vmatpush1.msra.mxu0 0.0
    %790 = vmatprep.subr.mxu0 0.0
    %791 = vmatpush1.msra.mxu0 0.0
    %792 = vmatprep.subr.mxu0 0.0
    %793 = vmatpush1.msra.mxu0 0.0
    %794 = vmatprep.subr.mxu0 0.0
    %795 = vmatpush1.msra.mxu0 0.0
    %796 = vmatprep.subr.mxu0 0.0
    %797 = vmatpush1.msra.mxu0 0.0
    %798 = vmatprep.subr.mxu0 0.0
    %799 = vmatpush1.msra.mxu0 0.0
    %800 = vmatprep.subr.mxu0 0.0
    %801 = vmatpush1.msra.mxu0 0.0
    %802 = vmatprep.subr.mxu0 0.0
    %803 = vmatpush1.msra.mxu0 0.0
    %804 = vmatprep.subr.mxu0 0.0
    %805 = vmatpush1.msra.mxu0 0.0
    %806 = vmatprep.subr.mxu0 0.0
    %807 = vmatpush1.msra.mxu0 0.0
    %808 = vmatprep.mubr.f32.mxu0 0.0
    %809 = vmatmul.mubr.f32.gmra.mrb[0].mxu0 %v740
    %v810 = vpop.f32.mrb[0].mxu0
    %v811 = vadd.f32 0.0, %v810
    %v812 = vpop.f32.mrb[0].mxu0
    %813 = vmatprep.mubr.f32.mxu0 0.0
    %814 = vmatmul.mubr.f32.gmra.mrb[0].mxu0 %v742
    %v815 = vpop.f32.mrb[0].mxu0
    %v816 = vadd.f32 0.0, %v815
    %v817 = vpop.f32.mrb[0].mxu0
    %818 = vdwg.mxu0
    %821 = vrot.lane.b32.xlu0 %v811, 16
    %v822 = vpop.permute.xlu0 %821
    %823 = vrot.lane.b32.xlu0 %v816, 16
    %v824 = vpop.permute.xlu0 %823
    %vm827 = vcmask 195712
    %828 = vst.msk [vmem:[#allocation2] sm:$0xff] %vm827, %v822
    %829 = vst.msk [vmem:[#allocation2 + $0x8] sm:$0xff] %vm827, %v824
    %s830 = scalar_lea.vmem %s1, 48
    %v831 = vld [vmem:[%s830] sm:$0xff]
    %v832 = vld [vmem:[%s830 + $0x8] sm:$0xff]
    %833 = vrot.lane.b32.xlu0 %v170, 104
    %v834 = vpop.permute.xlu0 %833
    %835 = vrot.lane.b32.xlu0 %v175, 104
    %v836 = vpop.permute.xlu0 %835
    %837 = vrot.lane.b32.xlu0 %v170, 72
    %v838 = vpop.permute.xlu0 %837
    %839 = vrot.lane.b32.xlu0 %v175, 72
    %v840 = vpop.permute.xlu0 %839
    %v841 = vsel %vm186, %v834, 0
    %v843 = vsel %vm186, %v836, 0
    %v845 = vsel %vm186, %v838, 0
    %v847 = vsel %vm186, %v840, 0
    %849 = vmatprep.subr.mxu0 0.0
    %850 = vmatpush1.xpose.msra.mxu0 %v845
    %851 = vmatprep.subr.mxu0 0.0
    %852 = vmatpush1.xpose.msra.mxu0 %v847
    %853 = vmatprep.subr.mxu0 0.0
    %854 = vmatpush1.xpose.msra.mxu0 0.0
    %855 = vmatprep.subr.mxu0 0.0
    %856 = vmatpush1.xpose.msra.mxu0 0.0
    %857 = vmatprep.subr.mxu0 0.0
    %858 = vmatpush1.xpose.msra.mxu0 0.0
    %859 = vmatprep.subr.mxu0 0.0
    %860 = vmatpush1.xpose.msra.mxu0 0.0
    %861 = vmatprep.subr.mxu0 0.0
    %862 = vmatpush1.xpose.msra.mxu0 0.0
    %863 = vmatprep.subr.mxu0 0.0
    %864 = vmatpush1.xpose.msra.mxu0 0.0
    %865 = vmatprep.subr.mxu0 0.0
    %866 = vmatpush1.xpose.msra.mxu0 0.0
    %867 = vmatprep.subr.mxu0 0.0
    %868 = vmatpush1.xpose.msra.mxu0 0.0
    %869 = vmatprep.subr.mxu0 0.0
    %870 = vmatpush1.xpose.msra.mxu0 0.0
    %871 = vmatprep.subr.mxu0 0.0
    %872 = vmatpush1.xpose.msra.mxu0 0.0
    %873 = vmatprep.subr.mxu0 0.0
    %874 = vmatpush1.xpose.msra.mxu0 0.0
    %875 = vmatprep.subr.mxu0 0.0
    %876 = vmatpush1.xpose.msra.mxu0 0.0
    %877 = vmatprep.subr.mxu0 0.0
    %878 = vmatpush1.xpose.msra.mxu0 0.0
    %879 = vmatprep.subr.mxu0 0.0
    %880 = vmatpush1.xpose.msra.mxu0 0.0
    %881 = vmatprep.subr.mxu0 0.0
    %882 = vmatpush1.xpose.msra.mxu0 0.0
    %883 = vmatprep.subr.mxu0 0.0
    %884 = vmatpush1.xpose.msra.mxu0 0.0
    %885 = vmatprep.subr.mxu0 0.0
    %886 = vmatpush1.xpose.msra.mxu0 0.0
    %887 = vmatprep.subr.mxu0 0.0
    %888 = vmatpush1.xpose.msra.mxu0 0.0
    %889 = vmatprep.subr.mxu0 0.0
    %890 = vmatpush1.xpose.msra.mxu0 0.0
    %891 = vmatprep.subr.mxu0 0.0
    %892 = vmatpush1.xpose.msra.mxu0 0.0
    %893 = vmatprep.subr.mxu0 0.0
    %894 = vmatpush1.xpose.msra.mxu0 0.0
    %895 = vmatprep.subr.mxu0 0.0
    %896 = vmatpush1.xpose.msra.mxu0 0.0
    %897 = vmatprep.subr.mxu0 0.0
    %898 = vmatpush1.xpose.msra.mxu0 0.0
    %899 = vmatprep.subr.mxu0 0.0
    %900 = vmatpush1.xpose.msra.mxu0 0.0
    %901 = vmatprep.subr.mxu0 0.0
    %902 = vmatpush1.xpose.msra.mxu0 0.0
    %903 = vmatprep.subr.mxu0 0.0
    %904 = vmatpush1.xpose.msra.mxu0 0.0
    %905 = vmatprep.subr.mxu0 0.0
    %906 = vmatpush1.xpose.msra.mxu0 0.0
    %907 = vmatprep.subr.mxu0 0.0
    %908 = vmatpush1.xpose.msra.mxu0 0.0
    %909 = vmatprep.subr.mxu0 0.0
    %910 = vmatpush1.xpose.msra.mxu0 0.0
    %911 = vmatprep.subr.mxu0 0.0
    %912 = vmatpush1.xpose.msra.mxu0 0.0
    %913 = vmatprep.mubr.f32.mxu0 0.0
    %914 = vmatmul.mubr.f32.gmra.mrb[0].mxu0 %v841
    %v915 = vpop.f32.mrb[0].mxu0
    %v916 = vadd.f32 %v831, %v915
    %v917 = vpop.f32.mrb[0].mxu0
    %918 = vmatprep.mubr.f32.mxu0 0.0
    %919 = vmatmul.mubr.f32.gmra.mrb[0].mxu0 %v843
    %v920 = vpop.f32.mrb[0].mxu0
    %v921 = vadd.f32 %v832, %v920
    %v922 = vpop.f32.mrb[0].mxu0
    %923 = vdwg.mxu0
    %v924 = vsel %vm270, %v916, -inf
    %925 = vmax.xlane.f32.xlu0 %v924
    %v926 = vpop.xlane.xlu0 %925
    %v927 = vsel %vm270, %v921, -inf
    %928 = vmax.xlane.f32.xlu0 %v927
    %v929 = vpop.xlane.xlu0 %928
    %v930 = vsub.f32 %v916, %v926
    %v931 = vsub.f32 %v921, %v929
    %v932 = vmul.f32 %v930, 1.442695
    %v933 = vpow.pop %v932
    %v934 = vmul.f32 %v931, 1.442695
    %v935 = vpow.pop %v934
    %v936 = vsel %vm270, %v933, 0.0
    %937 = vadd.xlane.f32.xlu0 %v936
    %v938 = vpop.xlane.xlu0 %937
    %v939 = vsel %vm270, %v935, 0.0
    %940 = vadd.xlane.f32.xlu0 %v939
    %v941 = vpop.xlane.xlu0 %940
    %v942 = vrcp.pop %v938
    %v943 = vmul.f32 %v933, %v942
    %v944 = vrcp.pop %v941
    %v945 = vmul.f32 %v935, %v944
    %948 = vrot.lane.b32.xlu0 %v943, 48
    %v949 = vpop.permute.xlu0 %948
    %950 = vrot.lane.b32.xlu0 %v945, 48
    %v951 = vpop.permute.xlu0 %950
    %vm954 = vcmask 523648
    %955 = vst.msk [vmem:[#allocation9] sm:$0xff] %vm954, %v949
    %956 = vst.msk [vmem:[#allocation9 + $0x8] sm:$0xff] %vm954, %v951
    %957 = vrot.lane.b32.xlu0 %v170, 40
    %v958 = vpop.permute.xlu0 %957
    %959 = vrot.lane.b32.xlu0 %v175, 40
    %v960 = vpop.permute.xlu0 %959
    %v963 = vsel %vm270, %v943, 0
    %v965 = vsel %vm270, %v945, 0
    %967 = vmatprep.subr.mxu0 0.0
    %968 = vmatpush1.msra.mxu0 %v958
    %969 = vmatprep.subr.mxu0 0.0
    %970 = vmatpush1.msra.mxu0 %v960
    %971 = vmatprep.subr.mxu0 0.0
    %972 = vmatpush1.msra.mxu0 0.0
    %973 = vmatprep.subr.mxu0 0.0
    %974 = vmatpush1.msra.mxu0 0.0
    %975 = vmatprep.subr.mxu0 0.0
    %976 = vmatpush1.msra.mxu0 0.0
    %977 = vmatprep.subr.mxu0 0.0
    %978 = vmatpush1.msra.mxu0 0.0
    %979 = vmatprep.subr.mxu0 0.0
    %980 = vmatpush1.msra.mxu0 0.0
    %981 = vmatprep.subr.mxu0 0.0
    %982 = vmatpush1.msra.mxu0 0.0
    %983 = vmatprep.subr.mxu0 0.0
    %984 = vmatpush1.msra.mxu0 0.0
    %985 = vmatprep.subr.mxu0 0.0
    %986 = vmatpush1.msra.mxu0 0.0
    %987 = vmatprep.subr.mxu0 0.0
    %988 = vmatpush1.msra.mxu0 0.0
    %989 = vmatprep.subr.mxu0 0.0
    %990 = vmatpush1.msra.mxu0 0.0
    %991 = vmatprep.subr.mxu0 0.0
    %992 = vmatpush1.msra.mxu0 0.0
    %993 = vmatprep.subr.mxu0 0.0
    %994 = vmatpush1.msra.mxu0 0.0
    %995 = vmatprep.subr.mxu0 0.0
    %996 = vmatpush1.msra.mxu0 0.0
    %997 = vmatprep.subr.mxu0 0.0
    %998 = vmatpush1.msra.mxu0 0.0
    %999 = vmatprep.subr.mxu0 0.0
    %1000 = vmatpush1.msra.mxu0 0.0
    %1001 = vmatprep.subr.mxu0 0.0
    %1002 = vmatpush1.msra.mxu0 0.0
    %1003 = vmatprep.subr.mxu0 0.0
    %1004 = vmatpush1.msra.mxu0 0.0
    %1005 = vmatprep.subr.mxu0 0.0
    %1006 = vmatpush1.msra.mxu0 0.0
    %1007 = vmatprep.subr.mxu0 0.0
    %1008 = vmatpush1.msra.mxu0 0.0
    %1009 = vmatprep.subr.mxu0 0.0
    %1010 = vmatpush1.msra.mxu0 0.0
    %1011 = vmatprep.subr.mxu0 0.0
    %1012 = vmatpush1.msra.mxu0 0.0
    %1013 = vmatprep.subr.mxu0 0.0
    %1014 = vmatpush1.msra.mxu0 0.0
    %1015 = vmatprep.subr.mxu0 0.0
    %1016 = vmatpush1.msra.mxu0 0.0
    %1017 = vmatprep.subr.mxu0 0.0
    %1018 = vmatpush1.msra.mxu0 0.0
    %1019 = vmatprep.subr.mxu0 0.0
    %1020 = vmatpush1.msra.mxu0 0.0
    %1021 = vmatprep.subr.mxu0 0.0
    %1022 = vmatpush1.msra.mxu0 0.0
    %1023 = vmatprep.subr.mxu0 0.0
    %1024 = vmatpush1.msra.mxu0 0.0
    %1025 = vmatprep.subr.mxu0 0.0
    %1026 = vmatpush1.msra.mxu0 0.0
    %1027 = vmatprep.subr.mxu0 0.0
    %1028 = vmatpush1.msra.mxu0 0.0
    %1029 = vmatprep.subr.mxu0 0.0
    %1030 = vmatpush1.msra.mxu0 0.0
    %1031 = vmatprep.mubr.f32.mxu0 0.0
    %1032 = vmatmul.mubr.f32.gmra.mrb[0].mxu0 %v963
    %v1033 = vpop.f32.mrb[0].mxu0
    %v1034 = vadd.f32 0.0, %v1033
    %v1035 = vpop.f32.mrb[0].mxu0
    %1036 = vmatprep.mubr.f32.mxu0 0.0
    %1037 = vmatmul.mubr.f32.gmra.mrb[0].mxu0 %v965
    %v1038 = vpop.f32.mrb[0].mxu0
    %v1039 = vadd.f32 0.0, %v1038
    %v1040 = vpop.f32.mrb[0].mxu0
    %1041 = vdwg.mxu0
    %1044 = vrot.lane.b32.xlu0 %v1034, 24
    %v1045 = vpop.permute.xlu0 %1044
    %1046 = vrot.lane.b32.xlu0 %v1039, 24
    %v1047 = vpop.permute.xlu0 %1046
    %vm1050 = vcmask 261312
    %1051 = vst.msk [vmem:[#allocation2] sm:$0xff] %vm1050, %v1045
    %1052 = vst.msk [vmem:[#allocation2 + $0x8] sm:$0xff] %vm1050, %v1047
    %v1053 = vld [vmem:[#allocation2] sm:$0xff]
    %v1054 = vld [vmem:[#allocation2 + $0x8] sm:$0xff]
    %v1055 = vld [vmem:[%s4] sm:$0xff]
    %v1056 = vld [vmem:[%s4 + $0x8] sm:$0xff]
    %v1057 = vld [vmem:[%s4 + $0x10] sm:$0xff]
    %v1058 = vld [vmem:[%s4 + $0x18] sm:$0xff]
    %v1060 = vsel %vm69, %v1053, 0
    %v1063 = vsel %vm69, %v1054, 0
    %1065 = vmatprep.subr.mxu0 0.0
    %1066 = vmatpush1.msra.mxu0 %v1055
    %1067 = vmatprep.subr.mxu0 0.0
    %1068 = vmatpush1.msra.mxu0 %v1056
    %1069 = vmatprep.subr.mxu0 0.0
    %1070 = vmatpush1.msra.mxu0 %v1057
    %1071 = vmatprep.subr.mxu0 0.0
    %1072 = vmatpush1.msra.mxu0 %v1058
    %1073 = vmatprep.subr.mxu0 0.0
    %1074 = vmatpush1.msra.mxu0 0.0
    %1075 = vmatprep.subr.mxu0 0.0
    %1076 = vmatpush1.msra.mxu0 0.0
    %1077 = vmatprep.subr.mxu0 0.0
    %1078 = vmatpush1.msra.mxu0 0.0
    %1079 = vmatprep.subr.mxu0 0.0
    %1080 = vmatpush1.msra.mxu0 0.0
    %1081 = vmatprep.subr.mxu0 0.0
    %1082 = vmatpush1.msra.mxu0 0.0
    %1083 = vmatprep.subr.mxu0 0.0
    %1084 = vmatpush1.msra.mxu0 0.0
    %1085 = vmatprep.subr.mxu0 0.0
    %1086 = vmatpush1.msra.mxu0 0.0
    %1087 = vmatprep.subr.mxu0 0.0
    %1088 = vmatpush1.msra.mxu0 0.0
    %1089 = vmatprep.subr.mxu0 0.0
    %1090 = vmatpush1.msra.mxu0 0.0
    %1091 = vmatprep.subr.mxu0 0.0
    %1092 = vmatpush1.msra.mxu0 0.0
    %1093 = vmatprep.subr.mxu0 0.0
    %1094 = vmatpush1.msra.mxu0 0.0
    %1095 = vmatprep.subr.mxu0 0.0
    %1096 = vmatpush1.msra.mxu0 0.0
    %1097 = vmatprep.subr.mxu0 0.0
    %1098 = vmatpush1.msra.mxu0 0.0
    %1099 = vmatprep.subr.mxu0 0.0
    %1100 = vmatpush1.msra.mxu0 0.0
    %1101 = vmatprep.subr.mxu0 0.0
    %1102 = vmatpush1.msra.mxu0 0.0
    %1103 = vmatprep.subr.mxu0 0.0
    %1104 = vmatpush1.msra.mxu0 0.0
    %1105 = vmatprep.subr.mxu0 0.0
    %1106 = vmatpush1.msra.mxu0 0.0
    %1107 = vmatprep.subr.mxu0 0.0
    %1108 = vmatpush1.msra.mxu0 0.0
    %1109 = vmatprep.subr.mxu0 0.0
    %1110 = vmatpush1.msra.mxu0 0.0
    %1111 = vmatprep.subr.mxu0 0.0
    %1112 = vmatpush1.msra.mxu0 0.0
    %1113 = vmatprep.subr.mxu0 0.0
    %1114 = vmatpush1.msra.mxu0 0.0
    %1115 = vmatprep.subr.mxu0 0.0
    %1116 = vmatpush1.msra.mxu0 0.0
    %1117 = vmatprep.subr.mxu0 0.0
    %1118 = vmatpush1.msra.mxu0 0.0
    %1119 = vmatprep.subr.mxu0 0.0
    %1120 = vmatpush1.msra.mxu0 0.0
    %1121 = vmatprep.subr.mxu0 0.0
    %1122 = vmatpush1.msra.mxu0 0.0
    %1123 = vmatprep.subr.mxu0 0.0
    %1124 = vmatpush1.msra.mxu0 0.0
    %1125 = vmatprep.subr.mxu0 0.0
    %1126 = vmatpush1.msra.mxu0 0.0
    %1127 = vmatprep.subr.mxu0 0.0
    %1128 = vmatpush1.msra.mxu0 0.0
    %1129 = vmatprep.mubr.f32.mxu0 0.0
    %1130 = vmatmul.mubr.f32.gmra.mrb[0].mxu0 %v1060
    %v1131 = vpop.f32.mrb[0].mxu0
    %v1132 = vadd.f32 0.0, %v1131
    %v1133 = vpop.f32.mrb[0].mxu0
    %1134 = vmatprep.mubr.f32.mxu0 0.0
    %1135 = vmatmul.mubr.f32.gmra.mrb[0].mxu0 %v1063
    %v1136 = vpop.f32.mrb[0].mxu0
    %v1137 = vadd.f32 0.0, %v1136
    %v1138 = vpop.f32.mrb[0].mxu0
    %1139 = vdwg.mxu0
    %v1140 = vadd.f32 %v64, %v1132
    %v1141 = vadd.f32 %v65, %v1137
    %v1142 = vld [vmem:[%s5] sm:$0x1]
    %v1143 = vmul.f32 %v1140, %v1140
    %v1144 = vmul.f32 %v1141, %v1141
    %v1145 = vsel %vm69, %v1143, 0.0
    %1146 = vadd.xlane.f32.xlu0 %v1145
    %v1147 = vpop.xlane.xlu0 %1146
    %v1148 = vsel %vm69, %v1144, 0.0
    %1149 = vadd.xlane.f32.xlu0 %v1148
    %v1150 = vpop.xlane.xlu0 %1149
    %v1151 = vmul.f32 %v1147, %v76
    %v1152 = vmul.f32 %v1150, %v76
    %v1153 = vadd.f32 %v1151, 1e-06
    %v1154 = vadd.f32 %v1152, 1e-06
    %v1155 = vrsqrt.pop %v1153
    %v1156 = vrsqrt.pop %v1154
    %v1157 = vmul.f32 %v1140, %v1155
    %v1158 = vmul.f32 %v1141, %v1156
    %v1160 = vlaneseq
    %v1161 = vshrl.u32 %v1160, 7
    %v1162 = vsub.s32 0, %v1161
    %v1163 = vrot.slane %v1142, %v1162
    %v1165 = vmul.f32 %v1157, %v1163
    %v1166 = vmul.f32 %v1158, %v1163
    %v1167 = vld [vmem:[#allocation6] sm:$0xff]
    %v1168 = vld [vmem:[#allocation6 + $0x8] sm:$0xff]
    %v1169 = vld [vmem:[#allocation6 + $0x10] sm:$0xff]
    %v1170 = vld [vmem:[#allocation6 + $0x18] sm:$0xff]
    %v1172 = vsel %vm69, %v1165, 0
    %v1175 = vsel %vm69, %v1166, 0
    %1177 = vmatprep.subr.mxu0 0.0
    %1178 = vmatpush1.msra.mxu0 %v1167
    %1179 = vmatprep.subr.mxu0 0.0
    %1180 = vmatpush1.msra.mxu0 %v1168
    %1181 = vmatprep.subr.mxu0 0.0
    %1182 = vmatpush1.msra.mxu0 %v1169
    %1183 = vmatprep.subr.mxu0 0.0
    %1184 = vmatpush1.msra.mxu0 %v1170
    %1185 = vmatprep.subr.mxu0 0.0
    %1186 = vmatpush1.msra.mxu0 0.0
    %1187 = vmatprep.subr.mxu0 0.0
    %1188 = vmatpush1.msra.mxu0 0.0
    %1189 = vmatprep.subr.mxu0 0.0
    %1190 = vmatpush1.msra.mxu0 0.0
    %1191 = vmatprep.subr.mxu0 0.0
    %1192 = vmatpush1.msra.mxu0 0.0
    %1193 = vmatprep.subr.mxu0 0.0
    %1194 = vmatpush1.msra.mxu0 0.0
    %1195 = vmatprep.subr.mxu0 0.0
    %1196 = vmatpush1.msra.mxu0 0.0
    %1197 = vmatprep.subr.mxu0 0.0
    %1198 = vmatpush1.msra.mxu0 0.0
    %1199 = vmatprep.subr.mxu0 0.0
    %1200 = vmatpush1.msra.mxu0 0.0
    %1201 = vmatprep.subr.mxu0 0.0
    %1202 = vmatpush1.msra.mxu0 0.0
    %1203 = vmatprep.subr.mxu0 0.0
    %1204 = vmatpush1.msra.mxu0 0.0
    %1205 = vmatprep.subr.mxu0 0.0
    %1206 = vmatpush1.msra.mxu0 0.0
    %1207 = vmatprep.subr.mxu0 0.0
    %1208 = vmatpush1.msra.mxu0 0.0
    %1209 = vmatprep.subr.mxu0 0.0
    %1210 = vmatpush1.msra.mxu0 0.0
    %1211 = vmatprep.subr.mxu0 0.0
    %1212 = vmatpush1.msra.mxu0 0.0
    %1213 = vmatprep.subr.mxu0 0.0
    %1214 = vmatpush1.msra.mxu0 0.0
    %1215 = vmatprep.subr.mxu0 0.0
    %1216 = vmatpush1.msra.mxu0 0.0
    %1217 = vmatprep.subr.mxu0 0.0
    %1218 = vmatpush1.msra.mxu0 0.0
    %1219 = vmatprep.subr.mxu0 0.0
    %1220 = vmatpush1.msra.mxu0 0.0
    %1221 = vmatprep.subr.mxu0 0.0
    %1222 = vmatpush1.msra.mxu0 0.0
    %1223 = vmatprep.subr.mxu0 0.0
    %1224 = vmatpush1.msra.mxu0 0.0
    %1225 = vmatprep.subr.mxu0 0.0
    %1226 = vmatpush1.msra.mxu0 0.0
    %1227 = vmatprep.subr.mxu0 0.0
    %1228 = vmatpush1.msra.mxu0 0.0
    %1229 = vmatprep.subr.mxu0 0.0
    %1230 = vmatpush1.msra.mxu0 0.0
    %1231 = vmatprep.subr.mxu0 0.0
    %1232 = vmatpush1.msra.mxu0 0.0
    %1233 = vmatprep.subr.mxu0 0.0
    %1234 = vmatpush1.msra.mxu0 0.0
    %1235 = vmatprep.subr.mxu0 0.0
    %1236 = vmatpush1.msra.mxu0 0.0
    %1237 = vmatprep.subr.mxu0 0.0
    %1238 = vmatpush1.msra.mxu0 0.0
    %1239 = vmatprep.subr.mxu0 0.0
    %1240 = vmatpush1.msra.mxu0 0.0
    %1241 = vmatprep.mubr.f32.mxu0 0.0
    %1242 = vmatmul.mubr.f32.gmra.mrb[0].mxu0 %v1172
    %v1243 = vpop.f32.mrb[0].mxu0
    %v1244 = vadd.f32 0.0, %v1243
    %v1245 = vpop.f32.mrb[0].mxu0
    %1246 = vmatprep.mubr.f32.mxu0 0.0
    %1247 = vmatmul.mubr.f32.gmra.mrb[0].mxu0 %v1175
    %v1248 = vpop.f32.mrb[0].mxu0
    %v1249 = vadd.f32 0.0, %v1248
    %v1250 = vpop.f32.mrb[0].mxu0
    %1251 = vdwg.mxu0
    %v1252 = vmax.f32 %v1244, 0.0
    %v1253 = vmax.f32 %v1249, 0.0
    %v1254 = vld [vmem:[%s7] sm:$0xff]
    %v1255 = vld [vmem:[%s7 + $0x8] sm:$0xff]
    %v1256 = vld [vmem:[%s7 + $0x10] sm:$0xff]
    %v1257 = vld [vmem:[%s7 + $0x18] sm:$0xff]
    %v1258 = vld [vmem:[%s7 + $0x20] sm:$0xff]
    %v1259 = vld [vmem:[%s7 + $0x28] sm:$0xff]
    %v1260 = vld [vmem:[%s7 + $0x30] sm:$0xff]
    %v1261 = vld [vmem:[%s7 + $0x38] sm:$0xff]
    %vm1262 = vcmask 523264
    %v1264 = vsel %vm1262, %v1252, 0
    %v1267 = vsel %vm1262, %v1253, 0
    %1269 = vmatprep.subr.mxu0 0.0
    %1270 = vmatpush1.msra.mxu0 %v1254
    %1271 = vmatprep.subr.mxu0 0.0
    %1272 = vmatpush1.msra.mxu0 %v1255
    %1273 = vmatprep.subr.mxu0 0.0
    %1274 = vmatpush1.msra.mxu0 %v1256
    %1275 = vmatprep.subr.mxu0 0.0
    %1276 = vmatpush1.msra.mxu0 %v1257
    %1277 = vmatprep.subr.mxu0 0.0
    %1278 = vmatpush1.msra.mxu0 %v1258
    %1279 = vmatprep.subr.mxu0 0.0
    %1280 = vmatpush1.msra.mxu0 %v1259
    %1281 = vmatprep.subr.mxu0 0.0
    %1282 = vmatpush1.msra.mxu0 %v1260
    %1283 = vmatprep.subr.mxu0 0.0
    %1284 = vmatpush1.msra.mxu0 %v1261
    %1285 = vmatprep.subr.mxu0 0.0
    %1286 = vmatpush1.msra.mxu0 0.0
    %1287 = vmatprep.subr.mxu0 0.0
    %1288 = vmatpush1.msra.mxu0 0.0
    %1289 = vmatprep.subr.mxu0 0.0
    %1290 = vmatpush1.msra.mxu0 0.0
    %1291 = vmatprep.subr.mxu0 0.0
    %1292 = vmatpush1.msra.mxu0 0.0
    %1293 = vmatprep.subr.mxu0 0.0
    %1294 = vmatpush1.msra.mxu0 0.0
    %1295 = vmatprep.subr.mxu0 0.0
    %1296 = vmatpush1.msra.mxu0 0.0
    %1297 = vmatprep.subr.mxu0 0.0
    %1298 = vmatpush1.msra.mxu0 0.0
    %1299 = vmatprep.subr.mxu0 0.0
    %1300 = vmatpush1.msra.mxu0 0.0
    %1301 = vmatprep.subr.mxu0 0.0
    %1302 = vmatpush1.msra.mxu0 0.0
    %1303 = vmatprep.subr.mxu0 0.0
    %1304 = vmatpush1.msra.mxu0 0.0
    %1305 = vmatprep.subr.mxu0 0.0
    %1306 = vmatpush1.msra.mxu0 0.0
    %1307 = vmatprep.subr.mxu0 0.0
    %1308 = vmatpush1.msra.mxu0 0.0
    %1309 = vmatprep.subr.mxu0 0.0
    %1310 = vmatpush1.msra.mxu0 0.0
    %1311 = vmatprep.subr.mxu0 0.0
    %1312 = vmatpush1.msra.mxu0 0.0
    %1313 = vmatprep.subr.mxu0 0.0
    %1314 = vmatpush1.msra.mxu0 0.0
    %1315 = vmatprep.subr.mxu0 0.0
    %1316 = vmatpush1.msra.mxu0 0.0
    %1317 = vmatprep.subr.mxu0 0.0
    %1318 = vmatpush1.msra.mxu0 0.0
    %1319 = vmatprep.subr.mxu0 0.0
    %1320 = vmatpush1.msra.mxu0 0.0
    %1321 = vmatprep.subr.mxu0 0.0
    %1322 = vmatpush1.msra.mxu0 0.0
    %1323 = vmatprep.subr.mxu0 0.0
    %1324 = vmatpush1.msra.mxu0 0.0
    %1325 = vmatprep.subr.mxu0 0.0
    %1326 = vmatpush1.msra.mxu0 0.0
    %1327 = vmatprep.subr.mxu0 0.0
    %1328 = vmatpush1.msra.mxu0 0.0
    %1329 = vmatprep.subr.mxu0 0.0
    %1330 = vmatpush1.msra.mxu0 0.0
    %1331 = vmatprep.subr.mxu0 0.0
    %1332 = vmatpush1.msra.mxu0 0.0
    %1333 = vmatprep.mubr.f32.mxu0 0.0
    %1334 = vmatmul.mubr.f32.gmra.mrb[0].mxu0 %v1264
    %v1335 = vpop.f32.mrb[0].mxu0
    %v1336 = vadd.f32 0.0, %v1335
    %v1337 = vpop.f32.mrb[0].mxu0
    %1338 = vmatprep.mubr.f32.mxu0 0.0
    %1339 = vmatmul.mubr.f32.gmra.mrb[0].mxu0 %v1267
    %v1340 = vpop.f32.mrb[0].mxu0
    %v1341 = vadd.f32 0.0, %v1340
    %v1342 = vpop.f32.mrb[0].mxu0
    %1343 = vdwg.mxu0
    %v1344 = vadd.f32 %v1140, %v1336
    %v1345 = vadd.f32 %v1141, %v1341
    %s1346 = scalar_lea.vmem %s2, 1
    %v1347 = vld [vmem:[%s1346] sm:$0x1]
    %v1348 = vmul.f32 %v1344, %v1344
    %v1349 = vmul.f32 %v1345, %v1345
    %v1350 = vsel %vm69, %v1348, 0.0
    %1351 = vadd.xlane.f32.xlu0 %v1350
    %v1352 = vpop.xlane.xlu0 %1351
    %v1353 = vsel %vm69, %v1349, 0.0
    %1354 = vadd.xlane.f32.xlu0 %v1353
    %v1355 = vpop.xlane.xlu0 %1354
    %v1356 = vmul.f32 %v1352, %v76
    %v1357 = vmul.f32 %v1355, %v76
    %v1358 = vadd.f32 %v1356, 1e-06
    %v1359 = vadd.f32 %v1357, 1e-06
    %v1360 = vrsqrt.pop %v1358
    %v1361 = vrsqrt.pop %v1359
    %v1362 = vmul.f32 %v1344, %v1360
    %v1363 = vmul.f32 %v1345, %v1361
    %v1365 = vlaneseq
    %v1366 = vshrl.u32 %v1365, 7
    %v1367 = vsub.s32 0, %v1366
    %v1368 = vrot.slane %v1347, %v1367
    %v1370 = vmul.f32 %v1362, %v1368
    %v1371 = vmul.f32 %v1363, %v1368
    %s1372 = scalar_lea.vmem %s3, 32
    %v1373 = vld [vmem:[%s1372] sm:$0xff]
    %v1374 = vld [vmem:[%s1372 + $0x8] sm:$0xff]
    %v1375 = vld [vmem:[%s1372 + $0x10] sm:$0xff]
    %v1376 = vld [vmem:[%s1372 + $0x18] sm:$0xff]
    %v1378 = vsel %vm69, %v1370, 0
    %v1381 = vsel %vm69, %v1371, 0
    %1383 = vmatprep.subr.mxu0 0.0
    %1384 = vmatpush1.msra.mxu0 %v1373
    %1385 = vmatprep.subr.mxu0 0.0
    %1386 = vmatpush1.msra.mxu0 %v1374
    %1387 = vmatprep.subr.mxu0 0.0
    %1388 = vmatpush1.msra.mxu0 %v1375
    %1389 = vmatprep.subr.mxu0 0.0
    %1390 = vmatpush1.msra.mxu0 %v1376
    %1391 = vmatprep.subr.mxu0 0.0
    %1392 = vmatpush1.msra.mxu0 0.0
    %1393 = vmatprep.subr.mxu0 0.0
    %1394 = vmatpush1.msra.mxu0 0.0
    %1395 = vmatprep.subr.mxu0 0.0
    %1396 = vmatpush1.msra.mxu0 0.0
    %1397 = vmatprep.subr.mxu0 0.0
    %1398 = vmatpush1.msra.mxu0 0.0
    %1399 = vmatprep.subr.mxu0 0.0
    %1400 = vmatpush1.msra.mxu0 0.0
    %1401 = vmatprep.subr.mxu0 0.0
    %1402 = vmatpush1.msra.mxu0 0.0
    %1403 = vmatprep.subr.mxu0 0.0
    %1404 = vmatpush1.msra.mxu0 0.0
    %1405 = vmatprep.subr.mxu0 0.0
    %1406 = vmatpush1.msra.mxu0 0.0
    %1407 = vmatprep.subr.mxu0 0.0
    %1408 = vmatpush1.msra.mxu0 0.0
    %1409 = vmatprep.subr.mxu0 0.0
    %1410 = vmatpush1.msra.mxu0 0.0
    %1411 = vmatprep.subr.mxu0 0.0
    %1412 = vmatpush1.msra.mxu0 0.0
    %1413 = vmatprep.subr.mxu0 0.0
    %1414 = vmatpush1.msra.mxu0 0.0
    %1415 = vmatprep.subr.mxu0 0.0
    %1416 = vmatpush1.msra.mxu0 0.0
    %1417 = vmatprep.subr.mxu0 0.0
    %1418 = vmatpush1.msra.mxu0 0.0
    %1419 = vmatprep.subr.mxu0 0.0
    %1420 = vmatpush1.msra.mxu0 0.0
    %1421 = vmatprep.subr.mxu0 0.0
    %1422 = vmatpush1.msra.mxu0 0.0
    %1423 = vmatprep.subr.mxu0 0.0
    %1424 = vmatpush1.msra.mxu0 0.0
    %1425 = vmatprep.subr.mxu0 0.0
    %1426 = vmatpush1.msra.mxu0 0.0
    %1427 = vmatprep.subr.mxu0 0.0
    %1428 = vmatpush1.msra.mxu0 0.0
    %1429 = vmatprep.subr.mxu0 0.0
    %1430 = vmatpush1.msra.mxu0 0.0
    %1431 = vmatprep.subr.mxu0 0.0
    %1432 = vmatpush1.msra.mxu0 0.0
    %1433 = vmatprep.subr.mxu0 0.0
    %1434 = vmatpush1.msra.mxu0 0.0
    %1435 = vmatprep.subr.mxu0 0.0
    %1436 = vmatpush1.msra.mxu0 0.0
    %1437 = vmatprep.subr.mxu0 0.0
    %1438 = vmatpush1.msra.mxu0 0.0
    %1439 = vmatprep.subr.mxu0 0.0
    %1440 = vmatpush1.msra.mxu0 0.0
    %1441 = vmatprep.subr.mxu0 0.0
    %1442 = vmatpush1.msra.mxu0 0.0
    %1443 = vmatprep.subr.mxu0 0.0
    %1444 = vmatpush1.msra.mxu0 0.0
    %1445 = vmatprep.subr.mxu0 0.0
    %1446 = vmatpush1.msra.mxu0 0.0
    %1447 = vmatprep.mubr.f32.mxu0 0.0
    %1448 = vmatmul.mubr.f32.gmra.mrb[0].mxu0 %v1378
    %v1449 = vpop.f32.mrb[0].mxu0
    %v1450 = vadd.f32 0.0, %v1449
    %v1451 = vpop.f32.mrb[0].mxu0
    %1452 = vmatprep.mubr.f32.mxu0 0.0
    %1453 = vmatmul.mubr.f32.gmra.mrb[0].mxu0 %v1381
    %v1454 = vpop.f32.mrb[0].mxu0
    %v1455 = vadd.f32 0.0, %v1454
    %v1456 = vpop.f32.mrb[0].mxu0
    %1457 = vdwg.mxu0
    %v1458 = vld [vmem:[%s1] sm:$0xff]
    %v1459 = vld [vmem:[%s1 + $0x8] sm:$0xff]
    %1462 = vrot.lane.b32.xlu0 %v1450, 96
    %v1463 = vpop.permute.xlu0 %1462
    %1464 = vrot.lane.b32.xlu0 %v1455, 96
    %v1465 = vpop.permute.xlu0 %1464
    %v1466 = vsel %vm186, %v1450, 0
    %v1468 = vsel %vm186, %v1455, 0
    %v1470 = vsel %vm186, %v1463, 0
    %v1472 = vsel %vm186, %v1465, 0
    %1474 = vmatprep.subr.mxu0 0.0
    %1475 = vmatpush1.xpose.msra.mxu0 %v1470
    %1476 = vmatprep.subr.mxu0 0.0
    %1477 = vmatpush1.xpose.msra.mxu0 %v1472
    %1478 = vmatprep.subr.mxu0 0.0
    %1479 = vmatpush1.xpose.msra.mxu0 0.0
    %1480 = vmatprep.subr.mxu0 0.0
    %1481 = vmatpush1.xpose.msra.mxu0 0.0
    %1482 = vmatprep.subr.mxu0 0.0
    %1483 = vmatpush1.xpose.msra.mxu0 0.0
    %1484 = vmatprep.subr.mxu0 0.0
    %1485 = vmatpush1.xpose.msra.mxu0 0.0
    %1486 = vmatprep.subr.mxu0 0.0
    %1487 = vmatpush1.xpose.msra.mxu0 0.0
    %1488 = vmatprep.subr.mxu0 0.0
    %1489 = vmatpush1.xpose.msra.mxu0 0.0
    %1490 = vmatprep.subr.mxu0 0.0
    %1491 = vmatpush1.xpose.msra.mxu0 0.0
    %1492 = vmatprep.subr.mxu0 0.0
    %1493 = vmatpush1.xpose.msra.mxu0 0.0
    %1494 = vmatprep.subr.mxu0 0.0
    %1495 = vmatpush1.xpose.msra.mxu0 0.0
    %1496 = vmatprep.subr.mxu0 0.0
    %1497 = vmatpush1.xpose.msra.mxu0 0.0
    %1498 = vmatprep.subr.mxu0 0.0
    %1499 = vmatpush1.xpose.msra.mxu0 0.0
    %1500 = vmatprep.subr.mxu0 0.0
    %1501 = vmatpush1.xpose.msra.mxu0 0.0
    %1502 = vmatprep.subr.mxu0 0.0
    %1503 = vmatpush1.xpose.msra.mxu0 0.0
    %1504 = vmatprep.subr.mxu0 0.0
    %1505 = vmatpush1.xpose.msra.mxu0 0.0
    %1506 = vmatprep.subr.mxu0 0.0
    %1507 = vmatpush1.xpose.msra.mxu0 0.0
    %1508 = vmatprep.subr.mxu0 0.0
    %1509 = vmatpush1.xpose.msra.mxu0 0.0
    %1510 = vmatprep.subr.mxu0 0.0
    %1511 = vmatpush1.xpose.msra.mxu0 0.0
    %1512 = vmatprep.subr.mxu0 0.0
    %1513 = vmatpush1.xpose.msra.mxu0 0.0
    %1514 = vmatprep.subr.mxu0 0.0
    %1515 = vmatpush1.xpose.msra.mxu0 0.0
    %1516 = vmatprep.subr.mxu0 0.0
    %1517 = vmatpush1.xpose.msra.mxu0 0.0
    %1518 = vmatprep.subr.mxu0 0.0
    %1519 = vmatpush1.xpose.msra.mxu0 0.0
    %1520 = vmatprep.subr.mxu0 0.0
    %1521 = vmatpush1.xpose.msra.mxu0 0.0
    %1522 = vmatprep.subr.mxu0 0.0
    %1523 = vmatpush1.xpose.msra.mxu0 0.0
    %1524 = vmatprep.subr.mxu0 0.0
    %1525 = vmatpush1.xpose.msra.mxu0 0.0
    %1526 = vmatprep.subr.mxu0 0.0
    %1527 = vmatpush1.xpose.msra.mxu0 0.0
    %1528 = vmatprep.subr.mxu0 0.0
    %1529 = vmatpush1.xpose.msra.mxu0 0.0
    %1530 = vmatprep.subr.mxu0 0.0
    %1531 = vmatpush1.xpose.msra.mxu0 0.0
    %1532 = vmatprep.subr.mxu0 0.0
    %1533 = vmatpush1.xpose.msra.mxu0 0.0
    %1534 = vmatprep.subr.mxu0 0.0
    %1535 = vmatpush1.xpose.msra.mxu0 0.0
    %1536 = vmatprep.subr.mxu0 0.0
    %1537 = vmatpush1.xpose.msra.mxu0 0.0
    %1538 = vmatprep.mubr.f32.mxu0 0.0
    %1539 = vmatmul.mubr.f32.gmra.mrb[0].mxu0 %v1466
    %v1540 = vpop.f32.mrb[0].mxu0
    %v1541 = vadd.f32 %v1458, %v1540
    %v1542 = vpop.f32.mrb[0].mxu0
    %1543 = vmatprep.mubr.f32.mxu0 0.0
    %1544 = vmatmul.mubr.f32.gmra.mrb[0].mxu0 %v1468
    %v1545 = vpop.f32.mrb[0].mxu0
    %v1546 = vadd.f32 %v1459, %v1545
    %v1547 = vpop.f32.mrb[0].mxu0
    %1548 = vdwg.mxu0
    %v1549 = vsel %vm270, %v1541, -inf
    %1550 = vmax.xlane.f32.xlu0 %v1549
    %v1551 = vpop.xlane.xlu0 %1550
    %v1552 = vsel %vm270, %v1546, -inf
    %1553 = vmax.xlane.f32.xlu0 %v1552
    %v1554 = vpop.xlane.xlu0 %1553
    %v1555 = vsub.f32 %v1541, %v1551
    %v1556 = vsub.f32 %v1546, %v1554
    %v1557 = vmul.f32 %v1555, 1.442695
    %v1558 = vpow.pop %v1557
    %v1559 = vmul.f32 %v1556, 1.442695
    %v1560 = vpow.pop %v1559
    %v1561 = vsel %vm270, %v1558, 0.0
    %1562 = vadd.xlane.f32.xlu0 %v1561
    %v1563 = vpop.xlane.xlu0 %1562
    %v1564 = vsel %vm270, %v1560, 0.0
    %1565 = vadd.xlane.f32.xlu0 %v1564
    %v1566 = vpop.xlane.xlu0 %1565
    %v1567 = vrcp.pop %v1563
    %v1568 = vmul.f32 %v1558, %v1567
    %v1569 = vrcp.pop %v1566
    %v1570 = vmul.f32 %v1560, %v1569
    %s1571 = scalar_lea.vmem [#allocation9], 16
    %1572 = vst.msk [vmem:[%s1571] sm:$0xff] %vm270, %v1568
    %1573 = vst.msk [vmem:[%s1571 + $0x8] sm:$0xff] %vm270, %v1570
    %1574 = vrot.lane.b32.xlu0 %v1450, 64
    %v1575 = vpop.permute.xlu0 %1574
    %1576 = vrot.lane.b32.xlu0 %v1455, 64
    %v1577 = vpop.permute.xlu0 %1576
    %v1581 = vsel %vm270, %v1568, 0
    %v1584 = vsel %vm270, %v1570, 0
    %1586 = vmatprep.subr.mxu0 0.0
    %1587 = vmatpush1.msra.mxu0 %v1575
    %1588 = vmatprep.subr.mxu0 0.0
    %1589 = vmatpush1.msra.mxu0 %v1577
    %1590 = vmatprep.subr.mxu0 0.0
    %1591 = vmatpush1.msra.mxu0 0.0
    %1592 = vmatprep.subr.mxu0 0.0
    %1593 = vmatpush1.msra.mxu0 0.0
    %1594 = vmatprep.subr.mxu0 0.0
    %1595 = vmatpush1.msra.mxu0 0.0
    %1596 = vmatprep.subr.mxu0 0.0
    %1597 = vmatpush1.msra.mxu0 0.0
    %1598 = vmatprep.subr.mxu0 0.0
    %1599 = vmatpush1.msra.mxu0 0.0
    %1600 = vmatprep.subr.mxu0 0.0
    %1601 = vmatpush1.msra.mxu0 0.0
    %1602 = vmatprep.subr.mxu0 0.0
    %1603 = vmatpush1.msra.mxu0 0.0
    %1604 = vmatprep.subr.mxu0 0.0
    %1605 = vmatpush1.msra.mxu0 0.0
    %1606 = vmatprep.subr.mxu0 0.0
    %1607 = vmatpush1.msra.mxu0 0.0
    %1608 = vmatprep.subr.mxu0 0.0
    %1609 = vmatpush1.msra.mxu0 0.0
    %1610 = vmatprep.subr.mxu0 0.0
    %1611 = vmatpush1.msra.mxu0 0.0
    %1612 = vmatprep.subr.mxu0 0.0
    %1613 = vmatpush1.msra.mxu0 0.0
    %1614 = vmatprep.subr.mxu0 0.0
    %1615 = vmatpush1.msra.mxu0 0.0
    %1616 = vmatprep.subr.mxu0 0.0
    %1617 = vmatpush1.msra.mxu0 0.0
    %1618 = vmatprep.subr.mxu0 0.0
    %1619 = vmatpush1.msra.mxu0 0.0
    %1620 = vmatprep.subr.mxu0 0.0
    %1621 = vmatpush1.msra.mxu0 0.0
    %1622 = vmatprep.subr.mxu0 0.0
    %1623 = vmatpush1.msra.mxu0 0.0
    %1624 = vmatprep.subr.mxu0 0.0
    %1625 = vmatpush1.msra.mxu0 0.0
    %1626 = vmatprep.subr.mxu0 0.0
    %1627 = vmatpush1.msra.mxu0 0.0
    %1628 = vmatprep.subr.mxu0 0.0
    %1629 = vmatpush1.msra.mxu0 0.0
    %1630 = vmatprep.subr.mxu0 0.0
    %1631 = vmatpush1.msra.mxu0 0.0
    %1632 = vmatprep.subr.mxu0 0.0
    %1633 = vmatpush1.msra.mxu0 0.0
    %1634 = vmatprep.subr.mxu0 0.0
    %1635 = vmatpush1.msra.mxu0 0.0
    %1636 = vmatprep.subr.mxu0 0.0
    %1637 = vmatpush1.msra.mxu0 0.0
    %1638 = vmatprep.subr.mxu0 0.0
    %1639 = vmatpush1.msra.mxu0 0.0
    %1640 = vmatprep.subr.mxu0 0.0
    %1641 = vmatpush1.msra.mxu0 0.0
    %1642 = vmatprep.subr.mxu0 0.0
    %1643 = vmatpush1.msra.mxu0 0.0
    %1644 = vmatprep.subr.mxu0 0.0
    %1645 = vmatpush1.msra.mxu0 0.0
    %1646 = vmatprep.subr.mxu0 0.0
    %1647 = vmatpush1.msra.mxu0 0.0
    %1648 = vmatprep.subr.mxu0 0.0
    %1649 = vmatpush1.msra.mxu0 0.0
    %1650 = vmatprep.mubr.f32.mxu0 0.0
    %1651 = vmatmul.mubr.f32.gmra.mrb[0].mxu0 %v1581
    %v1652 = vpop.f32.mrb[0].mxu0
    %v1653 = vadd.f32 0.0, %v1652
    %v1654 = vpop.f32.mrb[0].mxu0
    %1655 = vmatprep.mubr.f32.mxu0 0.0
    %1656 = vmatmul.mubr.f32.gmra.mrb[0].mxu0 %v1584
    %v1657 = vpop.f32.mrb[0].mxu0
    %v1658 = vadd.f32 0.0, %v1657
    %v1659 = vpop.f32.mrb[0].mxu0
    %1660 = vdwg.mxu0
    %1661 = vst.msk [vmem:[#allocation2] sm:$0xff] %vm186, %v1653
    %1662 = vst.msk [vmem:[#allocation2 + $0x8] sm:$0xff] %vm186, %v1658
    %v1663 = vld [vmem:[%s384] sm:$0xff]
    %v1664 = vld [vmem:[%s384 + $0x8] sm:$0xff]
    %1665 = vrot.lane.b32.xlu0 %v1450, 120
    %v1666 = vpop.permute.xlu0 %1665
    %1667 = vrot.lane.b32.xlu0 %v1455, 120
    %v1668 = vpop.permute.xlu0 %1667
    %1669 = vrot.lane.b32.xlu0 %v1450, 88
    %v1670 = vpop.permute.xlu0 %1669
    %1671 = vrot.lane.b32.xlu0 %v1455, 88
    %v1672 = vpop.permute.xlu0 %1671
    %v1673 = vsel %vm186, %v1666, 0
    %v1675 = vsel %vm186, %v1668, 0
    %v1677 = vsel %vm186, %v1670, 0
    %v1679 = vsel %vm186, %v1672, 0
    %1681 = vmatprep.subr.mxu0 0.0
    %1682 = vmatpush1.xpose.msra.mxu0 %v1677
    %1683 = vmatprep.subr.mxu0 0.0
    %1684 = vmatpush1.xpose.msra.mxu0 %v1679
    %1685 = vmatprep.subr.mxu0 0.0
    %1686 = vmatpush1.xpose.msra.mxu0 0.0
    %1687 = vmatprep.subr.mxu0 0.0
    %1688 = vmatpush1.xpose.msra.mxu0 0.0
    %1689 = vmatprep.subr.mxu0 0.0
    %1690 = vmatpush1.xpose.msra.mxu0 0.0
    %1691 = vmatprep.subr.mxu0 0.0
    %1692 = vmatpush1.xpose.msra.mxu0 0.0
    %1693 = vmatprep.subr.mxu0 0.0
    %1694 = vmatpush1.xpose.msra.mxu0 0.0
    %1695 = vmatprep.subr.mxu0 0.0
    %1696 = vmatpush1.xpose.msra.mxu0 0.0
    %1697 = vmatprep.subr.mxu0 0.0
    %1698 = vmatpush1.xpose.msra.mxu0 0.0
    %1699 = vmatprep.subr.mxu0 0.0
    %1700 = vmatpush1.xpose.msra.mxu0 0.0
    %1701 = vmatprep.subr.mxu0 0.0
    %1702 = vmatpush1.xpose.msra.mxu0 0.0
    %1703 = vmatprep.subr.mxu0 0.0
    %1704 = vmatpush1.xpose.msra.mxu0 0.0
    %1705 = vmatprep.subr.mxu0 0.0
    %1706 = vmatpush1.xpose.msra.mxu0 0.0
    %1707 = vmatprep.subr.mxu0 0.0
    %1708 = vmatpush1.xpose.msra.mxu0 0.0
    %1709 = vmatprep.subr.mxu0 0.0
    %1710 = vmatpush1.xpose.msra.mxu0 0.0
    %1711 = vmatprep.subr.mxu0 0.0
    %1712 = vmatpush1.xpose.msra.mxu0 0.0
    %1713 = vmatprep.subr.mxu0 0.0
    %1714 = vmatpush1.xpose.msra.mxu0 0.0
    %1715 = vmatprep.subr.mxu0 0.0
    %1716 = vmatpush1.xpose.msra.mxu0 0.0
    %1717 = vmatprep.subr.mxu0 0.0
    %1718 = vmatpush1.xpose.msra.mxu0 0.0
    %1719 = vmatprep.subr.mxu0 0.0
    %1720 = vmatpush1.xpose.msra.mxu0 0.0
    %1721 = vmatprep.subr.mxu0 0.0
    %1722 = vmatpush1.xpose.msra.mxu0 0.0
    %1723 = vmatprep.subr.mxu0 0.0
    %1724 = vmatpush1.xpose.msra.mxu0 0.0
    %1725 = vmatprep.subr.mxu0 0.0
    %1726 = vmatpush1.xpose.msra.mxu0 0.0
    %1727 = vmatprep.subr.mxu0 0.0
    %1728 = vmatpush1.xpose.msra.mxu0 0.0
    %1729 = vmatprep.subr.mxu0 0.0
    %1730 = vmatpush1.xpose.msra.mxu0 0.0
    %1731 = vmatprep.subr.mxu0 0.0
    %1732 = vmatpush1.xpose.msra.mxu0 0.0
    %1733 = vmatprep.subr.mxu0 0.0
    %1734 = vmatpush1.xpose.msra.mxu0 0.0
    %1735 = vmatprep.subr.mxu0 0.0
    %1736 = vmatpush1.xpose.msra.mxu0 0.0
    %1737 = vmatprep.subr.mxu0 0.0
    %1738 = vmatpush1.xpose.msra.mxu0 0.0
    %1739 = vmatprep.subr.mxu0 0.0
    %1740 = vmatpush1.xpose.msra.mxu0 0.0
    %1741 = vmatprep.subr.mxu0 0.0
    %1742 = vmatpush1.xpose.msra.mxu0 0.0
    %1743 = vmatprep.subr.mxu0 0.0
    %1744 = vmatpush1.xpose.msra.mxu0 0.0
    %1745 = vmatprep.mubr.f32.mxu0 0.0
    %1746 = vmatmul.mubr.f32.gmra.mrb[0].mxu0 %v1673
    %v1747 = vpop.f32.mrb[0].mxu0
    %v1748 = vadd.f32 %v1663, %v1747
    %v1749 = vpop.f32.mrb[0].mxu0
    %1750 = vmatprep.mubr.f32.mxu0 0.0
    %1751 = vmatmul.mubr.f32.gmra.mrb[0].mxu0 %v1675
    %v1752 = vpop.f32.mrb[0].mxu0
    %v1753 = vadd.f32 %v1664, %v1752
    %v1754 = vpop.f32.mrb[0].mxu0
    %1755 = vdwg.mxu0
    %v1756 = vsel %vm270, %v1748, -inf
    %1757 = vmax.xlane.f32.xlu0 %v1756
    %v1758 = vpop.xlane.xlu0 %1757
    %v1759 = vsel %vm270, %v1753, -inf
    %1760 = vmax.xlane.f32.xlu0 %v1759
    %v1761 = vpop.xlane.xlu0 %1760
    %v1762 = vsub.f32 %v1748, %v1758
    %v1763 = vsub.f32 %v1753, %v1761
    %v1764 = vmul.f32 %v1762, 1.442695
    %v1765 = vpow.pop %v1764
    %v1766 = vmul.f32 %v1763, 1.442695
    %v1767 = vpow.pop %v1766
    %v1768 = vsel %vm270, %v1765, 0.0
    %1769 = vadd.xlane.f32.xlu0 %v1768
    %v1770 = vpop.xlane.xlu0 %1769
    %v1771 = vsel %vm270, %v1767, 0.0
    %1772 = vadd.xlane.f32.xlu0 %v1771
    %v1773 = vpop.xlane.xlu0 %1772
    %v1774 = vrcp.pop %v1770
    %v1775 = vmul.f32 %v1765, %v1774
    %v1776 = vrcp.pop %v1773
    %v1777 = vmul.f32 %v1767, %v1776
    %1780 = vrot.lane.b32.xlu0 %v1775, 16
    %v1781 = vpop.permute.xlu0 %1780
    %1782 = vrot.lane.b32.xlu0 %v1777, 16
    %v1783 = vpop.permute.xlu0 %1782
    %1786 = vst.msk [vmem:[%s1571] sm:$0xff] %vm508, %v1781
    %1787 = vst.msk [vmem:[%s1571 + $0x8] sm:$0xff] %vm508, %v1783
    %1788 = vrot.lane.b32.xlu0 %v1450, 56
    %v1789 = vpop.permute.xlu0 %1788
    %1790 = vrot.lane.b32.xlu0 %v1455, 56
    %v1791 = vpop.permute.xlu0 %1790
    %v1794 = vsel %vm270, %v1775, 0
    %v1796 = vsel %vm270, %v1777, 0
    %1798 = vmatprep.subr.mxu0 0.0
    %1799 = vmatpush1.msra.mxu0 %v1789
    %1800 = vmatprep.subr.mxu0 0.0
    %1801 = vmatpush1.msra.mxu0 %v1791
    %1802 = vmatprep.subr.mxu0 0.0
    %1803 = vmatpush1.msra.mxu0 0.0
    %1804 = vmatprep.subr.mxu0 0.0
    %1805 = vmatpush1.msra.mxu0 0.0
    %1806 = vmatprep.subr.mxu0 0.0
    %1807 = vmatpush1.msra.mxu0 0.0
    %1808 = vmatprep.subr.mxu0 0.0
    %1809 = vmatpush1.msra.mxu0 0.0
    %1810 = vmatprep.subr.mxu0 0.0
    %1811 = vmatpush1.msra.mxu0 0.0
    %1812 = vmatprep.subr.mxu0 0.0
    %1813 = vmatpush1.msra.mxu0 0.0
    %1814 = vmatprep.subr.mxu0 0.0
    %1815 = vmatpush1.msra.mxu0 0.0
    %1816 = vmatprep.subr.mxu0 0.0
    %1817 = vmatpush1.msra.mxu0 0.0
    %1818 = vmatprep.subr.mxu0 0.0
    %1819 = vmatpush1.msra.mxu0 0.0
    %1820 = vmatprep.subr.mxu0 0.0
    %1821 = vmatpush1.msra.mxu0 0.0
    %1822 = vmatprep.subr.mxu0 0.0
    %1823 = vmatpush1.msra.mxu0 0.0
    %1824 = vmatprep.subr.mxu0 0.0
    %1825 = vmatpush1.msra.mxu0 0.0
    %1826 = vmatprep.subr.mxu0 0.0
    %1827 = vmatpush1.msra.mxu0 0.0
    %1828 = vmatprep.subr.mxu0 0.0
    %1829 = vmatpush1.msra.mxu0 0.0
    %1830 = vmatprep.subr.mxu0 0.0
    %1831 = vmatpush1.msra.mxu0 0.0
    %1832 = vmatprep.subr.mxu0 0.0
    %1833 = vmatpush1.msra.mxu0 0.0
    %1834 = vmatprep.subr.mxu0 0.0
    %1835 = vmatpush1.msra.mxu0 0.0
    %1836 = vmatprep.subr.mxu0 0.0
    %1837 = vmatpush1.msra.mxu0 0.0
    %1838 = vmatprep.subr.mxu0 0.0
    %1839 = vmatpush1.msra.mxu0 0.0
    %1840 = vmatprep.subr.mxu0 0.0
    %1841 = vmatpush1.msra.mxu0 0.0
    %1842 = vmatprep.subr.mxu0 0.0
    %1843 = vmatpush1.msra.mxu0 0.0
    %1844 = vmatprep.subr.mxu0 0.0
    %1845 = vmatpush1.msra.mxu0 0.0
    %1846 = vmatprep.subr.mxu0 0.0
    %1847 = vmatpush1.msra.mxu0 0.0
    %1848 = vmatprep.subr.mxu0 0.0
    %1849 = vmatpush1.msra.mxu0 0.0
    %1850 = vmatprep.subr.mxu0 0.0
    %1851 = vmatpush1.msra.mxu0 0.0
    %1852 = vmatprep.subr.mxu0 0.0
    %1853 = vmatpush1.msra.mxu0 0.0
    %1854 = vmatprep.subr.mxu0 0.0
    %1855 = vmatpush1.msra.mxu0 0.0
    %1856 = vmatprep.subr.mxu0 0.0
    %1857 = vmatpush1.msra.mxu0 0.0
    %1858 = vmatprep.subr.mxu0 0.0
    %1859 = vmatpush1.msra.mxu0 0.0
    %1860 = vmatprep.subr.mxu0 0.0
    %1861 = vmatpush1.msra.mxu0 0.0
    %1862 = vmatprep.mubr.f32.mxu0 0.0
    %1863 = vmatmul.mubr.f32.gmra.mrb[0].mxu0 %v1794
    %v1864 = vpop.f32.mrb[0].mxu0
    %v1865 = vadd.f32 0.0, %v1864
    %v1866 = vpop.f32.mrb[0].mxu0
    %1867 = vmatprep.mubr.f32.mxu0 0.0
    %1868 = vmatmul.mubr.f32.gmra.mrb[0].mxu0 %v1796
    %v1869 = vpop.f32.mrb[0].mxu0
    %v1870 = vadd.f32 0.0, %v1869
    %v1871 = vpop.f32.mrb[0].mxu0
    %1872 = vdwg.mxu0
    %1875 = vrot.lane.b32.xlu0 %v1865, 8
    %v1876 = vpop.permute.xlu0 %1875
    %1877 = vrot.lane.b32.xlu0 %v1870, 8
    %v1878 = vpop.permute.xlu0 %1877
    %1881 = vst.msk [vmem:[#allocation2] sm:$0xff] %vm604, %v1876
    %1882 = vst.msk [vmem:[#allocation2 + $0x8] sm:$0xff] %vm604, %v1878
    %v1883 = vld [vmem:[%s607] sm:$0xff]
    %v1884 = vld [vmem:[%s607 + $0x8] sm:$0xff]
    %1885 = vrot.lane.b32.xlu0 %v1450, 112
    %v1886 = vpop.permute.xlu0 %1885
    %1887 = vrot.lane.b32.xlu0 %v1455, 112
    %v1888 = vpop.permute.xlu0 %1887
    %1889 = vrot.lane.b32.xlu0 %v1450, 80
    %v1890 = vpop.permute.xlu0 %1889
    %1891 = vrot.lane.b32.xlu0 %v1455, 80
    %v1892 = vpop.permute.xlu0 %1891
    %v1893 = vsel %vm186, %v1886, 0
    %v1895 = vsel %vm186, %v1888, 0
    %v1897 = vsel %vm186, %v1890, 0
    %v1899 = vsel %vm186, %v1892, 0
    %1901 = vmatprep.subr.mxu0 0.0
    %1902 = vmatpush1.xpose.msra.mxu0 %v1897
    %1903 = vmatprep.subr.mxu0 0.0
    %1904 = vmatpush1.xpose.msra.mxu0 %v1899
    %1905 = vmatprep.subr.mxu0 0.0
    %1906 = vmatpush1.xpose.msra.mxu0 0.0
    %1907 = vmatprep.subr.mxu0 0.0
    %1908 = vmatpush1.xpose.msra.mxu0 0.0
    %1909 = vmatprep.subr.mxu0 0.0
    %1910 = vmatpush1.xpose.msra.mxu0 0.0
    %1911 = vmatprep.subr.mxu0 0.0
    %1912 = vmatpush1.xpose.msra.mxu0 0.0
    %1913 = vmatprep.subr.mxu0 0.0
    %1914 = vmatpush1.xpose.msra.mxu0 0.0
    %1915 = vmatprep.subr.mxu0 0.0
    %1916 = vmatpush1.xpose.msra.mxu0 0.0
    %1917 = vmatprep.subr.mxu0 0.0
    %1918 = vmatpush1.xpose.msra.mxu0 0.0
    %1919 = vmatprep.subr.mxu0 0.0
    %1920 = vmatpush1.xpose.msra.mxu0 0.0
    %1921 = vmatprep.subr.mxu0 0.0
    %1922 = vmatpush1.xpose.msra.mxu0 0.0
    %1923 = vmatprep.subr.mxu0 0.0
    %1924 = vmatpush1.xpose.msra.mxu0 0.0
    %1925 = vmatprep.subr.mxu0 0.0
    %1926 = vmatpush1.xpose.msra.mxu0 0.0
    %1927 = vmatprep.subr.mxu0 0.0
    %1928 = vmatpush1.xpose.msra.mxu0 0.0
    %1929 = vmatprep.subr.mxu0 0.0
    %1930 = vmatpush1.xpose.msra.mxu0 0.0
    %1931 = vmatprep.subr.mxu0 0.0
    %1932 = vmatpush1.xpose.msra.mxu0 0.0
    %1933 = vmatprep.subr.mxu0 0.0
    %1934 = vmatpush1.xpose.msra.mxu0 0.0
    %1935 = vmatprep.subr.mxu0 0.0
    %1936 = vmatpush1.xpose.msra.mxu0 0.0
    %1937 = vmatprep.subr.mxu0 0.0
    %1938 = vmatpush1.xpose.msra.mxu0 0.0
    %1939 = vmatprep.subr.mxu0 0.0
    %1940 = vmatpush1.xpose.msra.mxu0 0.0
    %1941 = vmatprep.subr.mxu0 0.0
    %1942 = vmatpush1.xpose.msra.mxu0 0.0
    %1943 = vmatprep.subr.mxu0 0.0
    %1944 = vmatpush1.xpose.msra.mxu0 0.0
    %1945 = vmatprep.subr.mxu0 0.0
    %1946 = vmatpush1.xpose.msra.mxu0 0.0
    %1947 = vmatprep.subr.mxu0 0.0
    %1948 = vmatpush1.xpose.msra.mxu0 0.0
    %1949 = vmatprep.subr.mxu0 0.0
    %1950 = vmatpush1.xpose.msra.mxu0 0.0
    %1951 = vmatprep.subr.mxu0 0.0
    %1952 = vmatpush1.xpose.msra.mxu0 0.0
    %1953 = vmatprep.subr.mxu0 0.0
    %1954 = vmatpush1.xpose.msra.mxu0 0.0
    %1955 = vmatprep.subr.mxu0 0.0
    %1956 = vmatpush1.xpose.msra.mxu0 0.0
    %1957 = vmatprep.subr.mxu0 0.0
    %1958 = vmatpush1.xpose.msra.mxu0 0.0
    %1959 = vmatprep.subr.mxu0 0.0
    %1960 = vmatpush1.xpose.msra.mxu0 0.0
    %1961 = vmatprep.subr.mxu0 0.0
    %1962 = vmatpush1.xpose.msra.mxu0 0.0
    %1963 = vmatprep.subr.mxu0 0.0
    %1964 = vmatpush1.xpose.msra.mxu0 0.0
    %1965 = vmatprep.mubr.f32.mxu0 0.0
    %1966 = vmatmul.mubr.f32.gmra.mrb[0].mxu0 %v1893
    %v1967 = vpop.f32.mrb[0].mxu0
    %v1968 = vadd.f32 %v1883, %v1967
    %v1969 = vpop.f32.mrb[0].mxu0
    %1970 = vmatprep.mubr.f32.mxu0 0.0
    %1971 = vmatmul.mubr.f32.gmra.mrb[0].mxu0 %v1895
    %v1972 = vpop.f32.mrb[0].mxu0
    %v1973 = vadd.f32 %v1884, %v1972
    %v1974 = vpop.f32.mrb[0].mxu0
    %1975 = vdwg.mxu0
    %v1976 = vsel %vm270, %v1968, -inf
    %1977 = vmax.xlane.f32.xlu0 %v1976
    %v1978 = vpop.xlane.xlu0 %1977
    %v1979 = vsel %vm270, %v1973, -inf
    %1980 = vmax.xlane.f32.xlu0 %v1979
    %v1981 = vpop.xlane.xlu0 %1980
    %v1982 = vsub.f32 %v1968, %v1978
    %v1983 = vsub.f32 %v1973, %v1981
    %v1984 = vmul.f32 %v1982, 1.442695
    %v1985 = vpow.pop %v1984
    %v1986 = vmul.f32 %v1983, 1.442695
    %v1987 = vpow.pop %v1986
    %v1988 = vsel %vm270, %v1985, 0.0
    %1989 = vadd.xlane.f32.xlu0 %v1988
    %v1990 = vpop.xlane.xlu0 %1989
    %v1991 = vsel %vm270, %v1987, 0.0
    %1992 = vadd.xlane.f32.xlu0 %v1991
    %v1993 = vpop.xlane.xlu0 %1992
    %v1994 = vrcp.pop %v1990
    %v1995 = vmul.f32 %v1985, %v1994
    %v1996 = vrcp.pop %v1993
    %v1997 = vmul.f32 %v1987, %v1996
    %2000 = vrot.lane.b32.xlu0 %v1995, 32
    %v2001 = vpop.permute.xlu0 %2000
    %2002 = vrot.lane.b32.xlu0 %v1997, 32
    %v2003 = vpop.permute.xlu0 %2002
    %2006 = vst.msk [vmem:[%s1571] sm:$0xff] %vm731, %v2001
    %2007 = vst.msk [vmem:[%s1571 + $0x8] sm:$0xff] %vm731, %v2003
    %2008 = vrot.lane.b32.xlu0 %v1450, 48
    %v2009 = vpop.permute.xlu0 %2008
    %2010 = vrot.lane.b32.xlu0 %v1455, 48
    %v2011 = vpop.permute.xlu0 %2010
    %v2014 = vsel %vm270, %v1995, 0
    %v2016 = vsel %vm270, %v1997, 0
    %2018 = vmatprep.subr.mxu0 0.0
    %2019 = vmatpush1.msra.mxu0 %v2009
    %2020 = vmatprep.subr.mxu0 0.0
    %2021 = vmatpush1.msra.mxu0 %v2011
    %2022 = vmatprep.subr.mxu0 0.0
    %2023 = vmatpush1.msra.mxu0 0.0
    %2024 = vmatprep.subr.mxu0 0.0
    %2025 = vmatpush1.msra.mxu0 0.0
    %2026 = vmatprep.subr.mxu0 0.0
    %2027 = vmatpush1.msra.mxu0 0.0
    %2028 = vmatprep.subr.mxu0 0.0
    %2029 = vmatpush1.msra.mxu0 0.0
    %2030 = vmatprep.subr.mxu0 0.0
    %2031 = vmatpush1.msra.mxu0 0.0
    %2032 = vmatprep.subr.mxu0 0.0
    %2033 = vmatpush1.msra.mxu0 0.0
    %2034 = vmatprep.subr.mxu0 0.0
    %2035 = vmatpush1.msra.mxu0 0.0
    %2036 = vmatprep.subr.mxu0 0.0
    %2037 = vmatpush1.msra.mxu0 0.0
    %2038 = vmatprep.subr.mxu0 0.0
    %2039 = vmatpush1.msra.mxu0 0.0
    %2040 = vmatprep.subr.mxu0 0.0
    %2041 = vmatpush1.msra.mxu0 0.0
    %2042 = vmatprep.subr.mxu0 0.0
    %2043 = vmatpush1.msra.mxu0 0.0
    %2044 = vmatprep.subr.mxu0 0.0
    %2045 = vmatpush1.msra.mxu0 0.0
    %2046 = vmatprep.subr.mxu0 0.0
    %2047 = vmatpush1.msra.mxu0 0.0
    %2048 = vmatprep.subr.mxu0 0.0
    %2049 = vmatpush1.msra.mxu0 0.0
    %2050 = vmatprep.subr.mxu0 0.0
    %2051 = vmatpush1.msra.mxu0 0.0
    %2052 = vmatprep.subr.mxu0 0.0
    %2053 = vmatpush1.msra.mxu0 0.0
    %2054 = vmatprep.subr.mxu0 0.0
    %2055 = vmatpush1.msra.mxu0 0.0
    %2056 = vmatprep.subr.mxu0 0.0
    %2057 = vmatpush1.msra.mxu0 0.0
    %2058 = vmatprep.subr.mxu0 0.0
    %2059 = vmatpush1.msra.mxu0 0.0
    %2060 = vmatprep.subr.mxu0 0.0
    %2061 = vmatpush1.msra.mxu0 0.0
    %2062 = vmatprep.subr.mxu0 0.0
    %2063 = vmatpush1.msra.mxu0 0.0
    %2064 = vmatprep.subr.mxu0 0.0
    %2065 = vmatpush1.msra.mxu0 0.0
    %2066 = vmatprep.subr.mxu0 0.0
    %2067 = vmatpush1.msra.mxu0 0.0
    %2068 = vmatprep.subr.mxu0 0.0
    %2069 = vmatpush1.msra.mxu0 0.0
    %2070 = vmatprep.subr.mxu0 0.0
    %2071 = vmatpush1.msra.mxu0 0.0
    %2072 = vmatprep.subr.mxu0 0.0
    %2073 = vmatpush1.msra.mxu0 0.0
    %2074 = vmatprep.subr.mxu0 0.0
    %2075 = vmatpush1.msra.mxu0 0.0
    %2076 = vmatprep.subr.mxu0 0.0
    %2077 = vmatpush1.msra.mxu0 0.0
    %2078 = vmatprep.subr.mxu0 0.0
    %2079 = vmatpush1.msra.mxu0 0.0
    %2080 = vmatprep.subr.mxu0 0.0
    %2081 = vmatpush1.msra.mxu0 0.0
    %2082 = vmatprep.mubr.f32.mxu0 0.0
    %2083 = vmatmul.mubr.f32.gmra.mrb[0].mxu0 %v2014
    %v2084 = vpop.f32.mrb[0].mxu0
    %v2085 = vadd.f32 0.0, %v2084
    %v2086 = vpop.f32.mrb[0].mxu0
    %2087 = vmatprep.mubr.f32.mxu0 0.0
    %2088 = vmatmul.mubr.f32.gmra.mrb[0].mxu0 %v2016
    %v2089 = vpop.f32.mrb[0].mxu0
    %v2090 = vadd.f32 0.0, %v2089
    %v2091 = vpop.f32.mrb[0].mxu0
    %2092 = vdwg.mxu0
    %2095 = vrot.lane.b32.xlu0 %v2085, 16
    %v2096 = vpop.permute.xlu0 %2095
    %2097 = vrot.lane.b32.xlu0 %v2090, 16
    %v2098 = vpop.permute.xlu0 %2097
    %2101 = vst.msk [vmem:[#allocation2] sm:$0xff] %vm827, %v2096
    %2102 = vst.msk [vmem:[#allocation2 + $0x8] sm:$0xff] %vm827, %v2098
    %v2103 = vld [vmem:[%s830] sm:$0xff]
    %v2104 = vld [vmem:[%s830 + $0x8] sm:$0xff]
    %2105 = vrot.lane.b32.xlu0 %v1450, 104
    %v2106 = vpop.permute.xlu0 %2105
    %2107 = vrot.lane.b32.xlu0 %v1455, 104
    %v2108 = vpop.permute.xlu0 %2107
    %2109 = vrot.lane.b32.xlu0 %v1450, 72
    %v2110 = vpop.permute.xlu0 %2109
    %2111 = vrot.lane.b32.xlu0 %v1455, 72
    %v2112 = vpop.permute.xlu0 %2111
    %v2113 = vsel %vm186, %v2106, 0
    %v2115 = vsel %vm186, %v2108, 0
    %v2117 = vsel %vm186, %v2110, 0
    %v2119 = vsel %vm186, %v2112, 0
    %2121 = vmatprep.subr.mxu0 0.0
    %2122 = vmatpush1.xpose.msra.mxu0 %v2117
    %2123 = vmatprep.subr.mxu0 0.0
    %2124 = vmatpush1.xpose.msra.mxu0 %v2119
    %2125 = vmatprep.subr.mxu0 0.0
    %2126 = vmatpush1.xpose.msra.mxu0 0.0
    %2127 = vmatprep.subr.mxu0 0.0
    %2128 = vmatpush1.xpose.msra.mxu0 0.0
    %2129 = vmatprep.subr.mxu0 0.0
    %2130 = vmatpush1.xpose.msra.mxu0 0.0
    %2131 = vmatprep.subr.mxu0 0.0
    %2132 = vmatpush1.xpose.msra.mxu0 0.0
    %2133 = vmatprep.subr.mxu0 0.0
    %2134 = vmatpush1.xpose.msra.mxu0 0.0
    %2135 = vmatprep.subr.mxu0 0.0
    %2136 = vmatpush1.xpose.msra.mxu0 0.0
    %2137 = vmatprep.subr.mxu0 0.0
    %2138 = vmatpush1.xpose.msra.mxu0 0.0
    %2139 = vmatprep.subr.mxu0 0.0
    %2140 = vmatpush1.xpose.msra.mxu0 0.0
    %2141 = vmatprep.subr.mxu0 0.0
    %2142 = vmatpush1.xpose.msra.mxu0 0.0
    %2143 = vmatprep.subr.mxu0 0.0
    %2144 = vmatpush1.xpose.msra.mxu0 0.0
    %2145 = vmatprep.subr.mxu0 0.0
    %2146 = vmatpush1.xpose.msra.mxu0 0.0
    %2147 = vmatprep.subr.mxu0 0.0
    %2148 = vmatpush1.xpose.msra.mxu0 0.0
    %2149 = vmatprep.subr.mxu0 0.0
    %2150 = vmatpush1.xpose.msra.mxu0 0.0
    %2151 = vmatprep.subr.mxu0 0.0
    %2152 = vmatpush1.xpose.msra.mxu0 0.0
    %2153 = vmatprep.subr.mxu0 0.0
    %2154 = vmatpush1.xpose.msra.mxu0 0.0
    %2155 = vmatprep.subr.mxu0 0.0
    %2156 = vmatpush1.xpose.msra.mxu0 0.0
    %2157 = vmatprep.subr.mxu0 0.0
    %2158 = vmatpush1.xpose.msra.mxu0 0.0
    %2159 = vmatprep.subr.mxu0 0.0
    %2160 = vmatpush1.xpose.msra.mxu0 0.0
    %2161 = vmatprep.subr.mxu0 0.0
    %2162 = vmatpush1.xpose.msra.mxu0 0.0
    %2163 = vmatprep.subr.mxu0 0.0
    %2164 = vmatpush1.xpose.msra.mxu0 0.0
    %2165 = vmatprep.subr.mxu0 0.0
    %2166 = vmatpush1.xpose.msra.mxu0 0.0
    %2167 = vmatprep.subr.mxu0 0.0
    %2168 = vmatpush1.xpose.msra.mxu0 0.0
    %2169 = vmatprep.subr.mxu0 0.0
    %2170 = vmatpush1.xpose.msra.mxu0 0.0
    %2171 = vmatprep.subr.mxu0 0.0
    %2172 = vmatpush1.xpose.msra.mxu0 0.0
    %2173 = vmatprep.subr.mxu0 0.0
    %2174 = vmatpush1.xpose.msra.mxu0 0.0
    %2175 = vmatprep.subr.mxu0 0.0
    %2176 = vmatpush1.xpose.msra.mxu0 0.0
    %2177 = vmatprep.subr.mxu0 0.0
    %2178 = vmatpush1.xpose.msra.mxu0 0.0
    %2179 = vmatprep.subr.mxu0 0.0
    %2180 = vmatpush1.xpose.msra.mxu0 0.0
    %2181 = vmatprep.subr.mxu0 0.0
    %2182 = vmatpush1.xpose.msra.mxu0 0.0
    %2183 = vmatprep.subr.mxu0 0.0
    %2184 = vmatpush1.xpose.msra.mxu0 0.0
    %2185 = vmatprep.mubr.f32.mxu0 0.0
    %2186 = vmatmul.mubr.f32.gmra.mrb[0].mxu0 %v2113
    %v2187 = vpop.f32.mrb[0].mxu0
    %v2188 = vadd.f32 %v2103, %v2187
    %v2189 = vpop.f32.mrb[0].mxu0
    %2190 = vmatprep.mubr.f32.mxu0 0.0
    %2191 = vmatmul.mubr.f32.gmra.mrb[0].mxu0 %v2115
    %v2192 = vpop.f32.mrb[0].mxu0
    %v2193 = vadd.f32 %v2104, %v2192
    %v2194 = vpop.f32.mrb[0].mxu0
    %2195 = vdwg.mxu0
    %v2196 = vsel %vm270, %v2188, -inf
    %2197 = vmax.xlane.f32.xlu0 %v2196
    %v2198 = vpop.xlane.xlu0 %2197
    %v2199 = vsel %vm270, %v2193, -inf
    %2200 = vmax.xlane.f32.xlu0 %v2199
    %v2201 = vpop.xlane.xlu0 %2200
    %v2202 = vsub.f32 %v2188, %v2198
    %v2203 = vsub.f32 %v2193, %v2201
    %v2204 = vmul.f32 %v2202, 1.442695
    %v2205 = vpow.pop %v2204
    %v2206 = vmul.f32 %v2203, 1.442695
    %v2207 = vpow.pop %v2206
    %v2208 = vsel %vm270, %v2205, 0.0
    %2209 = vadd.xlane.f32.xlu0 %v2208
    %v2210 = vpop.xlane.xlu0 %2209
    %v2211 = vsel %vm270, %v2207, 0.0
    %2212 = vadd.xlane.f32.xlu0 %v2211
    %v2213 = vpop.xlane.xlu0 %2212
    %v2214 = vrcp.pop %v2210
    %v2215 = vmul.f32 %v2205, %v2214
    %v2216 = vrcp.pop %v2213
    %v2217 = vmul.f32 %v2207, %v2216
    %2220 = vrot.lane.b32.xlu0 %v2215, 48
    %v2221 = vpop.permute.xlu0 %2220
    %2222 = vrot.lane.b32.xlu0 %v2217, 48
    %v2223 = vpop.permute.xlu0 %2222
    %2226 = vst.msk [vmem:[%s1571] sm:$0xff] %vm954, %v2221
    %2227 = vst.msk [vmem:[%s1571 + $0x8] sm:$0xff] %vm954, %v2223
    %2228 = vrot.lane.b32.xlu0 %v1450, 40
    %v2229 = vpop.permute.xlu0 %2228
    %2230 = vrot.lane.b32.xlu0 %v1455, 40
    %v2231 = vpop.permute.xlu0 %2230
    %v2234 = vsel %vm270, %v2215, 0
    %v2236 = vsel %vm270, %v2217, 0
    %2238 = vmatprep.subr.mxu0 0.0
    %2239 = vmatpush1.msra.mxu0 %v2229
    %2240 = vmatprep.subr.mxu0 0.0
    %2241 = vmatpush1.msra.mxu0 %v2231
    %2242 = vmatprep.subr.mxu0 0.0
    %2243 = vmatpush1.msra.mxu0 0.0
    %2244 = vmatprep.subr.mxu0 0.0
    %2245 = vmatpush1.msra.mxu0 0.0
    %2246 = vmatprep.subr.mxu0 0.0
    %2247 = vmatpush1.msra.mxu0 0.0
    %2248 = vmatprep.subr.mxu0 0.0
    %2249 = vmatpush1.msra.mxu0 0.0
    %2250 = vmatprep.subr.mxu0 0.0
    %2251 = vmatpush1.msra.mxu0 0.0
    %2252 = vmatprep.subr.mxu0 0.0
    %2253 = vmatpush1.msra.mxu0 0.0
    %2254 = vmatprep.subr.mxu0 0.0
    %2255 = vmatpush1.msra.mxu0 0.0
    %2256 = vmatprep.subr.mxu0 0.0
    %2257 = vmatpush1.msra.mxu0 0.0
    %2258 = vmatprep.subr.mxu0 0.0
    %2259 = vmatpush1.msra.mxu0 0.0
    %2260 = vmatprep.subr.mxu0 0.0
    %2261 = vmatpush1.msra.mxu0 0.0
    %2262 = vmatprep.subr.mxu0 0.0
    %2263 = vmatpush1.msra.mxu0 0.0
    %2264 = vmatprep.subr.mxu0 0.0
    %2265 = vmatpush1.msra.mxu0 0.0
    %2266 = vmatprep.subr.mxu0 0.0
    %2267 = vmatpush1.msra.mxu0 0.0
    %2268 = vmatprep.subr.mxu0 0.0
    %2269 = vmatpush1.msra.mxu0 0.0
    %2270 = vmatprep.subr.mxu0 0.0
    %2271 = vmatpush1.msra.mxu0 0.0
    %2272 = vmatprep.subr.mxu0 0.0
    %2273 = vmatpush1.msra.mxu0 0.0
    %2274 = vmatprep.subr.mxu0 0.0
    %2275 = vmatpush1.msra.mxu0 0.0
    %2276 = vmatprep.subr.mxu0 0.0
    %2277 = vmatpush1.msra.mxu0 0.0
    %2278 = vmatprep.subr.mxu0 0.0
    %2279 = vmatpush1.msra.mxu0 0.0
    %2280 = vmatprep.subr.mxu0 0.0
    %2281 = vmatpush1.msra.mxu0 0.0
    %2282 = vmatprep.subr.mxu0 0.0
    %2283 = vmatpush1.msra.mxu0 0.0
    %2284 = vmatprep.subr.mxu0 0.0
    %2285 = vmatpush1.msra.mxu0 0.0
    %2286 = vmatprep.subr.mxu0 0.0
    %2287 = vmatpush1.msra.mxu0 0.0
    %2288 = vmatprep.subr.mxu0 0.0
    %2289 = vmatpush1.msra.mxu0 0.0
    %2290 = vmatprep.subr.mxu0 0.0
    %2291 = vmatpush1.msra.mxu0 0.0
    %2292 = vmatprep.subr.mxu0 0.0
    %2293 = vmatpush1.msra.mxu0 0.0
    %2294 = vmatprep.subr.mxu0 0.0
    %2295 = vmatpush1.msra.mxu0 0.0
    %2296 = vmatprep.subr.mxu0 0.0
    %2297 = vmatpush1.msra.mxu0 0.0
    %2298 = vmatprep.subr.mxu0 0.0
    %2299 = vmatpush1.msra.mxu0 0.0
    %2300 = vmatprep.subr.mxu0 0.0
    %2301 = vmatpush1.msra.mxu0 0.0
    %2302 = vmatprep.mubr.f32.mxu0 0.0
    %2303 = vmatmul.mubr.f32.gmra.mrb[0].mxu0 %v2234
    %v2304 = vpop.f32.mrb[0].mxu0
    %v2305 = vadd.f32 0.0, %v2304
    %v2306 = vpop.f32.mrb[0].mxu0
    %2307 = vmatprep.mubr.f32.mxu0 0.0
    %2308 = vmatmul.mubr.f32.gmra.mrb[0].mxu0 %v2236
    %v2309 = vpop.f32.mrb[0].mxu0
    %v2310 = vadd.f32 0.0, %v2309
    %v2311 = vpop.f32.mrb[0].mxu0
    %2312 = vdwg.mxu0
    %2315 = vrot.lane.b32.xlu0 %v2305, 24
    %v2316 = vpop.permute.xlu0 %2315
    %2317 = vrot.lane.b32.xlu0 %v2310, 24
    %v2318 = vpop.permute.xlu0 %2317
    %2321 = vst.msk [vmem:[#allocation2] sm:$0xff] %vm1050, %v2316
    %2322 = vst.msk [vmem:[#allocation2 + $0x8] sm:$0xff] %vm1050, %v2318
    %v2323 = vld [vmem:[#allocation2] sm:$0xff]
    %v2324 = vld [vmem:[#allocation2 + $0x8] sm:$0xff]
    %s2325 = scalar_lea.vmem %s4, 32
    %v2326 = vld [vmem:[%s2325] sm:$0xff]
    %v2327 = vld [vmem:[%s2325 + $0x8] sm:$0xff]
    %v2328 = vld [vmem:[%s2325 + $0x10] sm:$0xff]
    %v2329 = vld [vmem:[%s2325 + $0x18] sm:$0xff]
    %v2331 = vsel %vm69, %v2323, 0
    %v2334 = vsel %vm69, %v2324, 0
    %2336 = vmatprep.subr.mxu0 0.0
    %2337 = vmatpush1.msra.mxu0 %v2326
    %2338 = vmatprep.subr.mxu0 0.0
    %2339 = vmatpush1.msra.mxu0 %v2327
    %2340 = vmatprep.subr.mxu0 0.0
    %2341 = vmatpush1.msra.mxu0 %v2328
    %2342 = vmatprep.subr.mxu0 0.0
    %2343 = vmatpush1.msra.mxu0 %v2329
    %2344 = vmatprep.subr.mxu0 0.0
    %2345 = vmatpush1.msra.mxu0 0.0
    %2346 = vmatprep.subr.mxu0 0.0
    %2347 = vmatpush1.msra.mxu0 0.0
    %2348 = vmatprep.subr.mxu0 0.0
    %2349 = vmatpush1.msra.mxu0 0.0
    %2350 = vmatprep.subr.mxu0 0.0
    %2351 = vmatpush1.msra.mxu0 0.0
    %2352 = vmatprep.subr.mxu0 0.0
    %2353 = vmatpush1.msra.mxu0 0.0
    %2354 = vmatprep.subr.mxu0 0.0
    %2355 = vmatpush1.msra.mxu0 0.0
    %2356 = vmatprep.subr.mxu0 0.0
    %2357 = vmatpush1.msra.mxu0 0.0
    %2358 = vmatprep.subr.mxu0 0.0
    %2359 = vmatpush1.msra.mxu0 0.0
    %2360 = vmatprep.subr.mxu0 0.0
    %2361 = vmatpush1.msra.mxu0 0.0
    %2362 = vmatprep.subr.mxu0 0.0
    %2363 = vmatpush1.msra.mxu0 0.0
    %2364 = vmatprep.subr.mxu0 0.0
    %2365 = vmatpush1.msra.mxu0 0.0
    %2366 = vmatprep.subr.mxu0 0.0
    %2367 = vmatpush1.msra.mxu0 0.0
    %2368 = vmatprep.subr.mxu0 0.0
    %2369 = vmatpush1.msra.mxu0 0.0
    %2370 = vmatprep.subr.mxu0 0.0
    %2371 = vmatpush1.msra.mxu0 0.0
    %2372 = vmatprep.subr.mxu0 0.0
    %2373 = vmatpush1.msra.mxu0 0.0
    %2374 = vmatprep.subr.mxu0 0.0
    %2375 = vmatpush1.msra.mxu0 0.0
    %2376 = vmatprep.subr.mxu0 0.0
    %2377 = vmatpush1.msra.mxu0 0.0
    %2378 = vmatprep.subr.mxu0 0.0
    %2379 = vmatpush1.msra.mxu0 0.0
    %2380 = vmatprep.subr.mxu0 0.0
    %2381 = vmatpush1.msra.mxu0 0.0
    %2382 = vmatprep.subr.mxu0 0.0
    %2383 = vmatpush1.msra.mxu0 0.0
    %2384 = vmatprep.subr.mxu0 0.0
    %2385 = vmatpush1.msra.mxu0 0.0
    %2386 = vmatprep.subr.mxu0 0.0
    %2387 = vmatpush1.msra.mxu0 0.0
    %2388 = vmatprep.subr.mxu0 0.0
    %2389 = vmatpush1.msra.mxu0 0.0
    %2390 = vmatprep.subr.mxu0 0.0
    %2391 = vmatpush1.msra.mxu0 0.0
    %2392 = vmatprep.subr.mxu0 0.0
    %2393 = vmatpush1.msra.mxu0 0.0
    %2394 = vmatprep.subr.mxu0 0.0
    %2395 = vmatpush1.msra.mxu0 0.0
    %2396 = vmatprep.subr.mxu0 0.0
    %2397 = vmatpush1.msra.mxu0 0.0
    %2398 = vmatprep.subr.mxu0 0.0
    %2399 = vmatpush1.msra.mxu0 0.0
    %2400 = vmatprep.mubr.f32.mxu0 0.0
    %2401 = vmatmul.mubr.f32.gmra.mrb[0].mxu0 %v2331
    %v2402 = vpop.f32.mrb[0].mxu0
    %v2403 = vadd.f32 0.0, %v2402
    %v2404 = vpop.f32.mrb[0].mxu0
    %2405 = vmatprep.mubr.f32.mxu0 0.0
    %2406 = vmatmul.mubr.f32.gmra.mrb[0].mxu0 %v2334
    %v2407 = vpop.f32.mrb[0].mxu0
    %v2408 = vadd.f32 0.0, %v2407
    %v2409 = vpop.f32.mrb[0].mxu0
    %2410 = vdwg.mxu0
    %v2411 = vadd.f32 %v1344, %v2403
    %v2412 = vadd.f32 %v1345, %v2408
    %s2413 = scalar_lea.vmem %s5, 1
    %v2414 = vld [vmem:[%s2413] sm:$0x1]
    %v2415 = vmul.f32 %v2411, %v2411
    %v2416 = vmul.f32 %v2412, %v2412
    %v2417 = vsel %vm69, %v2415, 0.0
    %2418 = vadd.xlane.f32.xlu0 %v2417
    %v2419 = vpop.xlane.xlu0 %2418
    %v2420 = vsel %vm69, %v2416, 0.0
    %2421 = vadd.xlane.f32.xlu0 %v2420
    %v2422 = vpop.xlane.xlu0 %2421
    %v2423 = vmul.f32 %v2419, %v76
    %v2424 = vmul.f32 %v2422, %v76
    %v2425 = vadd.f32 %v2423, 1e-06
    %v2426 = vadd.f32 %v2424, 1e-06
    %v2427 = vrsqrt.pop %v2425
    %v2428 = vrsqrt.pop %v2426
    %v2429 = vmul.f32 %v2411, %v2427
    %v2430 = vmul.f32 %v2412, %v2428
    %v2432 = vlaneseq
    %v2433 = vshrl.u32 %v2432, 7
    %v2434 = vsub.s32 0, %v2433
    %v2435 = vrot.slane %v2414, %v2434
    %v2437 = vmul.f32 %v2429, %v2435
    %v2438 = vmul.f32 %v2430, %v2435
    %s2439 = scalar_lea.vmem [#allocation6], 32
    %v2440 = vld [vmem:[%s2439] sm:$0xff]
    %v2441 = vld [vmem:[%s2439 + $0x8] sm:$0xff]
    %v2442 = vld [vmem:[%s2439 + $0x10] sm:$0xff]
    %v2443 = vld [vmem:[%s2439 + $0x18] sm:$0xff]
    %v2445 = vsel %vm69, %v2437, 0
    %v2448 = vsel %vm69, %v2438, 0
    %2450 = vmatprep.subr.mxu0 0.0
    %2451 = vmatpush1.msra.mxu0 %v2440
    %2452 = vmatprep.subr.mxu0 0.0
    %2453 = vmatpush1.msra.mxu0 %v2441
    %2454 = vmatprep.subr.mxu0 0.0
    %2455 = vmatpush1.msra.mxu0 %v2442
    %2456 = vmatprep.subr.mxu0 0.0
    %2457 = vmatpush1.msra.mxu0 %v2443
    %2458 = vmatprep.subr.mxu0 0.0
    %2459 = vmatpush1.msra.mxu0 0.0
    %2460 = vmatprep.subr.mxu0 0.0
    %2461 = vmatpush1.msra.mxu0 0.0
    %2462 = vmatprep.subr.mxu0 0.0
    %2463 = vmatpush1.msra.mxu0 0.0
    %2464 = vmatprep.subr.mxu0 0.0
    %2465 = vmatpush1.msra.mxu0 0.0
    %2466 = vmatprep.subr.mxu0 0.0
    %2467 = vmatpush1.msra.mxu0 0.0
    %2468 = vmatprep.subr.mxu0 0.0
    %2469 = vmatpush1.msra.mxu0 0.0
    %2470 = vmatprep.subr.mxu0 0.0
    %2471 = vmatpush1.msra.mxu0 0.0
    %2472 = vmatprep.subr.mxu0 0.0
    %2473 = vmatpush1.msra.mxu0 0.0
    %2474 = vmatprep.subr.mxu0 0.0
    %2475 = vmatpush1.msra.mxu0 0.0
    %2476 = vmatprep.subr.mxu0 0.0
    %2477 = vmatpush1.msra.mxu0 0.0
    %2478 = vmatprep.subr.mxu0 0.0
    %2479 = vmatpush1.msra.mxu0 0.0
    %2480 = vmatprep.subr.mxu0 0.0
    %2481 = vmatpush1.msra.mxu0 0.0
    %2482 = vmatprep.subr.mxu0 0.0
    %2483 = vmatpush1.msra.mxu0 0.0
    %2484 = vmatprep.subr.mxu0 0.0
    %2485 = vmatpush1.msra.mxu0 0.0
    %2486 = vmatprep.subr.mxu0 0.0
    %2487 = vmatpush1.msra.mxu0 0.0
    %2488 = vmatprep.subr.mxu0 0.0
    %2489 = vmatpush1.msra.mxu0 0.0
    %2490 = vmatprep.subr.mxu0 0.0
    %2491 = vmatpush1.msra.mxu0 0.0
    %2492 = vmatprep.subr.mxu0 0.0
    %2493 = vmatpush1.msra.mxu0 0.0
    %2494 = vmatprep.subr.mxu0 0.0
    %2495 = vmatpush1.msra.mxu0 0.0
    %2496 = vmatprep.subr.mxu0 0.0
    %2497 = vmatpush1.msra.mxu0 0.0
    %2498 = vmatprep.subr.mxu0 0.0
    %2499 = vmatpush1.msra.mxu0 0.0
    %2500 = vmatprep.subr.mxu0 0.0
    %2501 = vmatpush1.msra.mxu0 0.0
    %2502 = vmatprep.subr.mxu0 0.0
    %2503 = vmatpush1.msra.mxu0 0.0
    %2504 = vmatprep.subr.mxu0 0.0
    %2505 = vmatpush1.msra.mxu0 0.0
    %2506 = vmatprep.subr.mxu0 0.0
    %2507 = vmatpush1.msra.mxu0 0.0
    %2508 = vmatprep.subr.mxu0 0.0
    %2509 = vmatpush1.msra.mxu0 0.0
    %2510 = vmatprep.subr.mxu0 0.0
    %2511 = vmatpush1.msra.mxu0 0.0
    %2512 = vmatprep.subr.mxu0 0.0
    %2513 = vmatpush1.msra.mxu0 0.0
    %2514 = vmatprep.mubr.f32.mxu0 0.0
    %2515 = vmatmul.mubr.f32.gmra.mrb[0].mxu0 %v2445
    %v2516 = vpop.f32.mrb[0].mxu0
    %v2517 = vadd.f32 0.0, %v2516
    %v2518 = vpop.f32.mrb[0].mxu0
    %2519 = vmatprep.mubr.f32.mxu0 0.0
    %2520 = vmatmul.mubr.f32.gmra.mrb[0].mxu0 %v2448
    %v2521 = vpop.f32.mrb[0].mxu0
    %v2522 = vadd.f32 0.0, %v2521
    %v2523 = vpop.f32.mrb[0].mxu0
    %2524 = vdwg.mxu0
    %v2525 = vmax.f32 %v2517, 0.0
    %v2526 = vmax.f32 %v2522, 0.0
    %s2527 = scalar_lea.vmem %s7, 64
    %v2528 = vld [vmem:[%s2527] sm:$0xff]
    %v2529 = vld [vmem:[%s2527 + $0x8] sm:$0xff]
    %v2530 = vld [vmem:[%s2527 + $0x10] sm:$0xff]
    %v2531 = vld [vmem:[%s2527 + $0x18] sm:$0xff]
    %v2532 = vld [vmem:[%s2527 + $0x20] sm:$0xff]
    %v2533 = vld [vmem:[%s2527 + $0x28] sm:$0xff]
    %v2534 = vld [vmem:[%s2527 + $0x30] sm:$0xff]
    %v2535 = vld [vmem:[%s2527 + $0x38] sm:$0xff]
    %v2537 = vsel %vm1262, %v2525, 0
    %v2540 = vsel %vm1262, %v2526, 0
    %2542 = vmatprep.subr.mxu0 0.0
    %2543 = vmatpush1.msra.mxu0 %v2528
    %2544 = vmatprep.subr.mxu0 0.0
    %2545 = vmatpush1.msra.mxu0 %v2529
    %2546 = vmatprep.subr.mxu0 0.0
    %2547 = vmatpush1.msra.mxu0 %v2530
    %2548 = vmatprep.subr.mxu0 0.0
    %2549 = vmatpush1.msra.mxu0 %v2531
    %2550 = vmatprep.subr.mxu0 0.0
    %2551 = vmatpush1.msra.mxu0 %v2532
    %2552 = vmatprep.subr.mxu0 0.0
    %2553 = vmatpush1.msra.mxu0 %v2533
    %2554 = vmatprep.subr.mxu0 0.0
    %2555 = vmatpush1.msra.mxu0 %v2534
    %2556 = vmatprep.subr.mxu0 0.0
    %2557 = vmatpush1.msra.mxu0 %v2535
    %2558 = vmatprep.subr.mxu0 0.0
    %2559 = vmatpush1.msra.mxu0 0.0
    %2560 = vmatprep.subr.mxu0 0.0
    %2561 = vmatpush1.msra.mxu0 0.0
    %2562 = vmatprep.subr.mxu0 0.0
    %2563 = vmatpush1.msra.mxu0 0.0
    %2564 = vmatprep.subr.mxu0 0.0
    %2565 = vmatpush1.msra.mxu0 0.0
    %2566 = vmatprep.subr.mxu0 0.0
    %2567 = vmatpush1.msra.mxu0 0.0
    %2568 = vmatprep.subr.mxu0 0.0
    %2569 = vmatpush1.msra.mxu0 0.0
    %2570 = vmatprep.subr.mxu0 0.0
    %2571 = vmatpush1.msra.mxu0 0.0
    %2572 = vmatprep.subr.mxu0 0.0
    %2573 = vmatpush1.msra.mxu0 0.0
    %2574 = vmatprep.subr.mxu0 0.0
    %2575 = vmatpush1.msra.mxu0 0.0
    %2576 = vmatprep.subr.mxu0 0.0
    %2577 = vmatpush1.msra.mxu0 0.0
    %2578 = vmatprep.subr.mxu0 0.0
    %2579 = vmatpush1.msra.mxu0 0.0
    %2580 = vmatprep.subr.mxu0 0.0
    %2581 = vmatpush1.msra.mxu0 0.0
    %2582 = vmatprep.subr.mxu0 0.0
    %2583 = vmatpush1.msra.mxu0 0.0
    %2584 = vmatprep.subr.mxu0 0.0
    %2585 = vmatpush1.msra.mxu0 0.0
    %2586 = vmatprep.subr.mxu0 0.0
    %2587 = vmatpush1.msra.mxu0 0.0
    %2588 = vmatprep.subr.mxu0 0.0
    %2589 = vmatpush1.msra.mxu0 0.0
    %2590 = vmatprep.subr.mxu0 0.0
    %2591 = vmatpush1.msra.mxu0 0.0
    %2592 = vmatprep.subr.mxu0 0.0
    %2593 = vmatpush1.msra.mxu0 0.0
    %2594 = vmatprep.subr.mxu0 0.0
    %2595 = vmatpush1.msra.mxu0 0.0
    %2596 = vmatprep.subr.mxu0 0.0
    %2597 = vmatpush1.msra.mxu0 0.0
    %2598 = vmatprep.subr.mxu0 0.0
    %2599 = vmatpush1.msra.mxu0 0.0
    %2600 = vmatprep.subr.mxu0 0.0
    %2601 = vmatpush1.msra.mxu0 0.0
    %2602 = vmatprep.subr.mxu0 0.0
    %2603 = vmatpush1.msra.mxu0 0.0
    %2604 = vmatprep.subr.mxu0 0.0
    %2605 = vmatpush1.msra.mxu0 0.0
    %2606 = vmatprep.mubr.f32.mxu0 0.0
    %2607 = vmatmul.mubr.f32.gmra.mrb[0].mxu0 %v2537
    %v2608 = vpop.f32.mrb[0].mxu0
    %v2609 = vadd.f32 0.0, %v2608
    %v2610 = vpop.f32.mrb[0].mxu0
    %2611 = vmatprep.mubr.f32.mxu0 0.0
    %2612 = vmatmul.mubr.f32.gmra.mrb[0].mxu0 %v2540
    %v2613 = vpop.f32.mrb[0].mxu0
    %v2614 = vadd.f32 0.0, %v2613
    %v2615 = vpop.f32.mrb[0].mxu0
    %2616 = vdwg.mxu0
    %v2617 = vadd.f32 %v2411, %v2609
    %v2618 = vadd.f32 %v2412, %v2614
    %v2619 = vld [vmem:[%s8] sm:$0x1]
    %v2620 = vmul.f32 %v2617, %v2617
    %v2621 = vmul.f32 %v2618, %v2618
    %v2622 = vsel %vm69, %v2620, 0.0
    %2623 = vadd.xlane.f32.xlu0 %v2622
    %v2624 = vpop.xlane.xlu0 %2623
    %v2625 = vsel %vm69, %v2621, 0.0
    %2626 = vadd.xlane.f32.xlu0 %v2625
    %v2627 = vpop.xlane.xlu0 %2626
    %v2628 = vmul.f32 %v2624, %v76
    %v2629 = vmul.f32 %v2627, %v76
    %v2630 = vadd.f32 %v2628, 1e-06
    %v2631 = vadd.f32 %v2629, 1e-06
    %v2632 = vrsqrt.pop %v2630
    %v2633 = vrsqrt.pop %v2631
    %v2634 = vmul.f32 %v2617, %v2632
    %v2635 = vmul.f32 %v2618, %v2633
    %v2637 = vlaneseq
    %v2638 = vshrl.u32 %v2637, 7
    %v2639 = vsub.s32 0, %v2638
    %v2640 = vrot.slane %v2619, %v2639
    %v2642 = vmul.f32 %v2634, %v2640
    %v2643 = vmul.f32 %v2635, %v2640
    %2644 = vst.msk [vmem:[#allocation8] sm:$0xff] %vm69, %v2642
    %2645 = vst.msk [vmem:[#allocation8 + $0x8] sm:$0xff] %vm69, %v2643
    // Predicated region
    $region46: #{tpu_custom_call.1} parent=1 // pred_check
      _
    $region47: #{tpu_custom_call.1} parent=1 // pred_check_branch
      %2647 = sbr.rel (0) target = $region49
    $region48: #{tpu_custom_call.1} parent=1 // pred_region
      %s2649 = ssub.s32 256, 256
      %2650 = vsyncadd [#allocation5], %s2649
      %s2651 = sshll.u32 [#allocation8], 4
      %s2652 = int_to_ptr.vmem [resolvable:$true] %s2651
      %2657 = dma.vmem_to_hbm [thread:$0]  %s2652, 256, %s9, [#allocation5], 128, 128, 8
    $region49: #{tpu_custom_call.1} parent=1 // pred_fallthru
      _
    // Predicated region
    $region50: #{tpu_custom_call.1} parent=1 // pred_check
      _
    $region51: #{tpu_custom_call.1} parent=1 // pred_check_branch
      %2659 = sbr.rel (0) target = $region53
    $region52: #{tpu_custom_call.1} parent=1 // pred_region
      %s2661 = ssub.s32 512, 512
      %2662 = vsyncadd [#allocation10], %s2661
      %s2663 = sshll.u32 [#allocation9], 4
      %s2664 = int_to_ptr.vmem [resolvable:$true] %s2663
      %2669 = dma.vmem_to_hbm [thread:$0]  %s2664, 512, %s10, [#allocation10], 128, 128, 8
    $region53: #{tpu_custom_call.1} parent=1 // pred_fallthru
      _
    // Predicated region
    $region54: #{tpu_custom_call.1} parent=1 // pred_check
      _
    $region55: #{tpu_custom_call.1} parent=1 // pred_check_branch
      %2671 = sbr.rel (0) target = $region57
    $region56: #{tpu_custom_call.1} parent=1 // pred_region
      %2672 = dma.done [#allocation5], 256
    $region57: #{tpu_custom_call.1} parent=1 // pred_fallthru
      _
    // Predicated region
    $region58: #{tpu_custom_call.1} parent=1 // pred_check
      _
    $region59: #{tpu_custom_call.1} parent=1 // pred_check_branch
      %2674 = sbr.rel (0) target = $region61
    $region60: #{tpu_custom_call.1} parent=1 // pred_region
      %2675 = dma.done [#allocation10], 512
    $region61: #{tpu_custom_call.1} parent=1 // pred_fallthru
      _
    %2676 = vsyncpa [#allocation4], 1
    %2677 = vsyncpa [#allocation7], 1
    %2678 = vsyncpa [#allocation5], 1
    %2679 = vsyncpa [#allocation10], 1

</llo_original>
